<compile_context>
chip_gen: v5e
topology: v5e:2x2
jax: 0.10.0
libtpu: 0.0.40
codegen_flags: <defaults>
</compile_context>

<pallas_src>
import functools
import math

import jax
import jax.numpy as jnp
from jax.experimental import pallas as pl
from jax.experimental.pallas import tpu as pltpu


def _rmsnorm(v, w, eps):
    ms = jnp.mean(v * v, axis=-1, keepdims=True)
    return v * jax.lax.rsqrt(ms + eps) * w


def transformer_block_kernel(x_ref, cosf_ref, sinf_ref, anw_ref, fnw_ref,
                             wqkv_ref, wo_ref, w1_ref, w3_ref, w2_ref,
                             o_ref,
                             attn_ref,
                             *, n_heads, head_dim, eps):
    f32 = jnp.float32
    bf16 = jnp.bfloat16
    S = x_ref.shape[1]
    D = n_heads * head_dim
    half = head_dim // 2
    D2 = D // 2

    x = x_ref[0]                                        # (S, D) f32

    # ---------------- attention ----------------
    xn_bf = _rmsnorm(x, anw_ref[0], eps).astype(bf16)

    # Fused Q|K|V projection: one wide MXU matmul (N = 3D), xn read once.
    qkv = jnp.dot(xn_bf, wqkv_ref[...], preferred_element_type=f32)   # (S, 3D)
    q = qkv[:, :D]
    k = qkv[:, D:2 * D]
    v = qkv[:, 2 * D:]

    # RoPE for all heads at once.  wq/wk output features are permuted (at weight prep)
    # to [all even rotary features | all odd rotary features], so the interleaved
    # rotation becomes one full-width rotate-half on the XLU:
    #   qr = q * cosF + roll(q, D/2) * sinF        (sin sign baked into the tables)
    # The 1/sqrt(head_dim) scale is already folded into wq (zero kernel cost).
    cosf = cosf_ref[...]
    sinf = sinf_ref[...]
    qr = (q * cosf + pltpu.roll(q, shift=D2, axis=1) * sinf).astype(bf16)
    kr = (k * cosf + pltpu.roll(k, shift=D2, axis=1) * sinf).astype(bf16)
    v_bf = v.astype(bf16)

    # Causal mask generated in-kernel (no (S,S) f32 HBM mask).
    row = jax.lax.broadcasted_iota(jnp.int32, (S, S), 0)
    col = jax.lax.broadcasted_iota(jnp.int32, (S, S), 1)
    mask_bias = jnp.where(col > row, f32(-1e30), f32(0.0))

    # Per-head scores / softmax / p@v with static lane slices; each head's (S,hd)
    # result is stored into its lane slice of the bf16 scratch so the output
    # projection is one full-K matmul after the loop.
    # TODO(synk): for large n_heads / seq_len switch to a fori_loop or a grid axis
    # with flash-style KV tiling instead of this unrolled loop over (S,S) tiles.
    for h in range(n_heads):
        e0 = h * half            # even-feature slice of this head
        o0 = D2 + h * half       # odd-feature slice of this head
        s = jax.lax.dot_general(qr[:, e0:e0 + half], kr[:, e0:e0 + half],
                                (((1,), (1,)), ((), ())),
                                preferred_element_type=f32)
        s += jax.lax.dot_general(qr[:, o0:o0 + half], kr[:, o0:o0 + half],
                                 (((1,), (1,)), ((), ())),
                                 preferred_element_type=f32)
        s += mask_bias
        m = jnp.max(s, axis=-1, keepdims=True)
        p = jnp.exp(s - m)                               # unnormalized probabilities
        l = jnp.sum(p, axis=-1, keepdims=True)
        pv = jnp.dot(p.astype(bf16), v_bf[:, h * head_dim:(h + 1) * head_dim],
                     preferred_element_type=f32)         # (S, hd)
        # deferred softmax normalization: S*hd VALU muls instead of S*S
        out_h = pv * pl.reciprocal(l, approx=True)
        attn_ref[:, h * head_dim:(h + 1) * head_dim] = out_h.astype(bf16)

    # Single full-K output projection ("concat heads" is just the scratch layout).
    attn = jnp.dot(attn_ref[...], wo_ref[...], preferred_element_type=f32)  # (S, D)
    h_res = x + attn

    # ---------------- feed-forward (SwiGLU) ----------------
    # TODO(synk): tile the hidden dimension through a grid axis for real LLaMA sizes.
    hn_bf = _rmsnorm(h_res, fnw_ref[0], eps).astype(bf16)
    g = jnp.dot(hn_bf, w1_ref[...], preferred_element_type=f32)
    u = jnp.dot(hn_bf, w3_ref[...], preferred_element_type=f32)
    act = g * jax.nn.sigmoid(g)      # SiLU kept in f32 (v5e has no bf16 VPU/EUP path)
    ffn = jnp.dot((act * u).astype(bf16), w2_ref[...], preferred_element_type=f32)

    o_ref[0] = h_res + ffn


def prepare_weights(params, *, n_heads):
    """One-time weight prep (permute / fuse / transpose / bf16).  Cache across calls."""
    D = params["wq"].shape[0]
    hd = D // n_heads
    half = hd // 2
    scale = 1.0 / math.sqrt(hd)
    bf16 = jnp.bfloat16

    # Per-head output-feature permutation of wq/wk: all even rotary features of all
    # heads first, then all odd ones -> in-kernel RoPE is one full-width rotate-half.
    # q.k per-head dot products are invariant to this shared permutation.
    perm = ([h * hd + 2 * i for h in range(n_heads) for i in range(half)]
            + [h * hd + 2 * i + 1 for h in range(n_heads) for i in range(half)])
    perm = jnp.asarray(perm, dtype=jnp.int32)

    wq_p = params["wq"][perm, :] * scale        # fold 1/sqrt(head_dim) into q
    wk_p = params["wk"][perm, :]
    wqkv = jnp.concatenate([wq_p.T, wk_p.T, params["wv"].T], axis=1).astype(bf16)

    return dict(
        wqkv=wqkv,                                   # (D, 3D) bf16
        wo_t=params["wo"].T.astype(bf16),            # (D, D)  bf16
        w1_t=params["w1"].T.astype(bf16),            # (D, hidden)
        w3_t=params["w3"].T.astype(bf16),            # (D, hidden)
        w2_t=params["w2"].T.astype(bf16),            # (hidden, D)
        anw=params["attention_norm"].reshape(1, D).astype(jnp.float32),
        fnw=params["ffn_norm"].reshape(1, D).astype(jnp.float32),
        n_heads=n_heads,
        head_dim=hd,
    )


def prepare_rope_tables(cos, sin, *, n_heads):
    """Full-width (S, D) rotary tables matching the permuted q/k feature layout."""
    cosf = jnp.tile(cos, (1, 2 * n_heads)).astype(jnp.float32)
    sinf = jnp.concatenate([-jnp.tile(sin, (1, n_heads)),
                            jnp.tile(sin, (1, n_heads))], axis=1).astype(jnp.float32)
    return cosf, sinf


def transformer_block(x, cos, sin, prep, *, eps):
    B, S, D = x.shape
    n_heads = prep["n_heads"]
    hd = prep["head_dim"]
    hidden = prep["w1_t"].shape[1]
    cosf, sinf = prepare_rope_tables(cos, sin, n_heads=n_heads)

    kernel = functools.partial(transformer_block_kernel,
                               n_heads=n_heads, head_dim=hd, eps=eps)

    def nbytes(shape, dtype):
        return math.prod(shape) * jnp.dtype(dtype).itemsize

    act_bytes = 2 * nbytes((1, S, D), jnp.float32)                    # x + out blocks
    const_bytes = (2 * nbytes((S, D), jnp.float32)                    # rope tables
                   + 2 * nbytes((1, D), jnp.float32)                  # norm weights
                   + nbytes((D, 3 * D), jnp.bfloat16)                 # wqkv
                   + nbytes((D, D), jnp.bfloat16)                     # wo^T
                   + 2 * nbytes((D, hidden), jnp.bfloat16)            # w1^T, w3^T
                   + nbytes((hidden, D), jnp.bfloat16))               # w2^T
    scratch_bytes = nbytes((S, D), jnp.bfloat16)
    # Size the scoped-VMEM request from actual buffers (conservatively assuming
    # double-buffering) + headroom for intermediates; capped below v7x's 64 MiB.
    vmem_limit = int(min(2 * (act_bytes + const_bytes) + scratch_bytes + (16 << 20),
                         48 << 20))

    def make_call(single_buffer_consts):
        def const_spec(shape):
            if single_buffer_consts:
                # grid-invariant block: don't waste VMEM on a second pipeline buffer
                return pl.BlockSpec(shape, lambda b: (0, 0),
                                    pipeline_mode=pl.Buffered(1))
            return pl.BlockSpec(shape, lambda b: (0, 0))

        in_specs = [
            pl.BlockSpec((1, S, D), lambda b: (b, 0, 0)),    # x (per-batch block)
            const_spec((S, D)),                              # cosF
            const_spec((S, D)),                              # sinF
            const_spec((1, D)),                              # attention_norm weight
            const_spec((1, D)),                              # ffn_norm weight
            const_spec((D, 3 * D)),                          # wqkv (fused, bf16)
            const_spec((D, D)),                              # wo^T
            const_spec((D, hidden)),                         # w1^T
            const_spec((D, hidden)),                         # w3^T
            const_spec((hidden, D)),                         # w2^T
        ]
        return pl.pallas_call(
            kernel,
            out_shape=jax.ShapeDtypeStruct((B, S, D), jnp.float32),
            grid_spec=pltpu.PrefetchScalarGridSpec(
                num_scalar_prefetch=0,
                grid=(B,),    # batch axis "parallel": shards across v7x's two TCs
                in_specs=in_specs,
                out_specs=pl.BlockSpec((1, S, D), lambda b: (b, 0, 0)),
                scratch_shapes=[pltpu.VMEM((S, D), jnp.bfloat16)],  # per-head outputs
            ),
            compiler_params=pltpu.CompilerParams(
                dimension_semantics=("parallel",),
                vmem_limit_bytes=vmem_limit,
            ),
        )

    args = (x, cosf, sinf, prep["anw"], prep["fnw"], prep["wqkv"],
            prep["wo_t"], prep["w1_t"], prep["w3_t"], prep["w2_t"])
    try:
        return jax.block_until_ready(make_call(True)(*args))
    except Exception:
        # pipeline_mode=pl.Buffered(1) not supported by this jax/Mosaic build;
        # fall back to default double-buffered specs (same kernel, same results).
        return jax.block_until_ready(make_call(False)(*args))


def reference_block(x, cos, sin, mask, params, *, n_heads, eps):
    """Pure-JAX f32 reference matching the PyTorch module (interleaved rotary)."""
    B, S, D = x.shape
    hd = D // n_heads

    def rms(v, w):
        return v * jax.lax.rsqrt(jnp.mean(v * v, -1, keepdims=True) + eps) * w

    xn = rms(x, params["attention_norm"])
    q = (xn @ params["wq"].T).reshape(B, S, n_heads, hd)
    k = (xn @ params["wk"].T).reshape(B, S, n_heads, hd)
    v = (xn @ params["wv"].T).reshape(B, S, n_heads, hd)

    def rot(a):
        ap = a.reshape(B, S, n_heads, hd // 2, 2)
        ae, ao = ap[..., 0], ap[..., 1]
        c = cos[None, :, None, :]
        s = sin[None, :, None, :]
        return jnp.stack([ae * c - ao * s, ae * s + ao * c], -1).reshape(B, S, n_heads, hd)

    qr, kr = rot(q), rot(k)
    scores = jnp.einsum('bshd,bthd->bhst', qr, kr) / math.sqrt(hd)
    scores = scores + mask[None, None]
    p = jax.nn.softmax(scores, axis=-1)
    o = jnp.einsum('bhst,bthd->bshd', p, v).reshape(B, S, D)
    h = x + o @ params["wo"].T
    hn = rms(h, params["ffn_norm"])
    ffn = (jax.nn.silu(hn @ params["w1"].T) * (hn @ params["w3"].T)) @ params["w2"].T
    return h + ffn


if __name__ == "__main__":
    B, S, D, NH = 2, 16, 128, 4
    HD = D // NH
    eps = 1e-5
    multiple_of = 32
    ffn_dim_multiplier = None  # typical llama setting

    hidden = 4 * D
    hidden = int(2 * hidden / 3)
    if ffn_dim_multiplier is not None:
        hidden = int(ffn_dim_multiplier * hidden)
    hidden = multiple_of * ((hidden + multiple_of - 1) // multiple_of)

    key = jax.random.PRNGKey(0)
    ks = jax.random.split(key, 8)
    init = lambda k, shp: 0.02 * jax.random.normal(k, shp, dtype=jnp.float32)
    params = dict(
        wq=init(ks[0], (D, D)),
        wk=init(ks[1], (D, D)),
        wv=init(ks[2], (D, D)),
        wo=init(ks[3], (D, D)),
        w1=init(ks[4], (hidden, D)),
        w2=init(ks[5], (D, hidden)),
        w3=init(ks[6], (hidden, D)),
        attention_norm=jnp.ones((D,), jnp.float32),
        ffn_norm=jnp.ones((D,), jnp.float32),
    )
    x = jax.random.normal(ks[7], (B, S, D), dtype=jnp.float32)

    # rotary frequencies (precompute_freqs_cis with theta=10000), sliced to seq len
    theta = 10000.0
    freqs = 1.0 / (theta ** (jnp.arange(0, HD, 2, dtype=jnp.float32) / HD))
    t = jnp.arange(S, dtype=jnp.float32)
    angles = jnp.outer(t, freqs)                     # (S, HD//2)
    cos, sin = jnp.cos(angles), jnp.sin(angles)

    prep = prepare_weights(params, n_heads=NH)       # one-time; cached in a real model
    out = transformer_block(x, cos, sin, prep, eps=eps)

    # reference uses the explicit causal mask (same semantics as the in-kernel one)
    row = jnp.arange(S)[:, None]
    col = jnp.arange(S)[None, :]
    mask = jnp.where(col > row, -1e30, 0.0).astype(jnp.float32)
    ref = reference_block(x, cos, sin, mask, params, n_heads=NH, eps=eps)

    assert out.shape == (B, S, D) and out.dtype == jnp.float32
    err = float(jnp.max(jnp.abs(out - ref)))
    assert jnp.allclose(out, ref, rtol=2e-2, atol=2e-2), err  # bf16 MXU tolerance

    print("KERNEL_OK")
</pallas_src>

<mosaic_0001>
module attributes {stable_mosaic.version = 11 : i64} {
  func.func @transformer_block_kernel(%arg0: i32, %arg1: memref<1x16x128xf32, #tpu.memory_space<vmem>>, %arg2: memref<16x128xf32, #tpu.memory_space<vmem>>, %arg3: memref<16x128xf32, #tpu.memory_space<vmem>>, %arg4: memref<1x128xf32, #tpu.memory_space<vmem>>, %arg5: memref<1x128xf32, #tpu.memory_space<vmem>>, %arg6: memref<128x384xbf16, #tpu.memory_space<vmem>>, %arg7: memref<128x128xbf16, #tpu.memory_space<vmem>>, %arg8: memref<128x352xbf16, #tpu.memory_space<vmem>>, %arg9: memref<128x352xbf16, #tpu.memory_space<vmem>>, %arg10: memref<352x128xbf16, #tpu.memory_space<vmem>>, %arg11: memref<1x16x128xf32, #tpu.memory_space<vmem>>, %arg12: memref<16x128xbf16, #tpu.memory_space<vmem>>) attributes {dimension_semantics = [#tpu.dimension_semantics<parallel>], iteration_bounds = array<i64: 2>, scalar_prefetch = 0 : i64, scratch_operands = 1 : i64, tpu.core_type = #tpu.core_type<tc>, window_params = [{transform_indices = @transform_0, window_bounds = array<i64: 1, 16, 128>}, {pipeline_mode = #tpu.pipeline_mode<synchronous>, transform_indices = @transform_1, window_bounds = array<i64: 16, 128>}, {pipeline_mode = #tpu.pipeline_mode<synchronous>, transform_indices = @transform_2, window_bounds = array<i64: 16, 128>}, {pipeline_mode = #tpu.pipeline_mode<synchronous>, transform_indices = @transform_3, window_bounds = array<i64: 1, 128>}, {pipeline_mode = #tpu.pipeline_mode<synchronous>, transform_indices = @transform_4, window_bounds = array<i64: 1, 128>}, {pipeline_mode = #tpu.pipeline_mode<synchronous>, transform_indices = @transform_5, window_bounds = array<i64: 128, 384>}, {pipeline_mode = #tpu.pipeline_mode<synchronous>, transform_indices = @transform_6, window_bounds = array<i64: 128, 128>}, {pipeline_mode = #tpu.pipeline_mode<synchronous>, transform_indices = @transform_7, window_bounds = array<i64: 128, 352>}, {pipeline_mode = #tpu.pipeline_mode<synchronous>, transform_indices = @transform_8, window_bounds = array<i64: 128, 352>}, {pipeline_mode = #tpu.pipeline_mode<synchronous>, transform_indices = @transform_9, window_bounds = array<i64: 352, 128>}, {transform_indices = @transform_10, window_bounds = array<i64: 1, 16, 128>}]} {
    %c0 = arith.constant 0 : index
    %c0_0 = arith.constant 0 : index
    %c0_1 = arith.constant 0 : index
    %0 = vector.load %arg1[%c0, %c0_0, %c0_1] : memref<1x16x128xf32, #tpu.memory_space<vmem>>, vector<1x16x128xf32>
    %1 = vector.shape_cast %0 : vector<1x16x128xf32> to vector<16x128xf32>
    %c0_2 = arith.constant 0 : index
    %c0_3 = arith.constant 0 : index
    %2 = vector.load %arg4[%c0_2, %c0_3] : memref<1x128xf32, #tpu.memory_space<vmem>>, vector<1x128xf32>
    %3 = vector.shape_cast %2 : vector<1x128xf32> to vector<128xf32>
    %4 = arith.mulf %1, %1 : vector<16x128xf32>
    %cst = arith.constant dense<0.000000e+00> : vector<16xf32>
    %5 = vector.multi_reduction <add>, %4, %cst [1] : vector<16x128xf32> to vector<16xf32>
    %6 = vector.shape_cast %5 : vector<16xf32> to vector<16x1xf32>
    %cst_4 = arith.constant 1.280000e+02 : f32
    %7 = vector.broadcast %cst_4 : f32 to vector<16x1xf32>
    %8 = arith.divf %6, %7 : vector<16x1xf32>
    %cst_5 = arith.constant 9.99999974E-6 : f32
    %9 = vector.broadcast %cst_5 : f32 to vector<16x1xf32>
    %10 = arith.addf %8, %9 : vector<16x1xf32>
    %11 = math.rsqrt %10 : vector<16x1xf32>
    %12 = vector.broadcast %11 : vector<16x1xf32> to vector<16x128xf32>
    %13 = arith.mulf %1, %12 : vector<16x128xf32>
    %14 = vector.shape_cast %3 : vector<128xf32> to vector<1x128xf32>
    %15 = vector.broadcast %14 : vector<1x128xf32> to vector<16x128xf32>
    %16 = arith.mulf %13, %15 : vector<16x128xf32>
    %17 = arith.truncf %16 : vector<16x128xf32> to vector<16x128xbf16>
    %c0_6 = arith.constant 0 : index
    %c0_7 = arith.constant 0 : index
    %18 = vector.load %arg6[%c0_6, %c0_7] : memref<128x384xbf16, #tpu.memory_space<vmem>>, vector<128x384xbf16>
    %cst_8 = arith.constant dense<0.000000e+00> : vector<16x384xf32>
    %19 = tpu.matmul %17, %18, %cst_8 {dimension_numbers = #tpu.dot_dimension_numbers<[1], [0], [0], [1], [0, 0, 1, 1], [], []>} : vector<16x128xbf16>, vector<128x384xbf16>, vector<16x384xf32> -> vector<16x384xf32>
    %20 = vector.extract_strided_slice %19 {offsets = [0, 0], sizes = [16, 128], strides = [1, 1]} : vector<16x384xf32> to vector<16x128xf32>
    %21 = vector.extract_strided_slice %19 {offsets = [0, 128], sizes = [16, 128], strides = [1, 1]} : vector<16x384xf32> to vector<16x128xf32>
    %22 = vector.extract_strided_slice %19 {offsets = [0, 256], sizes = [16, 128], strides = [1, 1]} : vector<16x384xf32> to vector<16x128xf32>
    %c0_9 = arith.constant 0 : index
    %c0_10 = arith.constant 0 : index
    %23 = vector.load %arg2[%c0_9, %c0_10] : memref<16x128xf32, #tpu.memory_space<vmem>>, vector<16x128xf32>
    %c0_11 = arith.constant 0 : index
    %c0_12 = arith.constant 0 : index
    %24 = vector.load %arg3[%c0_11, %c0_12] : memref<16x128xf32, #tpu.memory_space<vmem>>, vector<16x128xf32>
    %25 = arith.mulf %20, %23 : vector<16x128xf32>
    %c64_i32 = arith.constant 64 : i32
    %26 = tpu.dynamic_rotate %20 by %c64_i32 dim 1 : vector<16x128xf32>, i32 -> vector<16x128xf32>
    %27 = arith.mulf %26, %24 : vector<16x128xf32>
    %28 = arith.addf %25, %27 : vector<16x128xf32>
    %29 = arith.truncf %28 : vector<16x128xf32> to vector<16x128xbf16>
    %30 = arith.mulf %21, %23 : vector<16x128xf32>
    %c64_i32_13 = arith.constant 64 : i32
    %31 = tpu.dynamic_rotate %21 by %c64_i32_13 dim 1 : vector<16x128xf32>, i32 -> vector<16x128xf32>
    %32 = arith.mulf %31, %24 : vector<16x128xf32>
    %33 = arith.addf %30, %32 : vector<16x128xf32>
    %34 = arith.truncf %33 : vector<16x128xf32> to vector<16x128xbf16>
    %35 = arith.truncf %22 : vector<16x128xf32> to vector<16x128xbf16>
    %36 = tpu.iota {dimensions = array<i32: 0>} : vector<16x16xi32>
    %37 = tpu.iota {dimensions = array<i32: 1>} : vector<16x16xi32>
    %38 = arith.cmpi sgt, %37, %36 : vector<16x16xi32>
    %cst_14 = arith.constant -1.000000e+30 : f32
    %cst_15 = arith.constant 0.000000e+00 : f32
    %39 = vector.broadcast %cst_14 : f32 to vector<16x16xf32>
    %40 = vector.broadcast %cst_15 : f32 to vector<16x16xf32>
    %41 = arith.select %38, %39, %40 : vector<16x16xi1>, vector<16x16xf32>
    %42 = vector.extract_strided_slice %29 {offsets = [0, 0], sizes = [16, 16], strides = [1, 1]} : vector<16x128xbf16> to vector<16x16xbf16>
    %43 = vector.extract_strided_slice %34 {offsets = [0, 0], sizes = [16, 16], strides = [1, 1]} : vector<16x128xbf16> to vector<16x16xbf16>
    %cst_16 = arith.constant dense<0.000000e+00> : vector<16x16xf32>
    %44 = tpu.matmul %42, %43, %cst_16 {dimension_numbers = #tpu.dot_dimension_numbers<[1], [1], [0], [0], [0, 0, 1, 0], [], []>} : vector<16x16xbf16>, vector<16x16xbf16>, vector<16x16xf32> -> vector<16x16xf32>
    %45 = vector.extract_strided_slice %29 {offsets = [0, 64], sizes = [16, 16], strides = [1, 1]} : vector<16x128xbf16> to vector<16x16xbf16>
    %46 = vector.extract_strided_slice %34 {offsets = [0, 64], sizes = [16, 16], strides = [1, 1]} : vector<16x128xbf16> to vector<16x16xbf16>
    %cst_17 = arith.constant dense<0.000000e+00> : vector<16x16xf32>
    %47 = tpu.matmul %45, %46, %cst_17 {dimension_numbers = #tpu.dot_dimension_numbers<[1], [1], [0], [0], [0, 0, 1, 0], [], []>} : vector<16x16xbf16>, vector<16x16xbf16>, vector<16x16xf32> -> vector<16x16xf32>
    %48 = arith.addf %44, %47 : vector<16x16xf32>
    %49 = arith.addf %48, %41 : vector<16x16xf32>
    %cst_18 = arith.constant dense<0xFF800000> : vector<16xf32>
    %50 = vector.multi_reduction <maximumf>, %49, %cst_18 [1] : vector<16x16xf32> to vector<16xf32>
    %51 = vector.shape_cast %50 : vector<16xf32> to vector<16x1xf32>
    %52 = vector.broadcast %51 : vector<16x1xf32> to vector<16x16xf32>
    %53 = arith.subf %49, %52 : vector<16x16xf32>
    %54 = math.exp %53 : vector<16x16xf32>
    %cst_19 = arith.constant dense<0.000000e+00> : vector<16xf32>
    %55 = vector.multi_reduction <add>, %54, %cst_19 [1] : vector<16x16xf32> to vector<16xf32>
    %56 = vector.shape_cast %55 : vector<16xf32> to vector<16x1xf32>
    %57 = arith.truncf %54 : vector<16x16xf32> to vector<16x16xbf16>
    %58 = vector.extract_strided_slice %35 {offsets = [0, 0], sizes = [16, 32], strides = [1, 1]} : vector<16x128xbf16> to vector<16x32xbf16>
    %cst_20 = arith.constant dense<0.000000e+00> : vector<16x32xf32>
    %59 = tpu.matmul %57, %58, %cst_20 {dimension_numbers = #tpu.dot_dimension_numbers<[1], [0], [0], [1], [0, 0, 1, 1], [], []>} : vector<16x16xbf16>, vector<16x32xbf16>, vector<16x32xf32> -> vector<16x32xf32>
    %60 = tpu.reciprocal %56 {approx = true} : vector<16x1xf32> -> vector<16x1xf32>
    %61 = vector.broadcast %60 : vector<16x1xf32> to vector<16x32xf32>
    %62 = arith.mulf %59, %61 : vector<16x32xf32>
    %63 = arith.truncf %62 : vector<16x32xf32> to vector<16x32xbf16>
    %c0_21 = arith.constant 0 : index
    %c0_22 = arith.constant 0 : index
    %64 = vector.load %arg12[%c0_21, %c0_22] : memref<16x128xbf16, #tpu.memory_space<vmem>>, vector<16x32xbf16>
    tpu.vector_store %arg12[%c0_21, %c0_22], %63 {strides = array<i32>} : memref<16x128xbf16, #tpu.memory_space<vmem>>, vector<16x32xbf16>,
    %65 = vector.extract_strided_slice %29 {offsets = [0, 16], sizes = [16, 16], strides = [1, 1]} : vector<16x128xbf16> to vector<16x16xbf16>
    %66 = vector.extract_strided_slice %34 {offsets = [0, 16], sizes = [16, 16], strides = [1, 1]} : vector<16x128xbf16> to vector<16x16xbf16>
    %cst_23 = arith.constant dense<0.000000e+00> : vector<16x16xf32>
    %67 = tpu.matmul %65, %66, %cst_23 {dimension_numbers = #tpu.dot_dimension_numbers<[1], [1], [0], [0], [0, 0, 1, 0], [], []>} : vector<16x16xbf16>, vector<16x16xbf16>, vector<16x16xf32> -> vector<16x16xf32>
    %68 = vector.extract_strided_slice %29 {offsets = [0, 80], sizes = [16, 16], strides = [1, 1]} : vector<16x128xbf16> to vector<16x16xbf16>
    %69 = vector.extract_strided_slice %34 {offsets = [0, 80], sizes = [16, 16], strides = [1, 1]} : vector<16x128xbf16> to vector<16x16xbf16>
    %cst_24 = arith.constant dense<0.000000e+00> : vector<16x16xf32>
    %70 = tpu.matmul %68, %69, %cst_24 {dimension_numbers = #tpu.dot_dimension_numbers<[1], [1], [0], [0], [0, 0, 1, 0], [], []>} : vector<16x16xbf16>, vector<16x16xbf16>, vector<16x16xf32> -> vector<16x16xf32>
    %71 = arith.addf %67, %70 : vector<16x16xf32>
    %72 = arith.addf %71, %41 : vector<16x16xf32>
    %cst_25 = arith.constant dense<0xFF800000> : vector<16xf32>
    %73 = vector.multi_reduction <maximumf>, %72, %cst_25 [1] : vector<16x16xf32> to vector<16xf32>
    %74 = vector.shape_cast %73 : vector<16xf32> to vector<16x1xf32>
    %75 = vector.broadcast %74 : vector<16x1xf32> to vector<16x16xf32>
    %76 = arith.subf %72, %75 : vector<16x16xf32>
    %77 = math.exp %76 : vector<16x16xf32>
    %cst_26 = arith.constant dense<0.000000e+00> : vector<16xf32>
    %78 = vector.multi_reduction <add>, %77, %cst_26 [1] : vector<16x16xf32> to vector<16xf32>
    %79 = vector.shape_cast %78 : vector<16xf32> to vector<16x1xf32>
    %80 = arith.truncf %77 : vector<16x16xf32> to vector<16x16xbf16>
    %81 = vector.extract_strided_slice %35 {offsets = [0, 32], sizes = [16, 32], strides = [1, 1]} : vector<16x128xbf16> to vector<16x32xbf16>
    %cst_27 = arith.constant dense<0.000000e+00> : vector<16x32xf32>
    %82 = tpu.matmul %80, %81, %cst_27 {dimension_numbers = #tpu.dot_dimension_numbers<[1], [0], [0], [1], [0, 0, 1, 1], [], []>} : vector<16x16xbf16>, vector<16x32xbf16>, vector<16x32xf32> -> vector<16x32xf32>
    %83 = tpu.reciprocal %79 {approx = true} : vector<16x1xf32> -> vector<16x1xf32>
    %84 = vector.broadcast %83 : vector<16x1xf32> to vector<16x32xf32>
    %85 = arith.mulf %82, %84 : vector<16x32xf32>
    %86 = arith.truncf %85 : vector<16x32xf32> to vector<16x32xbf16>
    %c0_28 = arith.constant 0 : index
    %c32 = arith.constant 32 : index
    %87 = vector.load %arg12[%c0_28, %c32] : memref<16x128xbf16, #tpu.memory_space<vmem>>, vector<16x32xbf16>
    tpu.vector_store %arg12[%c0_28, %c32], %86 {strides = array<i32>} : memref<16x128xbf16, #tpu.memory_space<vmem>>, vector<16x32xbf16>,
    %88 = vector.extract_strided_slice %29 {offsets = [0, 32], sizes = [16, 16], strides = [1, 1]} : vector<16x128xbf16> to vector<16x16xbf16>
    %89 = vector.extract_strided_slice %34 {offsets = [0, 32], sizes = [16, 16], strides = [1, 1]} : vector<16x128xbf16> to vector<16x16xbf16>
    %cst_29 = arith.constant dense<0.000000e+00> : vector<16x16xf32>
    %90 = tpu.matmul %88, %89, %cst_29 {dimension_numbers = #tpu.dot_dimension_numbers<[1], [1], [0], [0], [0, 0, 1, 0], [], []>} : vector<16x16xbf16>, vector<16x16xbf16>, vector<16x16xf32> -> vector<16x16xf32>
    %91 = vector.extract_strided_slice %29 {offsets = [0, 96], sizes = [16, 16], strides = [1, 1]} : vector<16x128xbf16> to vector<16x16xbf16>
    %92 = vector.extract_strided_slice %34 {offsets = [0, 96], sizes = [16, 16], strides = [1, 1]} : vector<16x128xbf16> to vector<16x16xbf16>
    %cst_30 = arith.constant dense<0.000000e+00> : vector<16x16xf32>
    %93 = tpu.matmul %91, %92, %cst_30 {dimension_numbers = #tpu.dot_dimension_numbers<[1], [1], [0], [0], [0, 0, 1, 0], [], []>} : vector<16x16xbf16>, vector<16x16xbf16>, vector<16x16xf32> -> vector<16x16xf32>
    %94 = arith.addf %90, %93 : vector<16x16xf32>
    %95 = arith.addf %94, %41 : vector<16x16xf32>
    %cst_31 = arith.constant dense<0xFF800000> : vector<16xf32>
    %96 = vector.multi_reduction <maximumf>, %95, %cst_31 [1] : vector<16x16xf32> to vector<16xf32>
    %97 = vector.shape_cast %96 : vector<16xf32> to vector<16x1xf32>
    %98 = vector.broadcast %97 : vector<16x1xf32> to vector<16x16xf32>
    %99 = arith.subf %95, %98 : vector<16x16xf32>
    %100 = math.exp %99 : vector<16x16xf32>
    %cst_32 = arith.constant dense<0.000000e+00> : vector<16xf32>
    %101 = vector.multi_reduction <add>, %100, %cst_32 [1] : vector<16x16xf32> to vector<16xf32>
    %102 = vector.shape_cast %101 : vector<16xf32> to vector<16x1xf32>
    %103 = arith.truncf %100 : vector<16x16xf32> to vector<16x16xbf16>
    %104 = vector.extract_strided_slice %35 {offsets = [0, 64], sizes = [16, 32], strides = [1, 1]} : vector<16x128xbf16> to vector<16x32xbf16>
    %cst_33 = arith.constant dense<0.000000e+00> : vector<16x32xf32>
    %105 = tpu.matmul %103, %104, %cst_33 {dimension_numbers = #tpu.dot_dimension_numbers<[1], [0], [0], [1], [0, 0, 1, 1], [], []>} : vector<16x16xbf16>, vector<16x32xbf16>, vector<16x32xf32> -> vector<16x32xf32>
    %106 = tpu.reciprocal %102 {approx = true} : vector<16x1xf32> -> vector<16x1xf32>
    %107 = vector.broadcast %106 : vector<16x1xf32> to vector<16x32xf32>
    %108 = arith.mulf %105, %107 : vector<16x32xf32>
    %109 = arith.truncf %108 : vector<16x32xf32> to vector<16x32xbf16>
    %c0_34 = arith.constant 0 : index
    %c64 = arith.constant 64 : index
    %110 = vector.load %arg12[%c0_34, %c64] : memref<16x128xbf16, #tpu.memory_space<vmem>>, vector<16x32xbf16>
    tpu.vector_store %arg12[%c0_34, %c64], %109 {strides = array<i32>} : memref<16x128xbf16, #tpu.memory_space<vmem>>, vector<16x32xbf16>,
    %111 = vector.extract_strided_slice %29 {offsets = [0, 48], sizes = [16, 16], strides = [1, 1]} : vector<16x128xbf16> to vector<16x16xbf16>
    %112 = vector.extract_strided_slice %34 {offsets = [0, 48], sizes = [16, 16], strides = [1, 1]} : vector<16x128xbf16> to vector<16x16xbf16>
    %cst_35 = arith.constant dense<0.000000e+00> : vector<16x16xf32>
    %113 = tpu.matmul %111, %112, %cst_35 {dimension_numbers = #tpu.dot_dimension_numbers<[1], [1], [0], [0], [0, 0, 1, 0], [], []>} : vector<16x16xbf16>, vector<16x16xbf16>, vector<16x16xf32> -> vector<16x16xf32>
    %114 = vector.extract_strided_slice %29 {offsets = [0, 112], sizes = [16, 16], strides = [1, 1]} : vector<16x128xbf16> to vector<16x16xbf16>
    %115 = vector.extract_strided_slice %34 {offsets = [0, 112], sizes = [16, 16], strides = [1, 1]} : vector<16x128xbf16> to vector<16x16xbf16>
    %cst_36 = arith.constant dense<0.000000e+00> : vector<16x16xf32>
    %116 = tpu.matmul %114, %115, %cst_36 {dimension_numbers = #tpu.dot_dimension_numbers<[1], [1], [0], [0], [0, 0, 1, 0], [], []>} : vector<16x16xbf16>, vector<16x16xbf16>, vector<16x16xf32> -> vector<16x16xf32>
    %117 = arith.addf %113, %116 : vector<16x16xf32>
    %118 = arith.addf %117, %41 : vector<16x16xf32>
    %cst_37 = arith.constant dense<0xFF800000> : vector<16xf32>
    %119 = vector.multi_reduction <maximumf>, %118, %cst_37 [1] : vector<16x16xf32> to vector<16xf32>
    %120 = vector.shape_cast %119 : vector<16xf32> to vector<16x1xf32>
    %121 = vector.broadcast %120 : vector<16x1xf32> to vector<16x16xf32>
    %122 = arith.subf %118, %121 : vector<16x16xf32>
    %123 = math.exp %122 : vector<16x16xf32>
    %cst_38 = arith.constant dense<0.000000e+00> : vector<16xf32>
    %124 = vector.multi_reduction <add>, %123, %cst_38 [1] : vector<16x16xf32> to vector<16xf32>
    %125 = vector.shape_cast %124 : vector<16xf32> to vector<16x1xf32>
    %126 = arith.truncf %123 : vector<16x16xf32> to vector<16x16xbf16>
    %127 = vector.extract_strided_slice %35 {offsets = [0, 96], sizes = [16, 32], strides = [1, 1]} : vector<16x128xbf16> to vector<16x32xbf16>
    %cst_39 = arith.constant dense<0.000000e+00> : vector<16x32xf32>
    %128 = tpu.matmul %126, %127, %cst_39 {dimension_numbers = #tpu.dot_dimension_numbers<[1], [0], [0], [1], [0, 0, 1, 1], [], []>} : vector<16x16xbf16>, vector<16x32xbf16>, vector<16x32xf32> -> vector<16x32xf32>
    %129 = tpu.reciprocal %125 {approx = true} : vector<16x1xf32> -> vector<16x1xf32>
    %130 = vector.broadcast %129 : vector<16x1xf32> to vector<16x32xf32>
    %131 = arith.mulf %128, %130 : vector<16x32xf32>
    %132 = arith.truncf %131 : vector<16x32xf32> to vector<16x32xbf16>
    %c0_40 = arith.constant 0 : index
    %c96 = arith.constant 96 : index
    %133 = vector.load %arg12[%c0_40, %c96] : memref<16x128xbf16, #tpu.memory_space<vmem>>, vector<16x32xbf16>
    tpu.vector_store %arg12[%c0_40, %c96], %132 {strides = array<i32>} : memref<16x128xbf16, #tpu.memory_space<vmem>>, vector<16x32xbf16>,
    %c0_41 = arith.constant 0 : index
    %c0_42 = arith.constant 0 : index
    %134 = vector.load %arg12[%c0_41, %c0_42] : memref<16x128xbf16, #tpu.memory_space<vmem>>, vector<16x128xbf16>
    %c0_43 = arith.constant 0 : index
    %c0_44 = arith.constant 0 : index
    %135 = vector.load %arg7[%c0_43, %c0_44] : memref<128x128xbf16, #tpu.memory_space<vmem>>, vector<128x128xbf16>
    %cst_45 = arith.constant dense<0.000000e+00> : vector<16x128xf32>
    %136 = tpu.matmul %134, %135, %cst_45 {dimension_numbers = #tpu.dot_dimension_numbers<[1], [0], [0], [1], [0, 0, 1, 1], [], []>} : vector<16x128xbf16>, vector<128x128xbf16>, vector<16x128xf32> -> vector<16x128xf32>
    %137 = arith.addf %1, %136 : vector<16x128xf32>
    %c0_46 = arith.constant 0 : index
    %c0_47 = arith.constant 0 : index
    %138 = vector.load %arg5[%c0_46, %c0_47] : memref<1x128xf32, #tpu.memory_space<vmem>>, vector<1x128xf32>
    %139 = vector.shape_cast %138 : vector<1x128xf32> to vector<128xf32>
    %140 = arith.mulf %137, %137 : vector<16x128xf32>
    %cst_48 = arith.constant dense<0.000000e+00> : vector<16xf32>
    %141 = vector.multi_reduction <add>, %140, %cst_48 [1] : vector<16x128xf32> to vector<16xf32>
    %142 = vector.shape_cast %141 : vector<16xf32> to vector<16x1xf32>
    %cst_49 = arith.constant 1.280000e+02 : f32
    %143 = vector.broadcast %cst_49 : f32 to vector<16x1xf32>
    %144 = arith.divf %142, %143 : vector<16x1xf32>
    %cst_50 = arith.constant 9.99999974E-6 : f32
    %145 = vector.broadcast %cst_50 : f32 to vector<16x1xf32>
    %146 = arith.addf %144, %145 : vector<16x1xf32>
    %147 = math.rsqrt %146 : vector<16x1xf32>
    %148 = vector.broadcast %147 : vector<16x1xf32> to vector<16x128xf32>
    %149 = arith.mulf %137, %148 : vector<16x128xf32>
    %150 = vector.shape_cast %139 : vector<128xf32> to vector<1x128xf32>
    %151 = vector.broadcast %150 : vector<1x128xf32> to vector<16x128xf32>
    %152 = arith.mulf %149, %151 : vector<16x128xf32>
    %153 = arith.truncf %152 : vector<16x128xf32> to vector<16x128xbf16>
    %c0_51 = arith.constant 0 : index
    %c0_52 = arith.constant 0 : index
    %154 = vector.load %arg8[%c0_51, %c0_52] : memref<128x352xbf16, #tpu.memory_space<vmem>>, vector<128x352xbf16>
    %cst_53 = arith.constant dense<0.000000e+00> : vector<16x352xf32>
    %155 = tpu.matmul %153, %154, %cst_53 {dimension_numbers = #tpu.dot_dimension_numbers<[1], [0], [0], [1], [0, 0, 1, 1], [], []>} : vector<16x128xbf16>, vector<128x352xbf16>, vector<16x352xf32> -> vector<16x352xf32>
    %c0_54 = arith.constant 0 : index
    %c0_55 = arith.constant 0 : index
    %156 = vector.load %arg9[%c0_54, %c0_55] : memref<128x352xbf16, #tpu.memory_space<vmem>>, vector<128x352xbf16>
    %cst_56 = arith.constant dense<0.000000e+00> : vector<16x352xf32>
    %157 = tpu.matmul %153, %156, %cst_56 {dimension_numbers = #tpu.dot_dimension_numbers<[1], [0], [0], [1], [0, 0, 1, 1], [], []>} : vector<16x128xbf16>, vector<128x352xbf16>, vector<16x352xf32> -> vector<16x352xf32>
    %158 = arith.negf %155 : vector<16x352xf32>
    %159 = math.exp %158 : vector<16x352xf32>
    %cst_57 = arith.constant 1.000000e+00 : f32
    %160 = vector.broadcast %cst_57 : f32 to vector<16x352xf32>
    %161 = arith.addf %160, %159 : vector<16x352xf32>
    %162 = arith.divf %160, %161 : vector<16x352xf32>
    %163 = arith.mulf %155, %162 : vector<16x352xf32>
    %164 = arith.mulf %163, %157 : vector<16x352xf32>
    %165 = arith.truncf %164 : vector<16x352xf32> to vector<16x352xbf16>
    %c0_58 = arith.constant 0 : index
    %c0_59 = arith.constant 0 : index
    %166 = vector.load %arg10[%c0_58, %c0_59] : memref<352x128xbf16, #tpu.memory_space<vmem>>, vector<352x128xbf16>
    %cst_60 = arith.constant dense<0.000000e+00> : vector<16x128xf32>
    %167 = tpu.matmul %165, %166, %cst_60 {dimension_numbers = #tpu.dot_dimension_numbers<[1], [0], [0], [1], [0, 0, 1, 1], [], []>} : vector<16x352xbf16>, vector<352x128xbf16>, vector<16x128xf32> -> vector<16x128xf32>
    %168 = arith.addf %137, %167 : vector<16x128xf32>
    %c0_61 = arith.constant 0 : index
    %c0_62 = arith.constant 0 : index
    %c0_63 = arith.constant 0 : index
    %169 = vector.load %arg11[%c0_61, %c0_62, %c0_63] : memref<1x16x128xf32, #tpu.memory_space<vmem>>, vector<1x16x128xf32>
    %170 = vector.shape_cast %169 : vector<1x16x128xf32> to vector<16x128xf32>
    %171 = vector.shape_cast %168 : vector<16x128xf32> to vector<1x16x128xf32>
    tpu.vector_store %arg11[%c0_61, %c0_62, %c0_63], %171 {strides = array<i32>} : memref<1x16x128xf32, #tpu.memory_space<vmem>>, vector<1x16x128xf32>,
    return
  }
  func.func @transform_0(%arg0: i32) -> (i32, i32, i32) {
    %c0_i32 = arith.constant 0 : i32
    %c0_i32_0 = arith.constant 0 : i32
    %c0_i32_1 = arith.constant 0 : i32
    return %arg0, %c0_i32, %c0_i32_0 : i32, i32, i32
  }
  func.func @transform_1(%arg0: i32) -> (i32, i32) {
    %c0_i32 = arith.constant 0 : i32
    %c0_i32_0 = arith.constant 0 : i32
    %c0_i32_1 = arith.constant 0 : i32
    return %c0_i32, %c0_i32_0 : i32, i32
  }
  func.func @transform_2(%arg0: i32) -> (i32, i32) {
    %c0_i32 = arith.constant 0 : i32
    %c0_i32_0 = arith.constant 0 : i32
    %c0_i32_1 = arith.constant 0 : i32
    return %c0_i32, %c0_i32_0 : i32, i32
  }
  func.func @transform_3(%arg0: i32) -> (i32, i32) {
    %c0_i32 = arith.constant 0 : i32
    %c0_i32_0 = arith.constant 0 : i32
    %c0_i32_1 = arith.constant 0 : i32
    return %c0_i32, %c0_i32_0 : i32, i32
  }
  func.func @transform_4(%arg0: i32) -> (i32, i32) {
    %c0_i32 = arith.constant 0 : i32
    %c0_i32_0 = arith.constant 0 : i32
    %c0_i32_1 = arith.constant 0 : i32
    return %c0_i32, %c0_i32_0 : i32, i32
  }
  func.func @transform_5(%arg0: i32) -> (i32, i32) {
    %c0_i32 = arith.constant 0 : i32
    %c0_i32_0 = arith.constant 0 : i32
    %c0_i32_1 = arith.constant 0 : i32
    return %c0_i32, %c0_i32_0 : i32, i32
  }
  func.func @transform_6(%arg0: i32) -> (i32, i32) {
    %c0_i32 = arith.constant 0 : i32
    %c0_i32_0 = arith.constant 0 : i32
    %c0_i32_1 = arith.constant 0 : i32
    return %c0_i32, %c0_i32_0 : i32, i32
  }
  func.func @transform_7(%arg0: i32) -> (i32, i32) {
    %c0_i32 = arith.constant 0 : i32
    %c0_i32_0 = arith.constant 0 : i32
    %c0_i32_1 = arith.constant 0 : i32
    return %c0_i32, %c0_i32_0 : i32, i32
  }
  func.func @transform_8(%arg0: i32) -> (i32, i32) {
    %c0_i32 = arith.constant 0 : i32
    %c0_i32_0 = arith.constant 0 : i32
    %c0_i32_1 = arith.constant 0 : i32
    return %c0_i32, %c0_i32_0 : i32, i32
  }
  func.func @transform_9(%arg0: i32) -> (i32, i32) {
    %c0_i32 = arith.constant 0 : i32
    %c0_i32_0 = arith.constant 0 : i32
    %c0_i32_1 = arith.constant 0 : i32
    return %c0_i32, %c0_i32_0 : i32, i32
  }
  func.func @transform_10(%arg0: i32) -> (i32, i32, i32) {
    %c0_i32 = arith.constant 0 : i32
    %c0_i32_0 = arith.constant 0 : i32
    %c0_i32_1 = arith.constant 0 : i32
    return %arg0, %c0_i32, %c0_i32_0 : i32, i32, i32
  }
}

module attributes {stable_mosaic.version = 11 : i64} {
  func.func @transformer_block_kernel(%arg0: i32, %arg1: memref<1x16x128xf32, #tpu.memory_space<vmem>>, %arg2: memref<16x128xf32, #tpu.memory_space<vmem>>, %arg3: memref<16x128xf32, #tpu.memory_space<vmem>>, %arg4: memref<1x128xf32, #tpu.memory_space<vmem>>, %arg5: memref<1x128xf32, #tpu.memory_space<vmem>>, %arg6: memref<128x384xbf16, #tpu.memory_space<vmem>>, %arg7: memref<128x128xbf16, #tpu.memory_space<vmem>>, %arg8: memref<128x352xbf16, #tpu.memory_space<vmem>>, %arg9: memref<128x352xbf16, #tpu.memory_space<vmem>>, %arg10: memref<352x128xbf16, #tpu.memory_space<vmem>>, %arg11: memref<1x16x128xf32, #tpu.memory_space<vmem>>, %arg12: memref<16x128xbf16, #tpu.memory_space<vmem>>) attributes {dimension_semantics = [#tpu.dimension_semantics<parallel>], iteration_bounds = array<i64: 2>, scalar_prefetch = 0 : i64, scratch_operands = 1 : i64, tpu.core_type = #tpu.core_type<tc>, window_params = [{transform_indices = @transform_0, window_bounds = array<i64: 1, 16, 128>}, {pipeline_mode = #tpu.pipeline_mode<synchronous>, transform_indices = @transform_1, window_bounds = array<i64: 16, 128>}, {pipeline_mode = #tpu.pipeline_mode<synchronous>, transform_indices = @transform_2, window_bounds = array<i64: 16, 128>}, {pipeline_mode = #tpu.pipeline_mode<synchronous>, transform_indices = @transform_3, window_bounds = array<i64: 1, 128>}, {pipeline_mode = #tpu.pipeline_mode<synchronous>, transform_indices = @transform_4, window_bounds = array<i64: 1, 128>}, {pipeline_mode = #tpu.pipeline_mode<synchronous>, transform_indices = @transform_5, window_bounds = array<i64: 128, 384>}, {pipeline_mode = #tpu.pipeline_mode<synchronous>, transform_indices = @transform_6, window_bounds = array<i64: 128, 128>}, {pipeline_mode = #tpu.pipeline_mode<synchronous>, transform_indices = @transform_7, window_bounds = array<i64: 128, 352>}, {pipeline_mode = #tpu.pipeline_mode<synchronous>, transform_indices = @transform_8, window_bounds = array<i64: 128, 352>}, {pipeline_mode = #tpu.pipeline_mode<synchronous>, transform_indices = @transform_9, window_bounds = array<i64: 352, 128>}, {transform_indices = @transform_10, window_bounds = array<i64: 1, 16, 128>}]} {
    %c0 = arith.constant 0 : index
    %c0_0 = arith.constant 0 : index
    %c0_1 = arith.constant 0 : index
    %0 = vector.load %arg1[%c0, %c0_0, %c0_1] : memref<1x16x128xf32, #tpu.memory_space<vmem>>, vector<1x16x128xf32>
    %1 = vector.shape_cast %0 : vector<1x16x128xf32> to vector<16x128xf32>
    %c0_2 = arith.constant 0 : index
    %c0_3 = arith.constant 0 : index
    %2 = vector.load %arg4[%c0_2, %c0_3] : memref<1x128xf32, #tpu.memory_space<vmem>>, vector<1x128xf32>
    %3 = vector.shape_cast %2 : vector<1x128xf32> to vector<128xf32>
    %4 = arith.mulf %1, %1 : vector<16x128xf32>
    %cst = arith.constant dense<0.000000e+00> : vector<16xf32>
    %5 = vector.multi_reduction <add>, %4, %cst [1] : vector<16x128xf32> to vector<16xf32>
    %6 = vector.shape_cast %5 : vector<16xf32> to vector<16x1xf32>
    %cst_4 = arith.constant 1.280000e+02 : f32
    %7 = vector.broadcast %cst_4 : f32 to vector<16x1xf32>
    %8 = arith.divf %6, %7 : vector<16x1xf32>
    %cst_5 = arith.constant 9.99999974E-6 : f32
    %9 = vector.broadcast %cst_5 : f32 to vector<16x1xf32>
    %10 = arith.addf %8, %9 : vector<16x1xf32>
    %11 = math.rsqrt %10 : vector<16x1xf32>
    %12 = vector.broadcast %11 : vector<16x1xf32> to vector<16x128xf32>
    %13 = arith.mulf %1, %12 : vector<16x128xf32>
    %14 = vector.shape_cast %3 : vector<128xf32> to vector<1x128xf32>
    %15 = vector.broadcast %14 : vector<1x128xf32> to vector<16x128xf32>
    %16 = arith.mulf %13, %15 : vector<16x128xf32>
    %17 = arith.truncf %16 : vector<16x128xf32> to vector<16x128xbf16>
    %c0_6 = arith.constant 0 : index
    %c0_7 = arith.constant 0 : index
    %18 = vector.load %arg6[%c0_6, %c0_7] : memref<128x384xbf16, #tpu.memory_space<vmem>>, vector<128x384xbf16>
    %cst_8 = arith.constant dense<0.000000e+00> : vector<16x384xf32>
    %19 = tpu.matmul %17, %18, %cst_8 {dimension_numbers = #tpu.dot_dimension_numbers<[1], [0], [0], [1], [0, 0, 1, 1], [], []>} : vector<16x128xbf16>, vector<128x384xbf16>, vector<16x384xf32> -> vector<16x384xf32>
    %20 = vector.extract_strided_slice %19 {offsets = [0, 0], sizes = [16, 128], strides = [1, 1]} : vector<16x384xf32> to vector<16x128xf32>
    %21 = vector.extract_strided_slice %19 {offsets = [0, 128], sizes = [16, 128], strides = [1, 1]} : vector<16x384xf32> to vector<16x128xf32>
    %22 = vector.extract_strided_slice %19 {offsets = [0, 256], sizes = [16, 128], strides = [1, 1]} : vector<16x384xf32> to vector<16x128xf32>
    %c0_9 = arith.constant 0 : index
    %c0_10 = arith.constant 0 : index
    %23 = vector.load %arg2[%c0_9, %c0_10] : memref<16x128xf32, #tpu.memory_space<vmem>>, vector<16x128xf32>
    %c0_11 = arith.constant 0 : index
    %c0_12 = arith.constant 0 : index
    %24 = vector.load %arg3[%c0_11, %c0_12] : memref<16x128xf32, #tpu.memory_space<vmem>>, vector<16x128xf32>
    %25 = arith.mulf %20, %23 : vector<16x128xf32>
    %c64_i32 = arith.constant 64 : i32
    %26 = tpu.dynamic_rotate %20 by %c64_i32 dim 1 : vector<16x128xf32>, i32 -> vector<16x128xf32>
    %27 = arith.mulf %26, %24 : vector<16x128xf32>
    %28 = arith.addf %25, %27 : vector<16x128xf32>
    %29 = arith.truncf %28 : vector<16x128xf32> to vector<16x128xbf16>
    %30 = arith.mulf %21, %23 : vector<16x128xf32>
    %c64_i32_13 = arith.constant 64 : i32
    %31 = tpu.dynamic_rotate %21 by %c64_i32_13 dim 1 : vector<16x128xf32>, i32 -> vector<16x128xf32>
    %32 = arith.mulf %31, %24 : vector<16x128xf32>
    %33 = arith.addf %30, %32 : vector<16x128xf32>
    %34 = arith.truncf %33 : vector<16x128xf32> to vector<16x128xbf16>
    %35 = arith.truncf %22 : vector<16x128xf32> to vector<16x128xbf16>
    %36 = tpu.iota {dimensions = array<i32: 0>} : vector<16x16xi32>
    %37 = tpu.iota {dimensions = array<i32: 1>} : vector<16x16xi32>
    %38 = arith.cmpi sgt, %37, %36 : vector<16x16xi32>
    %cst_14 = arith.constant -1.000000e+30 : f32
    %cst_15 = arith.constant 0.000000e+00 : f32
    %39 = vector.broadcast %cst_14 : f32 to vector<16x16xf32>
    %40 = vector.broadcast %cst_15 : f32 to vector<16x16xf32>
    %41 = arith.select %38, %39, %40 : vector<16x16xi1>, vector<16x16xf32>
    %42 = vector.extract_strided_slice %29 {offsets = [0, 0], sizes = [16, 16], strides = [1, 1]} : vector<16x128xbf16> to vector<16x16xbf16>
    %43 = vector.extract_strided_slice %34 {offsets = [0, 0], sizes = [16, 16], strides = [1, 1]} : vector<16x128xbf16> to vector<16x16xbf16>
    %cst_16 = arith.constant dense<0.000000e+00> : vector<16x16xf32>
    %44 = tpu.matmul %42, %43, %cst_16 {dimension_numbers = #tpu.dot_dimension_numbers<[1], [1], [0], [0], [0, 0, 1, 0], [], []>} : vector<16x16xbf16>, vector<16x16xbf16>, vector<16x16xf32> -> vector<16x16xf32>
    %45 = vector.extract_strided_slice %29 {offsets = [0, 64], sizes = [16, 16], strides = [1, 1]} : vector<16x128xbf16> to vector<16x16xbf16>
    %46 = vector.extract_strided_slice %34 {offsets = [0, 64], sizes = [16, 16], strides = [1, 1]} : vector<16x128xbf16> to vector<16x16xbf16>
    %cst_17 = arith.constant dense<0.000000e+00> : vector<16x16xf32>
    %47 = tpu.matmul %45, %46, %cst_17 {dimension_numbers = #tpu.dot_dimension_numbers<[1], [1], [0], [0], [0, 0, 1, 0], [], []>} : vector<16x16xbf16>, vector<16x16xbf16>, vector<16x16xf32> -> vector<16x16xf32>
    %48 = arith.addf %44, %47 : vector<16x16xf32>
    %49 = arith.addf %48, %41 : vector<16x16xf32>
    %cst_18 = arith.constant dense<0xFF800000> : vector<16xf32>
    %50 = vector.multi_reduction <maximumf>, %49, %cst_18 [1] : vector<16x16xf32> to vector<16xf32>
    %51 = vector.shape_cast %50 : vector<16xf32> to vector<16x1xf32>
    %52 = vector.broadcast %51 : vector<16x1xf32> to vector<16x16xf32>
    %53 = arith.subf %49, %52 : vector<16x16xf32>
    %54 = math.exp %53 : vector<16x16xf32>
    %cst_19 = arith.constant dense<0.000000e+00> : vector<16xf32>
    %55 = vector.multi_reduction <add>, %54, %cst_19 [1] : vector<16x16xf32> to vector<16xf32>
    %56 = vector.shape_cast %55 : vector<16xf32> to vector<16x1xf32>
    %57 = arith.truncf %54 : vector<16x16xf32> to vector<16x16xbf16>
    %58 = vector.extract_strided_slice %35 {offsets = [0, 0], sizes = [16, 32], strides = [1, 1]} : vector<16x128xbf16> to vector<16x32xbf16>
    %cst_20 = arith.constant dense<0.000000e+00> : vector<16x32xf32>
    %59 = tpu.matmul %57, %58, %cst_20 {dimension_numbers = #tpu.dot_dimension_numbers<[1], [0], [0], [1], [0, 0, 1, 1], [], []>} : vector<16x16xbf16>, vector<16x32xbf16>, vector<16x32xf32> -> vector<16x32xf32>
    %60 = tpu.reciprocal %56 {approx = true} : vector<16x1xf32> -> vector<16x1xf32>
    %61 = vector.broadcast %60 : vector<16x1xf32> to vector<16x32xf32>
    %62 = arith.mulf %59, %61 : vector<16x32xf32>
    %63 = arith.truncf %62 : vector<16x32xf32> to vector<16x32xbf16>
    %c0_21 = arith.constant 0 : index
    %c0_22 = arith.constant 0 : index
    %64 = vector.load %arg12[%c0_21, %c0_22] : memref<16x128xbf16, #tpu.memory_space<vmem>>, vector<16x32xbf16>
    tpu.vector_store %arg12[%c0_21, %c0_22], %63 {strides = array<i32>} : memref<16x128xbf16, #tpu.memory_space<vmem>>, vector<16x32xbf16>,
    %65 = vector.extract_strided_slice %29 {offsets = [0, 16], sizes = [16, 16], strides = [1, 1]} : vector<16x128xbf16> to vector<16x16xbf16>
    %66 = vector.extract_strided_slice %34 {offsets = [0, 16], sizes = [16, 16], strides = [1, 1]} : vector<16x128xbf16> to vector<16x16xbf16>
    %cst_23 = arith.constant dense<0.000000e+00> : vector<16x16xf32>
    %67 = tpu.matmul %65, %66, %cst_23 {dimension_numbers = #tpu.dot_dimension_numbers<[1], [1], [0], [0], [0, 0, 1, 0], [], []>} : vector<16x16xbf16>, vector<16x16xbf16>, vector<16x16xf32> -> vector<16x16xf32>
    %68 = vector.extract_strided_slice %29 {offsets = [0, 80], sizes = [16, 16], strides = [1, 1]} : vector<16x128xbf16> to vector<16x16xbf16>
    %69 = vector.extract_strided_slice %34 {offsets = [0, 80], sizes = [16, 16], strides = [1, 1]} : vector<16x128xbf16> to vector<16x16xbf16>
    %cst_24 = arith.constant dense<0.000000e+00> : vector<16x16xf32>
    %70 = tpu.matmul %68, %69, %cst_24 {dimension_numbers = #tpu.dot_dimension_numbers<[1], [1], [0], [0], [0, 0, 1, 0], [], []>} : vector<16x16xbf16>, vector<16x16xbf16>, vector<16x16xf32> -> vector<16x16xf32>
    %71 = arith.addf %67, %70 : vector<16x16xf32>
    %72 = arith.addf %71, %41 : vector<16x16xf32>
    %cst_25 = arith.constant dense<0xFF800000> : vector<16xf32>
    %73 = vector.multi_reduction <maximumf>, %72, %cst_25 [1] : vector<16x16xf32> to vector<16xf32>
    %74 = vector.shape_cast %73 : vector<16xf32> to vector<16x1xf32>
    %75 = vector.broadcast %74 : vector<16x1xf32> to vector<16x16xf32>
    %76 = arith.subf %72, %75 : vector<16x16xf32>
    %77 = math.exp %76 : vector<16x16xf32>
    %cst_26 = arith.constant dense<0.000000e+00> : vector<16xf32>
    %78 = vector.multi_reduction <add>, %77, %cst_26 [1] : vector<16x16xf32> to vector<16xf32>
    %79 = vector.shape_cast %78 : vector<16xf32> to vector<16x1xf32>
    %80 = arith.truncf %77 : vector<16x16xf32> to vector<16x16xbf16>
    %81 = vector.extract_strided_slice %35 {offsets = [0, 32], sizes = [16, 32], strides = [1, 1]} : vector<16x128xbf16> to vector<16x32xbf16>
    %cst_27 = arith.constant dense<0.000000e+00> : vector<16x32xf32>
    %82 = tpu.matmul %80, %81, %cst_27 {dimension_numbers = #tpu.dot_dimension_numbers<[1], [0], [0], [1], [0, 0, 1, 1], [], []>} : vector<16x16xbf16>, vector<16x32xbf16>, vector<16x32xf32> -> vector<16x32xf32>
    %83 = tpu.reciprocal %79 {approx = true} : vector<16x1xf32> -> vector<16x1xf32>
    %84 = vector.broadcast %83 : vector<16x1xf32> to vector<16x32xf32>
    %85 = arith.mulf %82, %84 : vector<16x32xf32>
    %86 = arith.truncf %85 : vector<16x32xf32> to vector<16x32xbf16>
    %c0_28 = arith.constant 0 : index
    %c32 = arith.constant 32 : index
    %87 = vector.load %arg12[%c0_28, %c32] : memref<16x128xbf16, #tpu.memory_space<vmem>>, vector<16x32xbf16>
    tpu.vector_store %arg12[%c0_28, %c32], %86 {strides = array<i32>} : memref<16x128xbf16, #tpu.memory_space<vmem>>, vector<16x32xbf16>,
    %88 = vector.extract_strided_slice %29 {offsets = [0, 32], sizes = [16, 16], strides = [1, 1]} : vector<16x128xbf16> to vector<16x16xbf16>
    %89 = vector.extract_strided_slice %34 {offsets = [0, 32], sizes = [16, 16], strides = [1, 1]} : vector<16x128xbf16> to vector<16x16xbf16>
    %cst_29 = arith.constant dense<0.000000e+00> : vector<16x16xf32>
    %90 = tpu.matmul %88, %89, %cst_29 {dimension_numbers = #tpu.dot_dimension_numbers<[1], [1], [0], [0], [0, 0, 1, 0], [], []>} : vector<16x16xbf16>, vector<16x16xbf16>, vector<16x16xf32> -> vector<16x16xf32>
    %91 = vector.extract_strided_slice %29 {offsets = [0, 96], sizes = [16, 16], strides = [1, 1]} : vector<16x128xbf16> to vector<16x16xbf16>
    %92 = vector.extract_strided_slice %34 {offsets = [0, 96], sizes = [16, 16], strides = [1, 1]} : vector<16x128xbf16> to vector<16x16xbf16>
    %cst_30 = arith.constant dense<0.000000e+00> : vector<16x16xf32>
    %93 = tpu.matmul %91, %92, %cst_30 {dimension_numbers = #tpu.dot_dimension_numbers<[1], [1], [0], [0], [0, 0, 1, 0], [], []>} : vector<16x16xbf16>, vector<16x16xbf16>, vector<16x16xf32> -> vector<16x16xf32>
    %94 = arith.addf %90, %93 : vector<16x16xf32>
    %95 = arith.addf %94, %41 : vector<16x16xf32>
    %cst_31 = arith.constant dense<0xFF800000> : vector<16xf32>
    %96 = vector.multi_reduction <maximumf>, %95, %cst_31 [1] : vector<16x16xf32> to vector<16xf32>
    %97 = vector.shape_cast %96 : vector<16xf32> to vector<16x1xf32>
    %98 = vector.broadcast %97 : vector<16x1xf32> to vector<16x16xf32>
    %99 = arith.subf %95, %98 : vector<16x16xf32>
    %100 = math.exp %99 : vector<16x16xf32>
    %cst_32 = arith.constant dense<0.000000e+00> : vector<16xf32>
    %101 = vector.multi_reduction <add>, %100, %cst_32 [1] : vector<16x16xf32> to vector<16xf32>
    %102 = vector.shape_cast %101 : vector<16xf32> to vector<16x1xf32>
    %103 = arith.truncf %100 : vector<16x16xf32> to vector<16x16xbf16>
    %104 = vector.extract_strided_slice %35 {offsets = [0, 64], sizes = [16, 32], strides = [1, 1]} : vector<16x128xbf16> to vector<16x32xbf16>
    %cst_33 = arith.constant dense<0.000000e+00> : vector<16x32xf32>
    %105 = tpu.matmul %103, %104, %cst_33 {dimension_numbers = #tpu.dot_dimension_numbers<[1], [0], [0], [1], [0, 0, 1, 1], [], []>} : vector<16x16xbf16>, vector<16x32xbf16>, vector<16x32xf32> -> vector<16x32xf32>
    %106 = tpu.reciprocal %102 {approx = true} : vector<16x1xf32> -> vector<16x1xf32>
    %107 = vector.broadcast %106 : vector<16x1xf32> to vector<16x32xf32>
    %108 = arith.mulf %105, %107 : vector<16x32xf32>
    %109 = arith.truncf %108 : vector<16x32xf32> to vector<16x32xbf16>
    %c0_34 = arith.constant 0 : index
    %c64 = arith.constant 64 : index
    %110 = vector.load %arg12[%c0_34, %c64] : memref<16x128xbf16, #tpu.memory_space<vmem>>, vector<16x32xbf16>
    tpu.vector_store %arg12[%c0_34, %c64], %109 {strides = array<i32>} : memref<16x128xbf16, #tpu.memory_space<vmem>>, vector<16x32xbf16>,
    %111 = vector.extract_strided_slice %29 {offsets = [0, 48], sizes = [16, 16], strides = [1, 1]} : vector<16x128xbf16> to vector<16x16xbf16>
    %112 = vector.extract_strided_slice %34 {offsets = [0, 48], sizes = [16, 16], strides = [1, 1]} : vector<16x128xbf16> to vector<16x16xbf16>
    %cst_35 = arith.constant dense<0.000000e+00> : vector<16x16xf32>
    %113 = tpu.matmul %111, %112, %cst_35 {dimension_numbers = #tpu.dot_dimension_numbers<[1], [1], [0], [0], [0, 0, 1, 0], [], []>} : vector<16x16xbf16>, vector<16x16xbf16>, vector<16x16xf32> -> vector<16x16xf32>
    %114 = vector.extract_strided_slice %29 {offsets = [0, 112], sizes = [16, 16], strides = [1, 1]} : vector<16x128xbf16> to vector<16x16xbf16>
    %115 = vector.extract_strided_slice %34 {offsets = [0, 112], sizes = [16, 16], strides = [1, 1]} : vector<16x128xbf16> to vector<16x16xbf16>
    %cst_36 = arith.constant dense<0.000000e+00> : vector<16x16xf32>
    %116 = tpu.matmul %114, %115, %cst_36 {dimension_numbers = #tpu.dot_dimension_numbers<[1], [1], [0], [0], [0, 0, 1, 0], [], []>} : vector<16x16xbf16>, vector<16x16xbf16>, vector<16x16xf32> -> vector<16x16xf32>
    %117 = arith.addf %113, %116 : vector<16x16xf32>
    %118 = arith.addf %117, %41 : vector<16x16xf32>
    %cst_37 = arith.constant dense<0xFF800000> : vector<16xf32>
    %119 = vector.multi_reduction <maximumf>, %118, %cst_37 [1] : vector<16x16xf32> to vector<16xf32>
    %120 = vector.shape_cast %119 : vector<16xf32> to vector<16x1xf32>
    %121 = vector.broadcast %120 : vector<16x1xf32> to vector<16x16xf32>
    %122 = arith.subf %118, %121 : vector<16x16xf32>
    %123 = math.exp %122 : vector<16x16xf32>
    %cst_38 = arith.constant dense<0.000000e+00> : vector<16xf32>
    %124 = vector.multi_reduction <add>, %123, %cst_38 [1] : vector<16x16xf32> to vector<16xf32>
    %125 = vector.shape_cast %124 : vector<16xf32> to vector<16x1xf32>
    %126 = arith.truncf %123 : vector<16x16xf32> to vector<16x16xbf16>
    %127 = vector.extract_strided_slice %35 {offsets = [0, 96], sizes = [16, 32], strides = [1, 1]} : vector<16x128xbf16> to vector<16x32xbf16>
    %cst_39 = arith.constant dense<0.000000e+00> : vector<16x32xf32>
    %128 = tpu.matmul %126, %127, %cst_39 {dimension_numbers = #tpu.dot_dimension_numbers<[1], [0], [0], [1], [0, 0, 1, 1], [], []>} : vector<16x16xbf16>, vector<16x32xbf16>, vector<16x32xf32> -> vector<16x32xf32>
    %129 = tpu.reciprocal %125 {approx = true} : vector<16x1xf32> -> vector<16x1xf32>
    %130 = vector.broadcast %129 : vector<16x1xf32> to vector<16x32xf32>
    %131 = arith.mulf %128, %130 : vector<16x32xf32>
    %132 = arith.truncf %131 : vector<16x32xf32> to vector<16x32xbf16>
    %c0_40 = arith.constant 0 : index
    %c96 = arith.constant 96 : index
    %133 = vector.load %arg12[%c0_40, %c96] : memref<16x128xbf16, #tpu.memory_space<vmem>>, vector<16x32xbf16>
    tpu.vector_store %arg12[%c0_40, %c96], %132 {strides = array<i32>} : memref<16x128xbf16, #tpu.memory_space<vmem>>, vector<16x32xbf16>,
    %c0_41 = arith.constant 0 : index
    %c0_42 = arith.constant 0 : index
    %134 = vector.load %arg12[%c0_41, %c0_42] : memref<16x128xbf16, #tpu.memory_space<vmem>>, vector<16x128xbf16>
    %c0_43 = arith.constant 0 : index
    %c0_44 = arith.constant 0 : index
    %135 = vector.load %arg7[%c0_43, %c0_44] : memref<128x128xbf16, #tpu.memory_space<vmem>>, vector<128x128xbf16>
    %cst_45 = arith.constant dense<0.000000e+00> : vector<16x128xf32>
    %136 = tpu.matmul %134, %135, %cst_45 {dimension_numbers = #tpu.dot_dimension_numbers<[1], [0], [0], [1], [0, 0, 1, 1], [], []>} : vector<16x128xbf16>, vector<128x128xbf16>, vector<16x128xf32> -> vector<16x128xf32>
    %137 = arith.addf %1, %136 : vector<16x128xf32>
    %c0_46 = arith.constant 0 : index
    %c0_47 = arith.constant 0 : index
    %138 = vector.load %arg5[%c0_46, %c0_47] : memref<1x128xf32, #tpu.memory_space<vmem>>, vector<1x128xf32>
    %139 = vector.shape_cast %138 : vector<1x128xf32> to vector<128xf32>
    %140 = arith.mulf %137, %137 : vector<16x128xf32>
    %cst_48 = arith.constant dense<0.000000e+00> : vector<16xf32>
    %141 = vector.multi_reduction <add>, %140, %cst_48 [1] : vector<16x128xf32> to vector<16xf32>
    %142 = vector.shape_cast %141 : vector<16xf32> to vector<16x1xf32>
    %cst_49 = arith.constant 1.280000e+02 : f32
    %143 = vector.broadcast %cst_49 : f32 to vector<16x1xf32>
    %144 = arith.divf %142, %143 : vector<16x1xf32>
    %cst_50 = arith.constant 9.99999974E-6 : f32
    %145 = vector.broadcast %cst_50 : f32 to vector<16x1xf32>
    %146 = arith.addf %144, %145 : vector<16x1xf32>
    %147 = math.rsqrt %146 : vector<16x1xf32>
    %148 = vector.broadcast %147 : vector<16x1xf32> to vector<16x128xf32>
    %149 = arith.mulf %137, %148 : vector<16x128xf32>
    %150 = vector.shape_cast %139 : vector<128xf32> to vector<1x128xf32>
    %151 = vector.broadcast %150 : vector<1x128xf32> to vector<16x128xf32>
    %152 = arith.mulf %149, %151 : vector<16x128xf32>
    %153 = arith.truncf %152 : vector<16x128xf32> to vector<16x128xbf16>
    %c0_51 = arith.constant 0 : index
    %c0_52 = arith.constant 0 : index
    %154 = vector.load %arg8[%c0_51, %c0_52] : memref<128x352xbf16, #tpu.memory_space<vmem>>, vector<128x352xbf16>
    %cst_53 = arith.constant dense<0.000000e+00> : vector<16x352xf32>
    %155 = tpu.matmul %153, %154, %cst_53 {dimension_numbers = #tpu.dot_dimension_numbers<[1], [0], [0], [1], [0, 0, 1, 1], [], []>} : vector<16x128xbf16>, vector<128x352xbf16>, vector<16x352xf32> -> vector<16x352xf32>
    %c0_54 = arith.constant 0 : index
    %c0_55 = arith.constant 0 : index
    %156 = vector.load %arg9[%c0_54, %c0_55] : memref<128x352xbf16, #tpu.memory_space<vmem>>, vector<128x352xbf16>
    %cst_56 = arith.constant dense<0.000000e+00> : vector<16x352xf32>
    %157 = tpu.matmul %153, %156, %cst_56 {dimension_numbers = #tpu.dot_dimension_numbers<[1], [0], [0], [1], [0, 0, 1, 1], [], []>} : vector<16x128xbf16>, vector<128x352xbf16>, vector<16x352xf32> -> vector<16x352xf32>
    %158 = arith.negf %155 : vector<16x352xf32>
    %159 = math.exp %158 : vector<16x352xf32>
    %cst_57 = arith.constant 1.000000e+00 : f32
    %160 = vector.broadcast %cst_57 : f32 to vector<16x352xf32>
    %161 = arith.addf %160, %159 : vector<16x352xf32>
    %162 = arith.divf %160, %161 : vector<16x352xf32>
    %163 = arith.mulf %155, %162 : vector<16x352xf32>
    %164 = arith.mulf %163, %157 : vector<16x352xf32>
    %165 = arith.truncf %164 : vector<16x352xf32> to vector<16x352xbf16>
    %c0_58 = arith.constant 0 : index
    %c0_59 = arith.constant 0 : index
    %166 = vector.load %arg10[%c0_58, %c0_59] : memref<352x128xbf16, #tpu.memory_space<vmem>>, vector<352x128xbf16>
    %cst_60 = arith.constant dense<0.000000e+00> : vector<16x128xf32>
    %167 = tpu.matmul %165, %166, %cst_60 {dimension_numbers = #tpu.dot_dimension_numbers<[1], [0], [0], [1], [0, 0, 1, 1], [], []>} : vector<16x352xbf16>, vector<352x128xbf16>, vector<16x128xf32> -> vector<16x128xf32>
    %168 = arith.addf %137, %167 : vector<16x128xf32>
    %c0_61 = arith.constant 0 : index
    %c0_62 = arith.constant 0 : index
    %c0_63 = arith.constant 0 : index
    %169 = vector.load %arg11[%c0_61, %c0_62, %c0_63] : memref<1x16x128xf32, #tpu.memory_space<vmem>>, vector<1x16x128xf32>
    %170 = vector.shape_cast %169 : vector<1x16x128xf32> to vector<16x128xf32>
    %171 = vector.shape_cast %168 : vector<16x128xf32> to vector<1x16x128xf32>
    tpu.vector_store %arg11[%c0_61, %c0_62, %c0_63], %171 {strides = array<i32>} : memref<1x16x128xf32, #tpu.memory_space<vmem>>, vector<1x16x128xf32>,
    return
  }
  func.func @transform_0(%arg0: i32) -> (i32, i32, i32) {
    %c0_i32 = arith.constant 0 : i32
    %c0_i32_0 = arith.constant 0 : i32
    %c0_i32_1 = arith.constant 0 : i32
    return %arg0, %c0_i32, %c0_i32_0 : i32, i32, i32
  }
  func.func @transform_1(%arg0: i32) -> (i32, i32) {
    %c0_i32 = arith.constant 0 : i32
    %c0_i32_0 = arith.constant 0 : i32
    %c0_i32_1 = arith.constant 0 : i32
    return %c0_i32, %c0_i32_0 : i32, i32
  }
  func.func @transform_2(%arg0: i32) -> (i32, i32) {
    %c0_i32 = arith.constant 0 : i32
    %c0_i32_0 = arith.constant 0 : i32
    %c0_i32_1 = arith.constant 0 : i32
    return %c0_i32, %c0_i32_0 : i32, i32
  }
  func.func @transform_3(%arg0: i32) -> (i32, i32) {
    %c0_i32 = arith.constant 0 : i32
    %c0_i32_0 = arith.constant 0 : i32
    %c0_i32_1 = arith.constant 0 : i32
    return %c0_i32, %c0_i32_0 : i32, i32
  }
  func.func @transform_4(%arg0: i32) -> (i32, i32) {
    %c0_i32 = arith.constant 0 : i32
    %c0_i32_0 = arith.constant 0 : i32
    %c0_i32_1 = arith.constant 0 : i32
    return %c0_i32, %c0_i32_0 : i32, i32
  }
  func.func @transform_5(%arg0: i32) -> (i32, i32) {
    %c0_i32 = arith.constant 0 : i32
    %c0_i32_0 = arith.constant 0 : i32
    %c0_i32_1 = arith.constant 0 : i32
    return %c0_i32, %c0_i32_0 : i32, i32
  }
  func.func @transform_6(%arg0: i32) -> (i32, i32) {
    %c0_i32 = arith.constant 0 : i32
    %c0_i32_0 = arith.constant 0 : i32
    %c0_i32_1 = arith.constant 0 : i32
    return %c0_i32, %c0_i32_0 : i32, i32
  }
  func.func @transform_7(%arg0: i32) -> (i32, i32) {
    %c0_i32 = arith.constant 0 : i32
    %c0_i32_0 = arith.constant 0 : i32
    %c0_i32_1 = arith.constant 0 : i32
    return %c0_i32, %c0_i32_0 : i32, i32
  }
  func.func @transform_8(%arg0: i32) -> (i32, i32) {
    %c0_i32 = arith.constant 0 : i32
    %c0_i32_0 = arith.constant 0 : i32
    %c0_i32_1 = arith.constant 0 : i32
    return %c0_i32, %c0_i32_0 : i32, i32
  }
  func.func @transform_9(%arg0: i32) -> (i32, i32) {
    %c0_i32 = arith.constant 0 : i32
    %c0_i32_0 = arith.constant 0 : i32
    %c0_i32_1 = arith.constant 0 : i32
    return %c0_i32, %c0_i32_0 : i32, i32
  }
  func.func @transform_10(%arg0: i32) -> (i32, i32, i32) {
    %c0_i32 = arith.constant 0 : i32
    %c0_i32_0 = arith.constant 0 : i32
    %c0_i32_1 = arith.constant 0 : i32
    return %arg0, %c0_i32, %c0_i32_0 : i32, i32, i32
  }
}

</mosaic_0001>

<llo_original>
// kernel: tpu_custom_call.1
$region0: #{tpu_custom_call.1}
  #allocation0 [shape = 'u32[]', space=smem, size = 0x4, offset = 0x4, fixed_abs, tag = 'smem constant byte address 0x4 - core index']
  #allocation1 [shape = 'u32[72,128]{1,0:T(1,128)}', space=vmem, size = 0x9000, scoped, tag = 'internal scratch']
  #allocation2 [shape = 'bf16[16,128]{1,0:T(8,128)(2,1)}', space=vmem, size = 0x1000, scoped, tag = 'scratch operand']
  %s0 = inlined_call_operand.vmem [shape: f32[2,16,128], index: 0, kind: input, shape index: {}]
  %s1 = inlined_call_operand.vmem [shape: f32[16,128], index: 1, kind: input, shape index: {}]
  %s2 = inlined_call_operand.vmem [shape: f32[16,128], index: 2, kind: input, shape index: {}]
  %s3 = inlined_call_operand.vmem [shape: f32[1,128], index: 3, kind: input, shape index: {}]
  %s4 = inlined_call_operand.vmem [shape: f32[1,128], index: 4, kind: input, shape index: {}]
  %s5 = inlined_call_operand.vmem [shape: bf16[128,384], index: 5, kind: input, shape index: {}]
  %s6 = inlined_call_operand.vmem [shape: bf16[128,128], index: 6, kind: input, shape index: {}]
  %s7 = inlined_call_operand.vmem [shape: bf16[128,352], index: 7, kind: input, shape index: {}]
  %s8 = inlined_call_operand.vmem [shape: bf16[128,352], index: 8, kind: input, shape index: {}]
  %s9 = inlined_call_operand.vmem [shape: bf16[352,128], index: 9, kind: input, shape index: {}]
  %s10 = inlined_call_operand.hbm [shape: f32[2,16,128], index: 10, kind: output, shape index: {}]
  %s11 = sld [smem:[#allocation0]]
  $region73: #{tpu_custom_call.1} parent=0
    _
  %s13 = ssub.s32 1, %s11
  %s14 = scalar_select 0, %s13, %s11
  $region1: #{tpu_custom_call.1} parent=0
    #allocation3 [shape = 'u8[16384]{0}', space=vmem, size = 0x4000, scoped, tag = 'output window, operand 0']
    #allocation4 [shape = 's32[2]{0}', space=sflag, size = 0x8, scoped, tag = 'scoped memory for tpu_custom_call.1']
    %15 = vsyncpa [#allocation4], 0
    %s16 = scalar_lea.sflag [#allocation4], 1
    %17 = vsyncpa %s16, 0
    loop: start=0, step=1, limit=4
    $region2: #{tpu_custom_call.1} parent=1 // loop_pre_header
      _
    $region3: #{tpu_custom_call.1} parent=1 // loop_header
      %s19 = sphi 0, %s23
      %p20 = scmp.ge.s32.totalorder %s19, 4
      %s29 = sphi 0, %s31
      %s32 = sphi 0, %s29
      %s33 = sphi 0, %s32
      %s49 = sphi 0, %s33
      %s53 = sphi 0, %s53
      %s55 = sphi 0, %s53
      %s56 = sphi 0, %s55
      %s70 = sphi 0, %s56
      %s74 = sphi 0, %s74
      %s76 = sphi 0, %s74
      %s77 = sphi 0, %s76
      %s91 = sphi 0, %s77
      %s95 = sphi 0, %s95
      %s97 = sphi 0, %s95
      %s98 = sphi 0, %s97
      %s112 = sphi 0, %s98
      %s116 = sphi 0, %s116
      %s118 = sphi 0, %s116
      %s119 = sphi 0, %s118
      %s133 = sphi 0, %s119
      %s137 = sphi 0, %s137
      %s139 = sphi 0, %s137
      %s140 = sphi 0, %s139
      %s154 = sphi 0, %s140
      %s158 = sphi 0, %s158
      %s160 = sphi 0, %s158
      %s161 = sphi 0, %s160
      %s175 = sphi 0, %s161
      %s179 = sphi 0, %s179
      %s181 = sphi 0, %s179
      %s182 = sphi 0, %s181
      %s196 = sphi 0, %s182
      %s200 = sphi 0, %s200
      %s202 = sphi 0, %s200
      %s203 = sphi 0, %s202
      %s217 = sphi 0, %s203
      %s221 = sphi 0, %s221
      %s223 = sphi 0, %s221
      %s224 = sphi 0, %s223
      %s238 = sphi 0, %s224
      %s244 = sphi 0, %s246
      %s247 = sphi 0, %s244
      %s248 = sphi 0, %s247
      %s264 = sphi 0, %s248
    $region4: #{tpu_custom_call.1} parent=1 // loop_header_branch
      %22 = sbr.rel (%p20) target = $region8
    $region5: #{tpu_custom_call.1} parent=1 // loop_body
      %s24 = ssub.s32 %s19, 1
      %s25 = ssub.s32 %s19, 2
      %s26 = sadd.s32 %s19, 1
      %s27 = ssub.s32 %s19, %s26
      %p28 = scmp.eq.s32.totalorder %s27, 0
      %s30 = sadd.s32 %s29, 1
      %s31 = scalar_select %p28, %s29, %s30
      %p34 = pneg %p28
      %p35 = scmp.eq.s32.totalorder %s19, 1
      %p36 = por %p34, %p35
      %p37 = scmp.ne.s32.totalorder %s29, %s32
      %p38 = scmp.eq.s32.totalorder %s19, 0
      %p39 = por %p37, %p38
      %p40 = scmp.ne.s32.totalorder %s29, %s32
      %p41 = scmp.eq.s32.totalorder %s24, 1
      %p42 = por %p40, %p41
      %p43 = scmp.ne.s32.totalorder %s32, %s33
      %p44 = scmp.eq.s32.totalorder %s24, 0
      %p45 = por %p43, %p44
      %p46 = scmp.ne.s32.totalorder %s32, %s33
      %p47 = scmp.eq.s32.totalorder %s25, 1
      %p48 = por %p46, %p47
      %p50 = scmp.ne.s32.totalorder %s33, %s49
      %p51 = scmp.eq.s32.totalorder %s25, 0
      %p52 = por %p50, %p51
      %s54 = sadd.s32 %s53, 1
      %p57 = scmp.eq.s32.totalorder %s19, 1
      %p58 = scmp.ne.s32.totalorder %s53, %s55
      %p59 = scmp.eq.s32.totalorder %s19, 0
      %p60 = por %p58, %p59
      %p61 = scmp.ne.s32.totalorder %s53, %s55
      %p62 = scmp.eq.s32.totalorder %s24, 1
      %p63 = por %p61, %p62
      %p64 = scmp.ne.s32.totalorder %s55, %s56
      %p65 = scmp.eq.s32.totalorder %s24, 0
      %p66 = por %p64, %p65
      %p67 = scmp.ne.s32.totalorder %s55, %s56
      %p68 = scmp.eq.s32.totalorder %s25, 1
      %p69 = por %p67, %p68
      %p71 = scmp.ne.s32.totalorder %s56, %s70
      %p72 = scmp.eq.s32.totalorder %s25, 0
      %p73 = por %p71, %p72
      %s75 = sadd.s32 %s74, 1
      %p78 = scmp.eq.s32.totalorder %s19, 1
      %p79 = scmp.ne.s32.totalorder %s74, %s76
      %p80 = scmp.eq.s32.totalorder %s19, 0
      %p81 = por %p79, %p80
      %p82 = scmp.ne.s32.totalorder %s74, %s76
      %p83 = scmp.eq.s32.totalorder %s24, 1
      %p84 = por %p82, %p83
      %p85 = scmp.ne.s32.totalorder %s76, %s77
      %p86 = scmp.eq.s32.totalorder %s24, 0
      %p87 = por %p85, %p86
      %p88 = scmp.ne.s32.totalorder %s76, %s77
      %p89 = scmp.eq.s32.totalorder %s25, 1
      %p90 = por %p88, %p89
      %p92 = scmp.ne.s32.totalorder %s77, %s91
      %p93 = scmp.eq.s32.totalorder %s25, 0
      %p94 = por %p92, %p93
      %s96 = sadd.s32 %s95, 1
      %p99 = scmp.eq.s32.totalorder %s19, 1
      %p100 = scmp.ne.s32.totalorder %s95, %s97
      %p101 = scmp.eq.s32.totalorder %s19, 0
      %p102 = por %p100, %p101
      %p103 = scmp.ne.s32.totalorder %s95, %s97
      %p104 = scmp.eq.s32.totalorder %s24, 1
      %p105 = por %p103, %p104
      %p106 = scmp.ne.s32.totalorder %s97, %s98
      %p107 = scmp.eq.s32.totalorder %s24, 0
      %p108 = por %p106, %p107
      %p109 = scmp.ne.s32.totalorder %s97, %s98
      %p110 = scmp.eq.s32.totalorder %s25, 1
      %p111 = por %p109, %p110
      %p113 = scmp.ne.s32.totalorder %s98, %s112
      %p114 = scmp.eq.s32.totalorder %s25, 0
      %p115 = por %p113, %p114
      %s117 = sadd.s32 %s116, 1
      %p120 = scmp.eq.s32.totalorder %s19, 1
      %p121 = scmp.ne.s32.totalorder %s116, %s118
      %p122 = scmp.eq.s32.totalorder %s19, 0
      %p123 = por %p121, %p122
      %p124 = scmp.ne.s32.totalorder %s116, %s118
      %p125 = scmp.eq.s32.totalorder %s24, 1
      %p126 = por %p124, %p125
      %p127 = scmp.ne.s32.totalorder %s118, %s119
      %p128 = scmp.eq.s32.totalorder %s24, 0
      %p129 = por %p127, %p128
      %p130 = scmp.ne.s32.totalorder %s118, %s119
      %p131 = scmp.eq.s32.totalorder %s25, 1
      %p132 = por %p130, %p131
      %p134 = scmp.ne.s32.totalorder %s119, %s133
      %p135 = scmp.eq.s32.totalorder %s25, 0
      %p136 = por %p134, %p135
      %s138 = sadd.s32 %s137, 1
      %p141 = scmp.eq.s32.totalorder %s19, 1
      %p142 = scmp.ne.s32.totalorder %s137, %s139
      %p143 = scmp.eq.s32.totalorder %s19, 0
      %p144 = por %p142, %p143
      %p145 = scmp.ne.s32.totalorder %s137, %s139
      %p146 = scmp.eq.s32.totalorder %s24, 1
      %p147 = por %p145, %p146
      %p148 = scmp.ne.s32.totalorder %s139, %s140
      %p149 = scmp.eq.s32.totalorder %s24, 0
      %p150 = por %p148, %p149
      %p151 = scmp.ne.s32.totalorder %s139, %s140
      %p152 = scmp.eq.s32.totalorder %s25, 1
      %p153 = por %p151, %p152
      %p155 = scmp.ne.s32.totalorder %s140, %s154
      %p156 = scmp.eq.s32.totalorder %s25, 0
      %p157 = por %p155, %p156
      %s159 = sadd.s32 %s158, 1
      %p162 = scmp.eq.s32.totalorder %s19, 1
      %p163 = scmp.ne.s32.totalorder %s158, %s160
      %p164 = scmp.eq.s32.totalorder %s19, 0
      %p165 = por %p163, %p164
      %p166 = scmp.ne.s32.totalorder %s158, %s160
      %p167 = scmp.eq.s32.totalorder %s24, 1
      %p168 = por %p166, %p167
      %p169 = scmp.ne.s32.totalorder %s160, %s161
      %p170 = scmp.eq.s32.totalorder %s24, 0
      %p171 = por %p169, %p170
      %p172 = scmp.ne.s32.totalorder %s160, %s161
      %p173 = scmp.eq.s32.totalorder %s25, 1
      %p174 = por %p172, %p173
      %p176 = scmp.ne.s32.totalorder %s161, %s175
      %p177 = scmp.eq.s32.totalorder %s25, 0
      %p178 = por %p176, %p177
      %s180 = sadd.s32 %s179, 1
      %p183 = scmp.eq.s32.totalorder %s19, 1
      %p184 = scmp.ne.s32.totalorder %s179, %s181
      %p185 = scmp.eq.s32.totalorder %s19, 0
      %p186 = por %p184, %p185
      %p187 = scmp.ne.s32.totalorder %s179, %s181
      %p188 = scmp.eq.s32.totalorder %s24, 1
      %p189 = por %p187, %p188
      %p190 = scmp.ne.s32.totalorder %s181, %s182
      %p191 = scmp.eq.s32.totalorder %s24, 0
      %p192 = por %p190, %p191
      %p193 = scmp.ne.s32.totalorder %s181, %s182
      %p194 = scmp.eq.s32.totalorder %s25, 1
      %p195 = por %p193, %p194
      %p197 = scmp.ne.s32.totalorder %s182, %s196
      %p198 = scmp.eq.s32.totalorder %s25, 0
      %p199 = por %p197, %p198
      %s201 = sadd.s32 %s200, 1
      %p204 = scmp.eq.s32.totalorder %s19, 1
      %p205 = scmp.ne.s32.totalorder %s200, %s202
      %p206 = scmp.eq.s32.totalorder %s19, 0
      %p207 = por %p205, %p206
      %p208 = scmp.ne.s32.totalorder %s200, %s202
      %p209 = scmp.eq.s32.totalorder %s24, 1
      %p210 = por %p208, %p209
      %p211 = scmp.ne.s32.totalorder %s202, %s203
      %p212 = scmp.eq.s32.totalorder %s24, 0
      %p213 = por %p211, %p212
      %p214 = scmp.ne.s32.totalorder %s202, %s203
      %p215 = scmp.eq.s32.totalorder %s25, 1
      %p216 = por %p214, %p215
      %p218 = scmp.ne.s32.totalorder %s203, %s217
      %p219 = scmp.eq.s32.totalorder %s25, 0
      %p220 = por %p218, %p219
      %s222 = sadd.s32 %s221, 1
      %p225 = scmp.eq.s32.totalorder %s19, 1
      %p226 = scmp.ne.s32.totalorder %s221, %s223
      %p227 = scmp.eq.s32.totalorder %s19, 0
      %p228 = por %p226, %p227
      %p229 = scmp.ne.s32.totalorder %s221, %s223
      %p230 = scmp.eq.s32.totalorder %s24, 1
      %p231 = por %p229, %p230
      %p232 = scmp.ne.s32.totalorder %s223, %s224
      %p233 = scmp.eq.s32.totalorder %s24, 0
      %p234 = por %p232, %p233
      %p235 = scmp.ne.s32.totalorder %s223, %s224
      %p236 = scmp.eq.s32.totalorder %s25, 1
      %p237 = por %p235, %p236
      %p239 = scmp.ne.s32.totalorder %s224, %s238
      %p240 = scmp.eq.s32.totalorder %s25, 0
      %p241 = por %p239, %p240
      %s242 = ssub.s32 %s19, %s26
      %p243 = scmp.eq.s32.totalorder %s242, 0
      %s245 = sadd.s32 %s244, 1
      %s246 = scalar_select %p243, %s244, %s245
      %p249 = pneg %p243
      %p250 = scmp.eq.s32.totalorder %s19, 1
      %p251 = por %p249, %p250
      %p252 = scmp.ne.s32.totalorder %s244, %s247
      %p253 = scmp.eq.s32.totalorder %s19, 0
      %p254 = por %p252, %p253
      %p255 = scmp.ne.s32.totalorder %s244, %s247
      %p256 = scmp.eq.s32.totalorder %s24, 1
      %p257 = por %p255, %p256
      %p258 = scmp.ne.s32.totalorder %s247, %s248
      %p259 = scmp.eq.s32.totalorder %s24, 0
      %p260 = por %p258, %p259
      %p261 = scmp.ne.s32.totalorder %s247, %s248
      %p262 = scmp.eq.s32.totalorder %s25, 1
      %p263 = por %p261, %p262
      %p265 = scmp.ne.s32.totalorder %s248, %s264
      %p266 = scmp.eq.s32.totalorder %s25, 0
      %p267 = por %p265, %p266
      %p268 = scmp.le.s32.totalorder 1, %s19
      %p269 = scmp.lt.s32.totalorder %s19, 3
      %p270 = pnand %p268, %p269
      %p271 = pneg %p270
      // Predicated region
      $region9: #{tpu_custom_call.1} parent=5 // pred_check
        _
      $region10: #{tpu_custom_call.1} parent=5 // pred_check_branch
        %273 = sbr.rel (%p270) target = $region12
      $region11: #{tpu_custom_call.1} parent=5 // pred_region
        %s274 = ssub.s32 %s19, 1
        // Predicated region
        $region13: #{tpu_custom_call.1} parent=11 // pred_check
          %p275 = pneg %p66
        $region14: #{tpu_custom_call.1} parent=11 // pred_check_branch
          %277 = sbr.rel (%p275) target = $region16
        $region15: #{tpu_custom_call.1} parent=11 // pred_region
          _
        $region16: #{tpu_custom_call.1} parent=11 // pred_fallthru
          _
        // Predicated region
        $region17: #{tpu_custom_call.1} parent=11 // pred_check
          %p278 = pneg %p87
        $region18: #{tpu_custom_call.1} parent=11 // pred_check_branch
          %280 = sbr.rel (%p278) target = $region20
        $region19: #{tpu_custom_call.1} parent=11 // pred_region
          _
        $region20: #{tpu_custom_call.1} parent=11 // pred_fallthru
          _
        // Predicated region
        $region21: #{tpu_custom_call.1} parent=11 // pred_check
          %p281 = pneg %p108
        $region22: #{tpu_custom_call.1} parent=11 // pred_check_branch
          %283 = sbr.rel (%p281) target = $region24
        $region23: #{tpu_custom_call.1} parent=11 // pred_region
          _
        $region24: #{tpu_custom_call.1} parent=11 // pred_fallthru
          _
        // Predicated region
        $region25: #{tpu_custom_call.1} parent=11 // pred_check
          %p284 = pneg %p129
        $region26: #{tpu_custom_call.1} parent=11 // pred_check_branch
          %286 = sbr.rel (%p284) target = $region28
        $region27: #{tpu_custom_call.1} parent=11 // pred_region
          _
        $region28: #{tpu_custom_call.1} parent=11 // pred_fallthru
          _
        // Predicated region
        $region29: #{tpu_custom_call.1} parent=11 // pred_check
          %p287 = pneg %p150
        $region30: #{tpu_custom_call.1} parent=11 // pred_check_branch
          %289 = sbr.rel (%p287) target = $region32
        $region31: #{tpu_custom_call.1} parent=11 // pred_region
          _
        $region32: #{tpu_custom_call.1} parent=11 // pred_fallthru
          _
        // Predicated region
        $region33: #{tpu_custom_call.1} parent=11 // pred_check
          %p290 = pneg %p171
        $region34: #{tpu_custom_call.1} parent=11 // pred_check_branch
          %292 = sbr.rel (%p290) target = $region36
        $region35: #{tpu_custom_call.1} parent=11 // pred_region
          _
        $region36: #{tpu_custom_call.1} parent=11 // pred_fallthru
          _
        // Predicated region
        $region37: #{tpu_custom_call.1} parent=11 // pred_check
          %p293 = pneg %p192
        $region38: #{tpu_custom_call.1} parent=11 // pred_check_branch
          %295 = sbr.rel (%p293) target = $region40
        $region39: #{tpu_custom_call.1} parent=11 // pred_region
          _
        $region40: #{tpu_custom_call.1} parent=11 // pred_fallthru
          _
        // Predicated region
        $region41: #{tpu_custom_call.1} parent=11 // pred_check
          %p296 = pneg %p213
        $region42: #{tpu_custom_call.1} parent=11 // pred_check_branch
          %298 = sbr.rel (%p296) target = $region44
        $region43: #{tpu_custom_call.1} parent=11 // pred_region
          _
        $region44: #{tpu_custom_call.1} parent=11 // pred_fallthru
          _
        // Predicated region
        $region45: #{tpu_custom_call.1} parent=11 // pred_check
          %p299 = pneg %p234
        $region46: #{tpu_custom_call.1} parent=11 // pred_check_branch
          %301 = sbr.rel (%p299) target = $region48
        $region47: #{tpu_custom_call.1} parent=11 // pred_region
          _
        $region48: #{tpu_custom_call.1} parent=11 // pred_fallthru
          _
      $region12: #{tpu_custom_call.1} parent=5 // pred_fallthru
        _
      %p302 = scmp.lt.s32.totalorder %s19, 2
      // Predicated region
      $region49: #{tpu_custom_call.1} parent=5 // pred_check
        %p303 = pneg %p302
      $region50: #{tpu_custom_call.1} parent=5 // pred_check_branch
        %305 = sbr.rel (%p303) target = $region52
      $region51: #{tpu_custom_call.1} parent=5 // pred_region
        // Predicated region
        $region53: #{tpu_custom_call.1} parent=51 // pred_check
          %p306 = pneg %p39
        $region54: #{tpu_custom_call.1} parent=51 // pred_check_branch
          %308 = sbr.rel (%p306) target = $region56
        $region55: #{tpu_custom_call.1} parent=51 // pred_region
          %p309 = scmp.lt.s32.totalorder %s19, 1
          %s310 = scalar_select %p309, %s19, 1
          %s311 = smul.addr %s310, 2
          %s312 = smul.addr %s311, 8
          %s313 = scalar_lea.vmem %s0, %s312
        $region56: #{tpu_custom_call.1} parent=51 // pred_fallthru
          _
      $region52: #{tpu_custom_call.1} parent=5 // pred_fallthru
        _
      %p314 = scmp.le.s32.totalorder 1, %s19
      %p315 = scmp.lt.s32.totalorder %s19, 3
      %p316 = pnand %p314, %p315
      %p317 = pneg %p316
      // Predicated region
      $region57: #{tpu_custom_call.1} parent=5 // pred_check
        _
      $region58: #{tpu_custom_call.1} parent=5 // pred_check_branch
        %319 = sbr.rel (%p316) target = $region60
      $region59: #{tpu_custom_call.1} parent=5 // pred_region
        %s320 = ssub.s32 %s19, 1
        %p321 = scmp.lt.s32.totalorder %s24, 1
        %s322 = scalar_select %p321, %s24, 1
        %s323 = smul.addr %s322, 2
        %s324 = smul.addr %s323, 8
        %s325 = scalar_lea.vmem %s0, %s324
        %p326 = pneg %p45
        %p327 = pneg %p42
        %p328 = pneg %p66
        %p329 = pneg %p63
        %p330 = pneg %p87
        %p331 = pneg %p84
        %p332 = pneg %p108
        %p333 = pneg %p105
        %p334 = pneg %p129
        %p335 = pneg %p126
        %p336 = pneg %p150
        %p337 = pneg %p147
        %p338 = pneg %p171
        %p339 = pneg %p168
        %p340 = pneg %p192
        %p341 = pneg %p189
        %p342 = pneg %p213
        %p343 = pneg %p210
        %p344 = pneg %p234
        %p345 = pneg %p231
        %p346 = pneg %p260
        %p347 = pneg %p257
        %s348 = sand.u32 %s247, 1
        %s349 = scalar_lea.sflag [#allocation4], %s348
        %s350 = sand.u32 %s247, 1
        %s351 = smul.addr %s350, 16
        %s352 = scalar_lea.vmem [#allocation3], %s351
        %p353 = scmp.lt.s32.totalorder %s24, 1
        %s354 = scalar_select %p353, %s24, 1
        %s355 = smul.addr %s354, 2
        %s356 = smul.addr %s355, 8
        %s357 = scalar_lea.vmem %s0, %s356
        %v359 = vld [vmem:[%s357] sm:$0xff]
        %v360 = vld [vmem:[%s357 + $0x8] sm:$0xff]
        %v361 = vld [vmem:[%s3] sm:$0x1]
        %v362 = vmul.f32 %v359, %v359
        %v363 = vmul.f32 %v360, %v360
        %364 = vadd.xlane.f32.xlu0 %v362
        %v365 = vpop.xlane.xlu0 %364
        %366 = vadd.xlane.f32.xlu0 %v363
        %v367 = vpop.xlane.xlu0 %366
        %v368 = vrcp.pop 128.0
        %v369 = vmul.f32 128.0, %v368
        %v370 = vsub.f32 1.0, %v369
        %v371 = vmul.f32 %v368, %v370
        %v372 = vadd.f32 %v368, %v371
        %vm373 = vweird.f32 %v368
        %v374 = vsel %vm373, %v368, %v372
        %v375 = vmul.f32 %v365, %v374
        %v376 = vmul.f32 %v367, %v374
        %v377 = vadd.f32 %v375, 1e-05
        %v378 = vadd.f32 %v376, 1e-05
        %v379 = vrsqrt.pop %v377
        %v380 = vmul.f32 %v379, %v377
        %v381 = vmul.f32 %v380, %v379
        %v382 = vmul.f32 0.5, %v381
        %v383 = vsub.f32 1.5, %v382
        %v384 = vmul.f32 %v379, %v383
        %vm385 = vweird.f32 %v377
        %vm386 = vweird.f32 %v379
        %vm387 = vmor %vm385, %vm386
        %v388 = vsel %vm387, %v379, %v384
        %v389 = vrsqrt.pop %v378
        %v390 = vmul.f32 %v389, %v378
        %v391 = vmul.f32 %v390, %v389
        %v392 = vmul.f32 0.5, %v391
        %v393 = vsub.f32 1.5, %v392
        %v394 = vmul.f32 %v389, %v393
        %vm395 = vweird.f32 %v378
        %vm396 = vweird.f32 %v389
        %vm397 = vmor %vm395, %vm396
        %v398 = vsel %vm397, %v389, %v394
        %v399 = vmul.f32 %v359, %v388
        %v400 = vmul.f32 %v360, %v398
        %v402 = vperm.slane %v361, 0
        %v404 = vmul.f32 %v399, %v402
        %v405 = vmul.f32 %v400, %v402
        %v406 = vpack.c.bf16 %v405, %v404
        %v407 = vld [vmem:[%s5] sm:$0xff]
        %v408 = vld [vmem:[%s5 + $0x8] sm:$0xf]
        %v409 = vld [vmem:[%s5 + $0xc] sm:$0xff]
        %v410 = vld [vmem:[%s5 + $0x14] sm:$0xf]
        %v411 = vld [vmem:[%s5 + $0x18] sm:$0xff]
        %v412 = vld [vmem:[%s5 + $0x20] sm:$0xf]
        %v413 = vld [vmem:[%s5 + $0x24] sm:$0xff]
        %v414 = vld [vmem:[%s5 + $0x2c] sm:$0xf]
        %v415 = vld [vmem:[%s5 + $0x30] sm:$0xff]
        %v416 = vld [vmem:[%s5 + $0x38] sm:$0xf]
        %v417 = vld [vmem:[%s5 + $0x3c] sm:$0xff]
        %v418 = vld [vmem:[%s5 + $0x44] sm:$0xf]
        %v419 = vld [vmem:[%s5 + $0x48] sm:$0xff]
        %v420 = vld [vmem:[%s5 + $0x50] sm:$0xf]
        %v421 = vld [vmem:[%s5 + $0x54] sm:$0xff]
        %v422 = vld [vmem:[%s5 + $0x5c] sm:$0xf]
        %v423 = vld [vmem:[%s5 + $0x60] sm:$0xff]
        %v424 = vld [vmem:[%s5 + $0x68] sm:$0xf]
        %v425 = vld [vmem:[%s5 + $0x6c] sm:$0xff]
        %v426 = vld [vmem:[%s5 + $0x74] sm:$0xf]
        %v427 = vld [vmem:[%s5 + $0x78] sm:$0xff]
        %v428 = vld [vmem:[%s5 + $0x80] sm:$0xf]
        %v429 = vld [vmem:[%s5 + $0x84] sm:$0xff]
        %v430 = vld [vmem:[%s5 + $0x8c] sm:$0xf]
        %v431 = vld [vmem:[%s5 + $0x90] sm:$0xff]
        %v432 = vld [vmem:[%s5 + $0x98] sm:$0xf]
        %v433 = vld [vmem:[%s5 + $0x9c] sm:$0xff]
        %v434 = vld [vmem:[%s5 + $0xa4] sm:$0xf]
        %v435 = vld [vmem:[%s5 + $0xa8] sm:$0xff]
        %v436 = vld [vmem:[%s5 + $0xb0] sm:$0xf]
        %v437 = vld [vmem:[%s5 + $0xb4] sm:$0xff]
        %v438 = vld [vmem:[%s5 + $0xbc] sm:$0xf]
        %v471 = vunpack.c.l.b16 %v407
        %v472 = vunpack.c.h.b16 %v407
        %v473 = vunpack.c.l.b16 %v408
        %v474 = vunpack.c.l.b16 %v409
        %v475 = vunpack.c.h.b16 %v409
        %v476 = vunpack.c.l.b16 %v410
        %v477 = vunpack.c.l.b16 %v411
        %v478 = vunpack.c.h.b16 %v411
        %v479 = vunpack.c.l.b16 %v412
        %v480 = vunpack.c.l.b16 %v413
        %v481 = vunpack.c.h.b16 %v413
        %v482 = vunpack.c.l.b16 %v414
        %v483 = vunpack.c.l.b16 %v415
        %v484 = vunpack.c.h.b16 %v415
        %v485 = vunpack.c.l.b16 %v416
        %v486 = vunpack.c.l.b16 %v417
        %v487 = vunpack.c.h.b16 %v417
        %v488 = vunpack.c.l.b16 %v418
        %v489 = vunpack.c.l.b16 %v419
        %v490 = vunpack.c.h.b16 %v419
        %v491 = vunpack.c.l.b16 %v420
        %v492 = vunpack.c.l.b16 %v421
        %v493 = vunpack.c.h.b16 %v421
        %v494 = vunpack.c.l.b16 %v422
        %v495 = vunpack.c.l.b16 %v423
        %v496 = vunpack.c.h.b16 %v423
        %v497 = vunpack.c.l.b16 %v424
        %v498 = vunpack.c.l.b16 %v425
        %v499 = vunpack.c.h.b16 %v425
        %v500 = vunpack.c.l.b16 %v426
        %v501 = vunpack.c.l.b16 %v427
        %v502 = vunpack.c.h.b16 %v427
        %v503 = vunpack.c.l.b16 %v428
        %v504 = vunpack.c.l.b16 %v429
        %v505 = vunpack.c.h.b16 %v429
        %v506 = vunpack.c.l.b16 %v430
        %v507 = vunpack.c.l.b16 %v431
        %v508 = vunpack.c.h.b16 %v431
        %v509 = vunpack.c.l.b16 %v432
        %v510 = vunpack.c.l.b16 %v433
        %v511 = vunpack.c.h.b16 %v433
        %v512 = vunpack.c.l.b16 %v434
        %v513 = vunpack.c.l.b16 %v435
        %v514 = vunpack.c.h.b16 %v435
        %v515 = vunpack.c.l.b16 %v436
        %v516 = vunpack.c.l.b16 %v437
        %v517 = vunpack.c.h.b16 %v437
        %v518 = vunpack.c.l.b16 %v438
        %v519 = vpack.c.b16 %v474, %v471
        %v520 = vpack.c.b16 %v475, %v472
        %v521 = vpack.c.b16 %v476, %v473
        %v522 = vpack.c.b16 %v480, %v477
        %v523 = vpack.c.b16 %v481, %v478
        %v524 = vpack.c.b16 %v482, %v479
        %v525 = vpack.c.b16 %v486, %v483
        %v526 = vpack.c.b16 %v487, %v484
        %v527 = vpack.c.b16 %v488, %v485
        %v528 = vpack.c.b16 %v492, %v489
        %v529 = vpack.c.b16 %v493, %v490
        %v530 = vpack.c.b16 %v494, %v491
        %v531 = vpack.c.b16 %v498, %v495
        %v532 = vpack.c.b16 %v499, %v496
        %v533 = vpack.c.b16 %v500, %v497
        %v534 = vpack.c.b16 %v504, %v501
        %v535 = vpack.c.b16 %v505, %v502
        %v536 = vpack.c.b16 %v506, %v503
        %v537 = vpack.c.b16 %v510, %v507
        %v538 = vpack.c.b16 %v511, %v508
        %v539 = vpack.c.b16 %v512, %v509
        %v540 = vpack.c.b16 %v516, %v513
        %v541 = vpack.c.b16 %v517, %v514
        %v542 = vpack.c.b16 %v518, %v515
        %567 = vmatpush.bf16.msra.mxu0 %v540
        %568 = vmatpush.bf16.msra.mxu0 %v537
        %569 = vmatpush.bf16.msra.mxu0 %v534
        %570 = vmatpush.bf16.msra.mxu0 %v531
        %571 = vmatpush.bf16.msra.mxu0 %v528
        %572 = vmatpush.bf16.msra.mxu0 %v525
        %573 = vmatpush.bf16.msra.mxu0 %v522
        %574 = vmatpush.bf16.msra.mxu0 %v519
        %575 = vmatmul.bf16.gmra.mxu0 %v406
        %v576 = vpop.f32.mrf.mxu0
        %v577 = vadd.f32 0.0, %v576
        %v578 = vpop.f32.mrf.mxu0
        %v579 = vadd.f32 0.0, %v578
        %580 = vdwg.mxu0
        %581 = vmatpush.bf16.msra.mxu0 %v541
        %582 = vmatpush.bf16.msra.mxu0 %v538
        %583 = vmatpush.bf16.msra.mxu0 %v535
        %584 = vmatpush.bf16.msra.mxu0 %v532
        %585 = vmatpush.bf16.msra.mxu0 %v529
        %586 = vmatpush.bf16.msra.mxu0 %v526
        %587 = vmatpush.bf16.msra.mxu0 %v523
        %588 = vmatpush.bf16.msra.mxu0 %v520
        %589 = vmatmul.bf16.gmra.mxu0 %v406
        %v590 = vpop.f32.mrf.mxu0
        %v591 = vadd.f32 0.0, %v590
        %v592 = vpop.f32.mrf.mxu0
        %v593 = vadd.f32 0.0, %v592
        %594 = vdwg.mxu0
        %595 = vmatpush.bf16.msra.mxu0 %v542
        %596 = vmatpush.bf16.msra.mxu0 %v539
        %597 = vmatpush.bf16.msra.mxu0 %v536
        %598 = vmatpush.bf16.msra.mxu0 %v533
        %599 = vmatpush.bf16.msra.mxu0 %v530
        %600 = vmatpush.bf16.msra.mxu0 %v527
        %601 = vmatpush.bf16.msra.mxu0 %v524
        %602 = vmatpush.bf16.msra.mxu0 %v521
        %603 = vmatmul.bf16.gmra.mxu0 %v406
        %v604 = vpop.f32.mrf.mxu0
        %v605 = vadd.f32 0.0, %v604
        %v606 = vpop.f32.mrf.mxu0
        %v607 = vadd.f32 0.0, %v606
        %608 = vdwg.mxu0
        %v609 = vld [vmem:[%s1] sm:$0xff]
        %v610 = vld [vmem:[%s1 + $0x8] sm:$0xff]
        %v611 = vld [vmem:[%s2] sm:$0xff]
        %v612 = vld [vmem:[%s2 + $0x8] sm:$0xff]
        %v613 = vmul.f32 %v577, %v609
        %v614 = vmul.f32 %v579, %v610
        %615 = vrot.lane.b32.xlu0 %v577, 64
        %v616 = vpop.permute.xlu0 %615
        %617 = vrot.lane.b32.xlu0 %v579, 64
        %v618 = vpop.permute.xlu0 %617
        %v619 = vmul.f32 %v616, %v611
        %v620 = vmul.f32 %v618, %v612
        %v621 = vadd.f32 %v613, %v619
        %v622 = vadd.f32 %v614, %v620
        %v623 = vpack.c.bf16 %v621, %v621
        %v624 = vpack.c.bf16 %v622, %v622
        %v625 = vmul.f32 %v591, %v609
        %v626 = vmul.f32 %v593, %v610
        %627 = vrot.lane.b32.xlu0 %v591, 64
        %v628 = vpop.permute.xlu0 %627
        %629 = vrot.lane.b32.xlu0 %v593, 64
        %v630 = vpop.permute.xlu0 %629
        %v631 = vmul.f32 %v628, %v611
        %v632 = vmul.f32 %v630, %v612
        %v633 = vadd.f32 %v625, %v631
        %v634 = vadd.f32 %v626, %v632
        %v635 = vpack.c.bf16 %v633, %v633
        %v636 = vpack.c.bf16 %v634, %v634
        %v637 = vpack.c.bf16 %v605, %v605
        %v638 = vpack.c.bf16 %v607, %v607
        %v639 = vlaneseq
        %v640 = vshrl.u32 %v639, 7
        %v641 = vadd.s32 %v640, 8
        %v642 = vlaneseq
        %v643 = vand.u32 %v642, 127
        %vm644 = vcmp.gt.s32.totalorder %v643, %v640
        %vm645 = vcmp.gt.s32.totalorder %v643, %v641
        %v646 = vsel %vm644, -1e+30, 0.0
        %v647 = vsel %vm645, -1e+30, 0.0
        %v650 = vunpack.c.l.b16 %v623
        %v651 = vunpack.c.l.b16 %v624
        %v652 = vpack.c.b16 %v651, %v650
        %653 = vrot.lane.b32.xlu0 %v652, 64
        %v654 = vpop.permute.xlu0 %653
        %v657 = vunpack.c.l.b16 %v635
        %v658 = vunpack.c.l.b16 %v636
        %v659 = vpack.c.b16 %v658, %v657
        %660 = vrot.lane.b32.xlu0 %v659, 64
        %v661 = vpop.permute.xlu0 %660
        %vm662 = vcmask 130048
        %v664 = vsel %vm662, %v654, 0
        %v667 = vsel %vm662, %v661, 0
        %669 = vmatpush.bf16.xpose.msra.mxu0 0
        %670 = vmatpush.bf16.xpose.msra.mxu0 0
        %671 = vmatpush.bf16.xpose.msra.mxu0 0
        %672 = vmatpush.bf16.xpose.msra.mxu0 0
        %673 = vmatpush.bf16.xpose.msra.mxu0 0
        %674 = vmatpush.bf16.xpose.msra.mxu0 0
        %675 = vmatpush.bf16.xpose.msra.mxu0 0
        %676 = vmatpush.bf16.xpose.msra.mxu0 %v667
        %677 = vmatmul.bf16.gmra.mxu0 %v664
        %v678 = vpop.f32.mrf.mxu0
        %v679 = vadd.f32 0.0, %v678
        %v680 = vpop.f32.mrf.mxu0
        %v681 = vadd.f32 0.0, %v680
        %682 = vdwg.mxu0
        %v684 = vsel %vm662, %v652, 0
        %v687 = vsel %vm662, %v659, 0
        %689 = vmatpush.bf16.xpose.msra.mxu0 0
        %690 = vmatpush.bf16.xpose.msra.mxu0 0
        %691 = vmatpush.bf16.xpose.msra.mxu0 0
        %692 = vmatpush.bf16.xpose.msra.mxu0 0
        %693 = vmatpush.bf16.xpose.msra.mxu0 0
        %694 = vmatpush.bf16.xpose.msra.mxu0 0
        %695 = vmatpush.bf16.xpose.msra.mxu0 0
        %696 = vmatpush.bf16.xpose.msra.mxu0 %v687
        %697 = vmatmul.bf16.gmra.mxu0 %v684
        %v698 = vpop.f32.mrf.mxu0
        %v699 = vadd.f32 %v679, %v698
        %v700 = vpop.f32.mrf.mxu0
        %v701 = vadd.f32 %v681, %v700
        %702 = vdwg.mxu0
        %v703 = vadd.f32 %v699, %v646
        %v704 = vadd.f32 %v701, %v647
        %v705 = vsel %vm662, %v703, -inf
        %706 = vmax.xlane.f32.xlu0 %v705
        %v707 = vpop.xlane.xlu0 %706
        %v708 = vsel %vm662, %v704, -inf
        %709 = vmax.xlane.f32.xlu0 %v708
        %v710 = vpop.xlane.xlu0 %709
        %v711 = vsub.f32 %v703, %v707
        %v712 = vsub.f32 %v704, %v710
        %v713 = vmul.f32 %v711, 1.442695
        %v714 = vpow.pop %v713
        %v715 = vmul.f32 %v712, 1.442695
        %v716 = vpow.pop %v715
        %v717 = vsel %vm662, %v714, 0.0
        %718 = vadd.xlane.f32.xlu0 %v717
        %v719 = vpop.xlane.xlu0 %718
        %v720 = vsel %vm662, %v716, 0.0
        %721 = vadd.xlane.f32.xlu0 %v720
        %v722 = vpop.xlane.xlu0 %721
        %v723 = vpack.c.bf16 %v716, %v714
        %v726 = vunpack.c.l.b16 %v637
        %v727 = vunpack.c.l.b16 %v638
        %v728 = vpack.c.b16 %v727, %v726
        %v731 = vsel %vm662, %v723, 0
        %733 = vmatpush.bf16.msra.mxu0 0
        %734 = vmatpush.bf16.msra.mxu0 0
        %735 = vmatpush.bf16.msra.mxu0 0
        %736 = vmatpush.bf16.msra.mxu0 0
        %737 = vmatpush.bf16.msra.mxu0 0
        %738 = vmatpush.bf16.msra.mxu0 0
        %739 = vmatpush.bf16.msra.mxu0 0
        %740 = vmatpush.bf16.msra.mxu0 %v728
        %741 = vmatmul.bf16.gmra.mxu0 %v731
        %v742 = vpop.f32.mrf.mxu0
        %v743 = vadd.f32 0.0, %v742
        %v744 = vpop.f32.mrf.mxu0
        %v745 = vadd.f32 0.0, %v744
        %746 = vdwg.mxu0
        %v747 = vrcp.pop %v719
        %v748 = vrcp.pop %v722
        %v749 = vmul.f32 %v743, %v747
        %v750 = vmul.f32 %v745, %v748
        %v751 = vpack.c.bf16 %v749, %v749
        %v752 = vpack.c.bf16 %v750, %v750
        %vm753 = vcmask 257024
        %754 = vst.msk [vmem:[#allocation2] sm:$0xf] %vm753, %v751
        %755 = vst.msk [vmem:[#allocation2 + $0x4] sm:$0xf] %vm753, %v752
        %756 = vrot.lane.b32.xlu0 %v652, 48
        %v757 = vpop.permute.xlu0 %756
        %758 = vrot.lane.b32.xlu0 %v659, 48
        %v759 = vpop.permute.xlu0 %758
        %v761 = vsel %vm662, %v757, 0
        %v764 = vsel %vm662, %v759, 0
        %766 = vmatpush.bf16.xpose.msra.mxu0 0
        %767 = vmatpush.bf16.xpose.msra.mxu0 0
        %768 = vmatpush.bf16.xpose.msra.mxu0 0
        %769 = vmatpush.bf16.xpose.msra.mxu0 0
        %770 = vmatpush.bf16.xpose.msra.mxu0 0
        %771 = vmatpush.bf16.xpose.msra.mxu0 0
        %772 = vmatpush.bf16.xpose.msra.mxu0 0
        %773 = vmatpush.bf16.xpose.msra.mxu0 %v764
        %774 = vmatmul.bf16.gmra.mxu0 %v761
        %v775 = vpop.f32.mrf.mxu0
        %v776 = vadd.f32 0.0, %v775
        %v777 = vpop.f32.mrf.mxu0
        %v778 = vadd.f32 0.0, %v777
        %779 = vdwg.mxu0
        %780 = vrot.lane.b32.xlu0 %v652, 112
        %v781 = vpop.permute.xlu0 %780
        %782 = vrot.lane.b32.xlu0 %v659, 112
        %v783 = vpop.permute.xlu0 %782
        %v785 = vsel %vm662, %v781, 0
        %v788 = vsel %vm662, %v783, 0
        %790 = vmatpush.bf16.xpose.msra.mxu0 0
        %791 = vmatpush.bf16.xpose.msra.mxu0 0
        %792 = vmatpush.bf16.xpose.msra.mxu0 0
        %793 = vmatpush.bf16.xpose.msra.mxu0 0
        %794 = vmatpush.bf16.xpose.msra.mxu0 0
        %795 = vmatpush.bf16.xpose.msra.mxu0 0
        %796 = vmatpush.bf16.xpose.msra.mxu0 0
        %797 = vmatpush.bf16.xpose.msra.mxu0 %v788
        %798 = vmatmul.bf16.gmra.mxu0 %v785
        %v799 = vpop.f32.mrf.mxu0
        %v800 = vadd.f32 %v776, %v799
        %v801 = vpop.f32.mrf.mxu0
        %v802 = vadd.f32 %v778, %v801
        %803 = vdwg.mxu0
        %v804 = vadd.f32 %v800, %v646
        %v805 = vadd.f32 %v802, %v647
        %v806 = vsel %vm662, %v804, -inf
        %807 = vmax.xlane.f32.xlu0 %v806
        %v808 = vpop.xlane.xlu0 %807
        %v809 = vsel %vm662, %v805, -inf
        %810 = vmax.xlane.f32.xlu0 %v809
        %v811 = vpop.xlane.xlu0 %810
        %v812 = vsub.f32 %v804, %v808
        %v813 = vsub.f32 %v805, %v811
        %v814 = vmul.f32 %v812, 1.442695
        %v815 = vpow.pop %v814
        %v816 = vmul.f32 %v813, 1.442695
        %v817 = vpow.pop %v816
        %v818 = vsel %vm662, %v815, 0.0
        %819 = vadd.xlane.f32.xlu0 %v818
        %v820 = vpop.xlane.xlu0 %819
        %v821 = vsel %vm662, %v817, 0.0
        %822 = vadd.xlane.f32.xlu0 %v821
        %v823 = vpop.xlane.xlu0 %822
        %v824 = vpack.c.bf16 %v817, %v815
        %825 = vrot.lane.b32.xlu0 %v728, 96
        %v826 = vpop.permute.xlu0 %825
        %v829 = vsel %vm662, %v824, 0
        %831 = vmatpush.bf16.msra.mxu0 0
        %832 = vmatpush.bf16.msra.mxu0 0
        %833 = vmatpush.bf16.msra.mxu0 0
        %834 = vmatpush.bf16.msra.mxu0 0
        %835 = vmatpush.bf16.msra.mxu0 0
        %836 = vmatpush.bf16.msra.mxu0 0
        %837 = vmatpush.bf16.msra.mxu0 0
        %838 = vmatpush.bf16.msra.mxu0 %v826
        %839 = vmatmul.bf16.gmra.mxu0 %v829
        %v840 = vpop.f32.mrf.mxu0
        %v841 = vadd.f32 0.0, %v840
        %v842 = vpop.f32.mrf.mxu0
        %v843 = vadd.f32 0.0, %v842
        %844 = vdwg.mxu0
        %v845 = vrcp.pop %v820
        %v846 = vrcp.pop %v823
        %v847 = vmul.f32 %v841, %v845
        %v848 = vmul.f32 %v843, %v846
        %v849 = vpack.c.bf16 %v847, %v847
        %v850 = vpack.c.bf16 %v848, %v848
        %853 = vrot.lane.b32.xlu0 %v849, 32
        %v854 = vpop.permute.xlu0 %853
        %855 = vrot.lane.b32.xlu0 %v850, 32
        %v856 = vpop.permute.xlu0 %855
        %vm859 = vcmask 519424
        %860 = vst.msk [vmem:[#allocation2] sm:$0xf] %vm859, %v854
        %861 = vst.msk [vmem:[#allocation2 + $0x4] sm:$0xf] %vm859, %v856
        %862 = vrot.lane.b32.xlu0 %v652, 32
        %v863 = vpop.permute.xlu0 %862
        %864 = vrot.lane.b32.xlu0 %v659, 32
        %v865 = vpop.permute.xlu0 %864
        %v867 = vsel %vm662, %v863, 0
        %v870 = vsel %vm662, %v865, 0
        %872 = vmatpush.bf16.xpose.msra.mxu0 0
        %873 = vmatpush.bf16.xpose.msra.mxu0 0
        %874 = vmatpush.bf16.xpose.msra.mxu0 0
        %875 = vmatpush.bf16.xpose.msra.mxu0 0
        %876 = vmatpush.bf16.xpose.msra.mxu0 0
        %877 = vmatpush.bf16.xpose.msra.mxu0 0
        %878 = vmatpush.bf16.xpose.msra.mxu0 0
        %879 = vmatpush.bf16.xpose.msra.mxu0 %v870
        %880 = vmatmul.bf16.gmra.mxu0 %v867
        %v881 = vpop.f32.mrf.mxu0
        %v882 = vadd.f32 0.0, %v881
        %v883 = vpop.f32.mrf.mxu0
        %v884 = vadd.f32 0.0, %v883
        %885 = vdwg.mxu0
        %886 = vrot.lane.b32.xlu0 %v652, 96
        %v887 = vpop.permute.xlu0 %886
        %888 = vrot.lane.b32.xlu0 %v659, 96
        %v889 = vpop.permute.xlu0 %888
        %v891 = vsel %vm662, %v887, 0
        %v894 = vsel %vm662, %v889, 0
        %896 = vmatpush.bf16.xpose.msra.mxu0 0
        %897 = vmatpush.bf16.xpose.msra.mxu0 0
        %898 = vmatpush.bf16.xpose.msra.mxu0 0
        %899 = vmatpush.bf16.xpose.msra.mxu0 0
        %900 = vmatpush.bf16.xpose.msra.mxu0 0
        %901 = vmatpush.bf16.xpose.msra.mxu0 0
        %902 = vmatpush.bf16.xpose.msra.mxu0 0
        %903 = vmatpush.bf16.xpose.msra.mxu0 %v894
        %904 = vmatmul.bf16.gmra.mxu0 %v891
        %v905 = vpop.f32.mrf.mxu0
        %v906 = vadd.f32 %v882, %v905
        %v907 = vpop.f32.mrf.mxu0
        %v908 = vadd.f32 %v884, %v907
        %909 = vdwg.mxu0
        %v910 = vadd.f32 %v906, %v646
        %v911 = vadd.f32 %v908, %v647
        %v912 = vsel %vm662, %v910, -inf
        %913 = vmax.xlane.f32.xlu0 %v912
        %v914 = vpop.xlane.xlu0 %913
        %v915 = vsel %vm662, %v911, -inf
        %916 = vmax.xlane.f32.xlu0 %v915
        %v917 = vpop.xlane.xlu0 %916
        %v918 = vsub.f32 %v910, %v914
        %v919 = vsub.f32 %v911, %v917
        %v920 = vmul.f32 %v918, 1.442695
        %v921 = vpow.pop %v920
        %v922 = vmul.f32 %v919, 1.442695
        %v923 = vpow.pop %v922
        %v924 = vsel %vm662, %v921, 0.0
        %925 = vadd.xlane.f32.xlu0 %v924
        %v926 = vpop.xlane.xlu0 %925
        %v927 = vsel %vm662, %v923, 0.0
        %928 = vadd.xlane.f32.xlu0 %v927
        %v929 = vpop.xlane.xlu0 %928
        %v930 = vpack.c.bf16 %v923, %v921
        %931 = vrot.lane.b32.xlu0 %v728, 64
        %v932 = vpop.permute.xlu0 %931
        %v935 = vsel %vm662, %v930, 0
        %937 = vmatpush.bf16.msra.mxu0 0
        %938 = vmatpush.bf16.msra.mxu0 0
        %939 = vmatpush.bf16.msra.mxu0 0
        %940 = vmatpush.bf16.msra.mxu0 0
        %941 = vmatpush.bf16.msra.mxu0 0
        %942 = vmatpush.bf16.msra.mxu0 0
        %943 = vmatpush.bf16.msra.mxu0 0
        %944 = vmatpush.bf16.msra.mxu0 %v932
        %945 = vmatmul.bf16.gmra.mxu0 %v935
        %v946 = vpop.f32.mrf.mxu0
        %v947 = vadd.f32 0.0, %v946
        %v948 = vpop.f32.mrf.mxu0
        %v949 = vadd.f32 0.0, %v948
        %950 = vdwg.mxu0
        %v951 = vrcp.pop %v926
        %v952 = vrcp.pop %v929
        %v953 = vmul.f32 %v947, %v951
        %v954 = vmul.f32 %v949, %v952
        %v955 = vpack.c.bf16 %v953, %v953
        %v956 = vpack.c.bf16 %v954, %v954
        %959 = vrot.lane.b32.xlu0 %v955, 64
        %v960 = vpop.permute.xlu0 %959
        %961 = vrot.lane.b32.xlu0 %v956, 64
        %v962 = vpop.permute.xlu0 %961
        %vm965 = vcmask 781824
        %966 = vst.msk [vmem:[#allocation2] sm:$0xf] %vm965, %v960
        %967 = vst.msk [vmem:[#allocation2 + $0x4] sm:$0xf] %vm965, %v962
        %968 = vrot.lane.b32.xlu0 %v652, 16
        %v969 = vpop.permute.xlu0 %968
        %970 = vrot.lane.b32.xlu0 %v659, 16
        %v971 = vpop.permute.xlu0 %970
        %v973 = vsel %vm662, %v969, 0
        %v976 = vsel %vm662, %v971, 0
        %978 = vmatpush.bf16.xpose.msra.mxu0 0
        %979 = vmatpush.bf16.xpose.msra.mxu0 0
        %980 = vmatpush.bf16.xpose.msra.mxu0 0
        %981 = vmatpush.bf16.xpose.msra.mxu0 0
        %982 = vmatpush.bf16.xpose.msra.mxu0 0
        %983 = vmatpush.bf16.xpose.msra.mxu0 0
        %984 = vmatpush.bf16.xpose.msra.mxu0 0
        %985 = vmatpush.bf16.xpose.msra.mxu0 %v976
        %986 = vmatmul.bf16.gmra.mxu0 %v973
        %v987 = vpop.f32.mrf.mxu0
        %v988 = vadd.f32 0.0, %v987
        %v989 = vpop.f32.mrf.mxu0
        %v990 = vadd.f32 0.0, %v989
        %991 = vdwg.mxu0
        %992 = vrot.lane.b32.xlu0 %v652, 80
        %v993 = vpop.permute.xlu0 %992
        %994 = vrot.lane.b32.xlu0 %v659, 80
        %v995 = vpop.permute.xlu0 %994
        %v997 = vsel %vm662, %v993, 0
        %v1000 = vsel %vm662, %v995, 0
        %1002 = vmatpush.bf16.xpose.msra.mxu0 0
        %1003 = vmatpush.bf16.xpose.msra.mxu0 0
        %1004 = vmatpush.bf16.xpose.msra.mxu0 0
        %1005 = vmatpush.bf16.xpose.msra.mxu0 0
        %1006 = vmatpush.bf16.xpose.msra.mxu0 0
        %1007 = vmatpush.bf16.xpose.msra.mxu0 0
        %1008 = vmatpush.bf16.xpose.msra.mxu0 0
        %1009 = vmatpush.bf16.xpose.msra.mxu0 %v1000
        %1010 = vmatmul.bf16.gmra.mxu0 %v997
        %v1011 = vpop.f32.mrf.mxu0
        %v1012 = vadd.f32 %v988, %v1011
        %v1013 = vpop.f32.mrf.mxu0
        %v1014 = vadd.f32 %v990, %v1013
        %1015 = vdwg.mxu0
        %v1016 = vadd.f32 %v1012, %v646
        %v1017 = vadd.f32 %v1014, %v647
        %v1018 = vsel %vm662, %v1016, -inf
        %1019 = vmax.xlane.f32.xlu0 %v1018
        %v1020 = vpop.xlane.xlu0 %1019
        %v1021 = vsel %vm662, %v1017, -inf
        %1022 = vmax.xlane.f32.xlu0 %v1021
        %v1023 = vpop.xlane.xlu0 %1022
        %v1024 = vsub.f32 %v1016, %v1020
        %v1025 = vsub.f32 %v1017, %v1023
        %v1026 = vmul.f32 %v1024, 1.442695
        %v1027 = vpow.pop %v1026
        %v1028 = vmul.f32 %v1025, 1.442695
        %v1029 = vpow.pop %v1028
        %v1030 = vsel %vm662, %v1027, 0.0
        %1031 = vadd.xlane.f32.xlu0 %v1030
        %v1032 = vpop.xlane.xlu0 %1031
        %v1033 = vsel %vm662, %v1029, 0.0
        %1034 = vadd.xlane.f32.xlu0 %v1033
        %v1035 = vpop.xlane.xlu0 %1034
        %v1036 = vpack.c.bf16 %v1029, %v1027
        %1037 = vrot.lane.b32.xlu0 %v728, 32
        %v1038 = vpop.permute.xlu0 %1037
        %v1041 = vsel %vm662, %v1036, 0
        %1043 = vmatpush.bf16.msra.mxu0 0
        %1044 = vmatpush.bf16.msra.mxu0 0
        %1045 = vmatpush.bf16.msra.mxu0 0
        %1046 = vmatpush.bf16.msra.mxu0 0
        %1047 = vmatpush.bf16.msra.mxu0 0
        %1048 = vmatpush.bf16.msra.mxu0 0
        %1049 = vmatpush.bf16.msra.mxu0 0
        %1050 = vmatpush.bf16.msra.mxu0 %v1038
        %1051 = vmatmul.bf16.gmra.mxu0 %v1041
        %v1052 = vpop.f32.mrf.mxu0
        %v1053 = vadd.f32 0.0, %v1052
        %v1054 = vpop.f32.mrf.mxu0
        %v1055 = vadd.f32 0.0, %v1054
        %1056 = vdwg.mxu0
        %v1057 = vrcp.pop %v1032
        %v1058 = vrcp.pop %v1035
        %v1059 = vmul.f32 %v1053, %v1057
        %v1060 = vmul.f32 %v1055, %v1058
        %v1061 = vpack.c.bf16 %v1059, %v1059
        %v1062 = vpack.c.bf16 %v1060, %v1060
        %1065 = vrot.lane.b32.xlu0 %v1061, 96
        %v1066 = vpop.permute.xlu0 %1065
        %1067 = vrot.lane.b32.xlu0 %v1062, 96
        %v1068 = vpop.permute.xlu0 %1067
        %vm1071 = vcmask 1044224
        %1072 = vst.msk [vmem:[#allocation2] sm:$0xf] %vm1071, %v1066
        %1073 = vst.msk [vmem:[#allocation2 + $0x4] sm:$0xf] %vm1071, %v1068
        %v1074 = vld [vmem:[#allocation2] sm:$0xf]
        %v1075 = vld [vmem:[#allocation2 + $0x4] sm:$0xf]
        %v1076 = vld [vmem:[%s6] sm:$0xf]
        %v1077 = vld [vmem:[%s6 + $0x4] sm:$0xf]
        %v1078 = vld [vmem:[%s6 + $0x8] sm:$0xf]
        %v1079 = vld [vmem:[%s6 + $0xc] sm:$0xf]
        %v1080 = vld [vmem:[%s6 + $0x10] sm:$0xf]
        %v1081 = vld [vmem:[%s6 + $0x14] sm:$0xf]
        %v1082 = vld [vmem:[%s6 + $0x18] sm:$0xf]
        %v1083 = vld [vmem:[%s6 + $0x1c] sm:$0xf]
        %v1084 = vld [vmem:[%s6 + $0x20] sm:$0xf]
        %v1085 = vld [vmem:[%s6 + $0x24] sm:$0xf]
        %v1086 = vld [vmem:[%s6 + $0x28] sm:$0xf]
        %v1087 = vld [vmem:[%s6 + $0x2c] sm:$0xf]
        %v1088 = vld [vmem:[%s6 + $0x30] sm:$0xf]
        %v1089 = vld [vmem:[%s6 + $0x34] sm:$0xf]
        %v1090 = vld [vmem:[%s6 + $0x38] sm:$0xf]
        %v1091 = vld [vmem:[%s6 + $0x3c] sm:$0xf]
        %v1094 = vunpack.c.l.b16 %v1074
        %v1095 = vunpack.c.l.b16 %v1075
        %v1096 = vpack.c.b16 %v1095, %v1094
        %v1114 = vunpack.c.l.b16 %v1076
        %v1115 = vunpack.c.l.b16 %v1077
        %v1116 = vunpack.c.l.b16 %v1078
        %v1117 = vunpack.c.l.b16 %v1079
        %v1118 = vunpack.c.l.b16 %v1080
        %v1119 = vunpack.c.l.b16 %v1081
        %v1120 = vunpack.c.l.b16 %v1082
        %v1121 = vunpack.c.l.b16 %v1083
        %v1122 = vunpack.c.l.b16 %v1084
        %v1123 = vunpack.c.l.b16 %v1085
        %v1124 = vunpack.c.l.b16 %v1086
        %v1125 = vunpack.c.l.b16 %v1087
        %v1126 = vunpack.c.l.b16 %v1088
        %v1127 = vunpack.c.l.b16 %v1089
        %v1128 = vunpack.c.l.b16 %v1090
        %v1129 = vunpack.c.l.b16 %v1091
        %v1130 = vpack.c.b16 %v1115, %v1114
        %v1131 = vpack.c.b16 %v1117, %v1116
        %v1132 = vpack.c.b16 %v1119, %v1118
        %v1133 = vpack.c.b16 %v1121, %v1120
        %v1134 = vpack.c.b16 %v1123, %v1122
        %v1135 = vpack.c.b16 %v1125, %v1124
        %v1136 = vpack.c.b16 %v1127, %v1126
        %v1137 = vpack.c.b16 %v1129, %v1128
        %1146 = vmatpush.bf16.msra.mxu0 %v1137
        %1147 = vmatpush.bf16.msra.mxu0 %v1136
        %1148 = vmatpush.bf16.msra.mxu0 %v1135
        %1149 = vmatpush.bf16.msra.mxu0 %v1134
        %1150 = vmatpush.bf16.msra.mxu0 %v1133
        %1151 = vmatpush.bf16.msra.mxu0 %v1132
        %1152 = vmatpush.bf16.msra.mxu0 %v1131
        %1153 = vmatpush.bf16.msra.mxu0 %v1130
        %1154 = vmatmul.bf16.gmra.mxu0 %v1096
        %v1155 = vpop.f32.mrf.mxu0
        %v1156 = vadd.f32 0.0, %v1155
        %v1157 = vpop.f32.mrf.mxu0
        %v1158 = vadd.f32 0.0, %v1157
        %1159 = vdwg.mxu0
        %v1160 = vadd.f32 %v359, %v1156
        %v1161 = vadd.f32 %v360, %v1158
        %v1162 = vld [vmem:[%s4] sm:$0x1]
        %v1163 = vmul.f32 %v1160, %v1160
        %v1164 = vmul.f32 %v1161, %v1161
        %1165 = vadd.xlane.f32.xlu0 %v1163
        %v1166 = vpop.xlane.xlu0 %1165
        %1167 = vadd.xlane.f32.xlu0 %v1164
        %v1168 = vpop.xlane.xlu0 %1167
        %v1169 = vmul.f32 %v1166, %v374
        %v1170 = vmul.f32 %v1168, %v374
        %v1171 = vadd.f32 %v1169, 1e-05
        %v1172 = vadd.f32 %v1170, 1e-05
        %v1173 = vrsqrt.pop %v1171
        %v1174 = vmul.f32 %v1173, %v1171
        %v1175 = vmul.f32 %v1174, %v1173
        %v1176 = vmul.f32 0.5, %v1175
        %v1177 = vsub.f32 1.5, %v1176
        %v1178 = vmul.f32 %v1173, %v1177
        %vm1179 = vweird.f32 %v1171
        %vm1180 = vweird.f32 %v1173
        %vm1181 = vmor %vm1179, %vm1180
        %v1182 = vsel %vm1181, %v1173, %v1178
        %v1183 = vrsqrt.pop %v1172
        %v1184 = vmul.f32 %v1183, %v1172
        %v1185 = vmul.f32 %v1184, %v1183
        %v1186 = vmul.f32 0.5, %v1185
        %v1187 = vsub.f32 1.5, %v1186
        %v1188 = vmul.f32 %v1183, %v1187
        %vm1189 = vweird.f32 %v1172
        %vm1190 = vweird.f32 %v1183
        %vm1191 = vmor %vm1189, %vm1190
        %v1192 = vsel %vm1191, %v1183, %v1188
        %v1193 = vmul.f32 %v1160, %v1182
        %v1194 = vmul.f32 %v1161, %v1192
        %v1196 = vperm.slane %v1162, 0
        %v1198 = vmul.f32 %v1193, %v1196
        %v1199 = vmul.f32 %v1194, %v1196
        %v1200 = vpack.c.bf16 %v1199, %v1198
        %v1201 = vld [vmem:[%s7] sm:$0xff]
        %v1202 = vld [vmem:[%s7 + $0x8] sm:$0xf]
        %v1203 = vld [vmem:[%s7 + $0xc] sm:$0xff]
        %v1204 = vld [vmem:[%s7 + $0x14] sm:$0xf]
        %v1205 = vld [vmem:[%s7 + $0x18] sm:$0xff]
        %v1206 = vld [vmem:[%s7 + $0x20] sm:$0xf]
        %v1207 = vld [vmem:[%s7 + $0x24] sm:$0xff]
        %v1208 = vld [vmem:[%s7 + $0x2c] sm:$0xf]
        %v1209 = vld [vmem:[%s7 + $0x30] sm:$0xff]
        %v1210 = vld [vmem:[%s7 + $0x38] sm:$0xf]
        %v1211 = vld [vmem:[%s7 + $0x3c] sm:$0xff]
        %v1212 = vld [vmem:[%s7 + $0x44] sm:$0xf]
        %v1213 = vld [vmem:[%s7 + $0x48] sm:$0xff]
        %v1214 = vld [vmem:[%s7 + $0x50] sm:$0xf]
        %v1215 = vld [vmem:[%s7 + $0x54] sm:$0xff]
        %v1216 = vld [vmem:[%s7 + $0x5c] sm:$0xf]
        %v1217 = vld [vmem:[%s7 + $0x60] sm:$0xff]
        %v1218 = vld [vmem:[%s7 + $0x68] sm:$0xf]
        %v1219 = vld [vmem:[%s7 + $0x6c] sm:$0xff]
        %v1220 = vld [vmem:[%s7 + $0x74] sm:$0xf]
        %v1221 = vld [vmem:[%s7 + $0x78] sm:$0xff]
        %v1222 = vld [vmem:[%s7 + $0x80] sm:$0xf]
        %v1223 = vld [vmem:[%s7 + $0x84] sm:$0xff]
        %v1224 = vld [vmem:[%s7 + $0x8c] sm:$0xf]
        %v1225 = vld [vmem:[%s7 + $0x90] sm:$0xff]
        %v1226 = vld [vmem:[%s7 + $0x98] sm:$0xf]
        %v1227 = vld [vmem:[%s7 + $0x9c] sm:$0xff]
        %v1228 = vld [vmem:[%s7 + $0xa4] sm:$0xf]
        %v1229 = vld [vmem:[%s7 + $0xa8] sm:$0xff]
        %v1230 = vld [vmem:[%s7 + $0xb0] sm:$0xf]
        %v1231 = vld [vmem:[%s7 + $0xb4] sm:$0xff]
        %v1232 = vld [vmem:[%s7 + $0xbc] sm:$0xf]
        %v1265 = vunpack.c.l.b16 %v1201
        %v1266 = vunpack.c.h.b16 %v1201
        %v1267 = vunpack.c.l.b16 %v1202
        %v1268 = vunpack.c.l.b16 %v1203
        %v1269 = vunpack.c.h.b16 %v1203
        %v1270 = vunpack.c.l.b16 %v1204
        %v1271 = vunpack.c.l.b16 %v1205
        %v1272 = vunpack.c.h.b16 %v1205
        %v1273 = vunpack.c.l.b16 %v1206
        %v1274 = vunpack.c.l.b16 %v1207
        %v1275 = vunpack.c.h.b16 %v1207
        %v1276 = vunpack.c.l.b16 %v1208
        %v1277 = vunpack.c.l.b16 %v1209
        %v1278 = vunpack.c.h.b16 %v1209
        %v1279 = vunpack.c.l.b16 %v1210
        %v1280 = vunpack.c.l.b16 %v1211
        %v1281 = vunpack.c.h.b16 %v1211
        %v1282 = vunpack.c.l.b16 %v1212
        %v1283 = vunpack.c.l.b16 %v1213
        %v1284 = vunpack.c.h.b16 %v1213
        %v1285 = vunpack.c.l.b16 %v1214
        %v1286 = vunpack.c.l.b16 %v1215
        %v1287 = vunpack.c.h.b16 %v1215
        %v1288 = vunpack.c.l.b16 %v1216
        %v1289 = vunpack.c.l.b16 %v1217
        %v1290 = vunpack.c.h.b16 %v1217
        %v1291 = vunpack.c.l.b16 %v1218
        %v1292 = vunpack.c.l.b16 %v1219
        %v1293 = vunpack.c.h.b16 %v1219
        %v1294 = vunpack.c.l.b16 %v1220
        %v1295 = vunpack.c.l.b16 %v1221
        %v1296 = vunpack.c.h.b16 %v1221
        %v1297 = vunpack.c.l.b16 %v1222
        %v1298 = vunpack.c.l.b16 %v1223
        %v1299 = vunpack.c.h.b16 %v1223
        %v1300 = vunpack.c.l.b16 %v1224
        %v1301 = vunpack.c.l.b16 %v1225
        %v1302 = vunpack.c.h.b16 %v1225
        %v1303 = vunpack.c.l.b16 %v1226
        %v1304 = vunpack.c.l.b16 %v1227
        %v1305 = vunpack.c.h.b16 %v1227
        %v1306 = vunpack.c.l.b16 %v1228
        %v1307 = vunpack.c.l.b16 %v1229
        %v1308 = vunpack.c.h.b16 %v1229
        %v1309 = vunpack.c.l.b16 %v1230
        %v1310 = vunpack.c.l.b16 %v1231
        %v1311 = vunpack.c.h.b16 %v1231
        %v1312 = vunpack.c.l.b16 %v1232
        %v1313 = vpack.c.b16 %v1268, %v1265
        %v1314 = vpack.c.b16 %v1269, %v1266
        %v1315 = vpack.c.b16 %v1270, %v1267
        %v1316 = vpack.c.b16 %v1274, %v1271
        %v1317 = vpack.c.b16 %v1275, %v1272
        %v1318 = vpack.c.b16 %v1276, %v1273
        %v1319 = vpack.c.b16 %v1280, %v1277
        %v1320 = vpack.c.b16 %v1281, %v1278
        %v1321 = vpack.c.b16 %v1282, %v1279
        %v1322 = vpack.c.b16 %v1286, %v1283
        %v1323 = vpack.c.b16 %v1287, %v1284
        %v1324 = vpack.c.b16 %v1288, %v1285
        %v1325 = vpack.c.b16 %v1292, %v1289
        %v1326 = vpack.c.b16 %v1293, %v1290
        %v1327 = vpack.c.b16 %v1294, %v1291
        %v1328 = vpack.c.b16 %v1298, %v1295
        %v1329 = vpack.c.b16 %v1299, %v1296
        %v1330 = vpack.c.b16 %v1300, %v1297
        %v1331 = vpack.c.b16 %v1304, %v1301
        %v1332 = vpack.c.b16 %v1305, %v1302
        %v1333 = vpack.c.b16 %v1306, %v1303
        %v1334 = vpack.c.b16 %v1310, %v1307
        %v1335 = vpack.c.b16 %v1311, %v1308
        %v1336 = vpack.c.b16 %v1312, %v1309
        %1361 = vmatpush.bf16.msra.mxu0 %v1334
        %1362 = vmatpush.bf16.msra.mxu0 %v1331
        %1363 = vmatpush.bf16.msra.mxu0 %v1328
        %1364 = vmatpush.bf16.msra.mxu0 %v1325
        %1365 = vmatpush.bf16.msra.mxu0 %v1322
        %1366 = vmatpush.bf16.msra.mxu0 %v1319
        %1367 = vmatpush.bf16.msra.mxu0 %v1316
        %1368 = vmatpush.bf16.msra.mxu0 %v1313
        %1369 = vmatmul.bf16.gmra.mxu0 %v1200
        %v1370 = vpop.f32.mrf.mxu0
        %v1371 = vadd.f32 0.0, %v1370
        %v1372 = vpop.f32.mrf.mxu0
        %v1373 = vadd.f32 0.0, %v1372
        %1374 = vdwg.mxu0
        %1375 = vmatpush.bf16.msra.mxu0 %v1335
        %1376 = vmatpush.bf16.msra.mxu0 %v1332
        %1377 = vmatpush.bf16.msra.mxu0 %v1329
        %1378 = vmatpush.bf16.msra.mxu0 %v1326
        %1379 = vmatpush.bf16.msra.mxu0 %v1323
        %1380 = vmatpush.bf16.msra.mxu0 %v1320
        %1381 = vmatpush.bf16.msra.mxu0 %v1317
        %1382 = vmatpush.bf16.msra.mxu0 %v1314
        %1383 = vmatmul.bf16.gmra.mxu0 %v1200
        %v1384 = vpop.f32.mrf.mxu0
        %v1385 = vadd.f32 0.0, %v1384
        %v1386 = vpop.f32.mrf.mxu0
        %v1387 = vadd.f32 0.0, %v1386
        %1388 = vdwg.mxu0
        %1389 = vmatpush.bf16.msra.mxu0 %v1336
        %1390 = vmatpush.bf16.msra.mxu0 %v1333
        %1391 = vmatpush.bf16.msra.mxu0 %v1330
        %1392 = vmatpush.bf16.msra.mxu0 %v1327
        %1393 = vmatpush.bf16.msra.mxu0 %v1324
        %1394 = vmatpush.bf16.msra.mxu0 %v1321
        %1395 = vmatpush.bf16.msra.mxu0 %v1318
        %1396 = vmatpush.bf16.msra.mxu0 %v1315
        %1397 = vmatmul.bf16.gmra.mxu0 %v1200
        %v1398 = vpop.f32.mrf.mxu0
        %v1399 = vadd.f32 0.0, %v1398
        %v1400 = vpop.f32.mrf.mxu0
        %v1401 = vadd.f32 0.0, %v1400
        %1402 = vdwg.mxu0
        %v1403 = vld [vmem:[%s8] sm:$0xff]
        %v1404 = vld [vmem:[%s8 + $0x8] sm:$0xf]
        %v1405 = vld [vmem:[%s8 + $0xc] sm:$0xff]
        %v1406 = vld [vmem:[%s8 + $0x14] sm:$0xf]
        %v1407 = vld [vmem:[%s8 + $0x18] sm:$0xff]
        %v1408 = vld [vmem:[%s8 + $0x20] sm:$0xf]
        %v1409 = vld [vmem:[%s8 + $0x24] sm:$0xff]
        %v1410 = vld [vmem:[%s8 + $0x2c] sm:$0xf]
        %v1411 = vld [vmem:[%s8 + $0x30] sm:$0xff]
        %v1412 = vld [vmem:[%s8 + $0x38] sm:$0xf]
        %v1413 = vld [vmem:[%s8 + $0x3c] sm:$0xff]
        %v1414 = vld [vmem:[%s8 + $0x44] sm:$0xf]
        %v1415 = vld [vmem:[%s8 + $0x48] sm:$0xff]
        %v1416 = vld [vmem:[%s8 + $0x50] sm:$0xf]
        %v1417 = vld [vmem:[%s8 + $0x54] sm:$0xff]
        %v1418 = vld [vmem:[%s8 + $0x5c] sm:$0xf]
        %v1419 = vld [vmem:[%s8 + $0x60] sm:$0xff]
        %v1420 = vld [vmem:[%s8 + $0x68] sm:$0xf]
        %v1421 = vld [vmem:[%s8 + $0x6c] sm:$0xff]
        %v1422 = vld [vmem:[%s8 + $0x74] sm:$0xf]
        %v1423 = vld [vmem:[%s8 + $0x78] sm:$0xff]
        %v1424 = vld [vmem:[%s8 + $0x80] sm:$0xf]
        %v1425 = vld [vmem:[%s8 + $0x84] sm:$0xff]
        %v1426 = vld [vmem:[%s8 + $0x8c] sm:$0xf]
        %v1427 = vld [vmem:[%s8 + $0x90] sm:$0xff]
        %v1428 = vld [vmem:[%s8 + $0x98] sm:$0xf]
        %v1429 = vld [vmem:[%s8 + $0x9c] sm:$0xff]
        %v1430 = vld [vmem:[%s8 + $0xa4] sm:$0xf]
        %v1431 = vld [vmem:[%s8 + $0xa8] sm:$0xff]
        %v1432 = vld [vmem:[%s8 + $0xb0] sm:$0xf]
        %v1433 = vld [vmem:[%s8 + $0xb4] sm:$0xff]
        %v1434 = vld [vmem:[%s8 + $0xbc] sm:$0xf]
        %v1467 = vunpack.c.l.b16 %v1403
        %v1468 = vunpack.c.h.b16 %v1403
        %v1469 = vunpack.c.l.b16 %v1404
        %v1470 = vunpack.c.l.b16 %v1405
        %v1471 = vunpack.c.h.b16 %v1405
        %v1472 = vunpack.c.l.b16 %v1406
        %v1473 = vunpack.c.l.b16 %v1407
        %v1474 = vunpack.c.h.b16 %v1407
        %v1475 = vunpack.c.l.b16 %v1408
        %v1476 = vunpack.c.l.b16 %v1409
        %v1477 = vunpack.c.h.b16 %v1409
        %v1478 = vunpack.c.l.b16 %v1410
        %v1479 = vunpack.c.l.b16 %v1411
        %v1480 = vunpack.c.h.b16 %v1411
        %v1481 = vunpack.c.l.b16 %v1412
        %v1482 = vunpack.c.l.b16 %v1413
        %v1483 = vunpack.c.h.b16 %v1413
        %v1484 = vunpack.c.l.b16 %v1414
        %v1485 = vunpack.c.l.b16 %v1415
        %v1486 = vunpack.c.h.b16 %v1415
        %v1487 = vunpack.c.l.b16 %v1416
        %v1488 = vunpack.c.l.b16 %v1417
        %v1489 = vunpack.c.h.b16 %v1417
        %v1490 = vunpack.c.l.b16 %v1418
        %v1491 = vunpack.c.l.b16 %v1419
        %v1492 = vunpack.c.h.b16 %v1419
        %v1493 = vunpack.c.l.b16 %v1420
        %v1494 = vunpack.c.l.b16 %v1421
        %v1495 = vunpack.c.h.b16 %v1421
        %v1496 = vunpack.c.l.b16 %v1422
        %v1497 = vunpack.c.l.b16 %v1423
        %v1498 = vunpack.c.h.b16 %v1423
        %v1499 = vunpack.c.l.b16 %v1424
        %v1500 = vunpack.c.l.b16 %v1425
        %v1501 = vunpack.c.h.b16 %v1425
        %v1502 = vunpack.c.l.b16 %v1426
        %v1503 = vunpack.c.l.b16 %v1427
        %v1504 = vunpack.c.h.b16 %v1427
        %v1505 = vunpack.c.l.b16 %v1428
        %v1506 = vunpack.c.l.b16 %v1429
        %v1507 = vunpack.c.h.b16 %v1429
        %v1508 = vunpack.c.l.b16 %v1430
        %v1509 = vunpack.c.l.b16 %v1431
        %v1510 = vunpack.c.h.b16 %v1431
        %v1511 = vunpack.c.l.b16 %v1432
        %v1512 = vunpack.c.l.b16 %v1433
        %v1513 = vunpack.c.h.b16 %v1433
        %v1514 = vunpack.c.l.b16 %v1434
        %v1515 = vpack.c.b16 %v1470, %v1467
        %v1516 = vpack.c.b16 %v1471, %v1468
        %v1517 = vpack.c.b16 %v1472, %v1469
        %v1518 = vpack.c.b16 %v1476, %v1473
        %v1519 = vpack.c.b16 %v1477, %v1474
        %v1520 = vpack.c.b16 %v1478, %v1475
        %v1521 = vpack.c.b16 %v1482, %v1479
        %v1522 = vpack.c.b16 %v1483, %v1480
        %v1523 = vpack.c.b16 %v1484, %v1481
        %v1524 = vpack.c.b16 %v1488, %v1485
        %v1525 = vpack.c.b16 %v1489, %v1486
        %v1526 = vpack.c.b16 %v1490, %v1487
        %v1527 = vpack.c.b16 %v1494, %v1491
        %v1528 = vpack.c.b16 %v1495, %v1492
        %v1529 = vpack.c.b16 %v1496, %v1493
        %v1530 = vpack.c.b16 %v1500, %v1497
        %v1531 = vpack.c.b16 %v1501, %v1498
        %v1532 = vpack.c.b16 %v1502, %v1499
        %v1533 = vpack.c.b16 %v1506, %v1503
        %v1534 = vpack.c.b16 %v1507, %v1504
        %v1535 = vpack.c.b16 %v1508, %v1505
        %v1536 = vpack.c.b16 %v1512, %v1509
        %v1537 = vpack.c.b16 %v1513, %v1510
        %v1538 = vpack.c.b16 %v1514, %v1511
        %1563 = vmatpush.bf16.msra.mxu0 %v1536
        %1564 = vmatpush.bf16.msra.mxu0 %v1533
        %1565 = vmatpush.bf16.msra.mxu0 %v1530
        %1566 = vmatpush.bf16.msra.mxu0 %v1527
        %1567 = vmatpush.bf16.msra.mxu0 %v1524
        %1568 = vmatpush.bf16.msra.mxu0 %v1521
        %1569 = vmatpush.bf16.msra.mxu0 %v1518
        %1570 = vmatpush.bf16.msra.mxu0 %v1515
        %1571 = vmatmul.bf16.gmra.mxu0 %v1200
        %v1572 = vpop.f32.mrf.mxu0
        %v1573 = vadd.f32 0.0, %v1572
        %v1574 = vpop.f32.mrf.mxu0
        %v1575 = vadd.f32 0.0, %v1574
        %1576 = vdwg.mxu0
        %1577 = vmatpush.bf16.msra.mxu0 %v1537
        %1578 = vmatpush.bf16.msra.mxu0 %v1534
        %1579 = vmatpush.bf16.msra.mxu0 %v1531
        %1580 = vmatpush.bf16.msra.mxu0 %v1528
        %1581 = vmatpush.bf16.msra.mxu0 %v1525
        %1582 = vmatpush.bf16.msra.mxu0 %v1522
        %1583 = vmatpush.bf16.msra.mxu0 %v1519
        %1584 = vmatpush.bf16.msra.mxu0 %v1516
        %1585 = vmatmul.bf16.gmra.mxu0 %v1200
        %v1586 = vpop.f32.mrf.mxu0
        %v1587 = vadd.f32 0.0, %v1586
        %v1588 = vpop.f32.mrf.mxu0
        %v1589 = vadd.f32 0.0, %v1588
        %1590 = vdwg.mxu0
        %1591 = vmatpush.bf16.msra.mxu0 %v1538
        %1592 = vmatpush.bf16.msra.mxu0 %v1535
        %1593 = vmatpush.bf16.msra.mxu0 %v1532
        %1594 = vmatpush.bf16.msra.mxu0 %v1529
        %1595 = vmatpush.bf16.msra.mxu0 %v1526
        %1596 = vmatpush.bf16.msra.mxu0 %v1523
        %1597 = vmatpush.bf16.msra.mxu0 %v1520
        %1598 = vmatpush.bf16.msra.mxu0 %v1517
        %1599 = vmatmul.bf16.gmra.mxu0 %v1200
        %v1600 = vpop.f32.mrf.mxu0
        %v1601 = vadd.f32 0.0, %v1600
        %v1602 = vpop.f32.mrf.mxu0
        %v1603 = vadd.f32 0.0, %v1602
        %1604 = vdwg.mxu0
        %v1605 = vxor.u32 %v1371, 2147483648
        %v1606 = vxor.u32 %v1385, 2147483648
        %v1607 = vxor.u32 %v1399, 2147483648
        %v1608 = vxor.u32 %v1373, 2147483648
        %v1609 = vxor.u32 %v1387, 2147483648
        %v1610 = vxor.u32 %v1401, 2147483648
        %v1611 = vmul.f32 %v1605, 1.442695
        %v1612 = vpow.pop %v1611
        %v1613 = vmul.f32 %v1606, 1.442695
        %v1614 = vpow.pop %v1613
        %v1615 = vmul.f32 %v1607, 1.442695
        %v1616 = vpow.pop %v1615
        %v1617 = vmul.f32 %v1608, 1.442695
        %v1618 = vpow.pop %v1617
        %v1619 = vmul.f32 %v1609, 1.442695
        %v1620 = vpow.pop %v1619
        %v1621 = vmul.f32 %v1610, 1.442695
        %v1622 = vpow.pop %v1621
        %v1623 = vadd.f32 %v1612, 1.0
        %v1624 = vadd.f32 %v1614, 1.0
        %v1625 = vadd.f32 %v1616, 1.0
        %v1626 = vadd.f32 %v1618, 1.0
        %v1627 = vadd.f32 %v1620, 1.0
        %v1628 = vadd.f32 %v1622, 1.0
        %v1629 = vrcp.pop %v1623
        %v1630 = vmul.f32 %v1623, %v1629
        %v1631 = vsub.f32 1.0, %v1630
        %v1632 = vmul.f32 %v1629, %v1631
        %v1633 = vadd.f32 %v1629, %v1632
        %vm1634 = vweird.f32 %v1623
        %vm1635 = vweird.f32 %v1629
        %vm1636 = vmor %vm1634, %vm1635
        %v1637 = vsel %vm1636, %v1629, %v1633
        %v1638 = vand.u32 2147483647, %v1623
        %vm1639 = vcmp.eq.f32.partialorder %v1638, 8.507059e+37
        %v1640 = vand.u32 %v1623, 2147483648
        %v1641 = vor.u32 1.1754944e-38, %v1640
        %v1642 = vsel %vm1639, %v1641, %v1637
        %v1643 = vmul.f32 1.0, %v1642
        %v1644 = vrcp.pop %v1624
        %v1645 = vmul.f32 %v1624, %v1644
        %v1646 = vsub.f32 1.0, %v1645
        %v1647 = vmul.f32 %v1644, %v1646
        %v1648 = vadd.f32 %v1644, %v1647
        %vm1649 = vweird.f32 %v1624
        %vm1650 = vweird.f32 %v1644
        %vm1651 = vmor %vm1649, %vm1650
        %v1652 = vsel %vm1651, %v1644, %v1648
        %v1653 = vand.u32 2147483647, %v1624
        %vm1654 = vcmp.eq.f32.partialorder %v1653, 8.507059e+37
        %v1655 = vand.u32 %v1624, 2147483648
        %v1656 = vor.u32 1.1754944e-38, %v1655
        %v1657 = vsel %vm1654, %v1656, %v1652
        %v1658 = vmul.f32 1.0, %v1657
        %v1659 = vrcp.pop %v1625
        %v1660 = vmul.f32 %v1625, %v1659
        %v1661 = vsub.f32 1.0, %v1660
        %v1662 = vmul.f32 %v1659, %v1661
        %v1663 = vadd.f32 %v1659, %v1662
        %vm1664 = vweird.f32 %v1625
        %vm1665 = vweird.f32 %v1659
        %vm1666 = vmor %vm1664, %vm1665
        %v1667 = vsel %vm1666, %v1659, %v1663
        %v1668 = vand.u32 2147483647, %v1625
        %vm1669 = vcmp.eq.f32.partialorder %v1668, 8.507059e+37
        %v1670 = vand.u32 %v1625, 2147483648
        %v1671 = vor.u32 1.1754944e-38, %v1670
        %v1672 = vsel %vm1669, %v1671, %v1667
        %v1673 = vmul.f32 1.0, %v1672
        %v1674 = vrcp.pop %v1626
        %v1675 = vmul.f32 %v1626, %v1674
        %v1676 = vsub.f32 1.0, %v1675
        %v1677 = vmul.f32 %v1674, %v1676
        %v1678 = vadd.f32 %v1674, %v1677
        %vm1679 = vweird.f32 %v1626
        %vm1680 = vweird.f32 %v1674
        %vm1681 = vmor %vm1679, %vm1680
        %v1682 = vsel %vm1681, %v1674, %v1678
        %v1683 = vand.u32 2147483647, %v1626
        %vm1684 = vcmp.eq.f32.partialorder %v1683, 8.507059e+37
        %v1685 = vand.u32 %v1626, 2147483648
        %v1686 = vor.u32 1.1754944e-38, %v1685
        %v1687 = vsel %vm1684, %v1686, %v1682
        %v1688 = vmul.f32 1.0, %v1687
        %v1689 = vrcp.pop %v1627
        %v1690 = vmul.f32 %v1627, %v1689
        %v1691 = vsub.f32 1.0, %v1690
        %v1692 = vmul.f32 %v1689, %v1691
        %v1693 = vadd.f32 %v1689, %v1692
        %vm1694 = vweird.f32 %v1627
        %vm1695 = vweird.f32 %v1689
        %vm1696 = vmor %vm1694, %vm1695
        %v1697 = vsel %vm1696, %v1689, %v1693
        %v1698 = vand.u32 2147483647, %v1627
        %vm1699 = vcmp.eq.f32.partialorder %v1698, 8.507059e+37
        %v1700 = vand.u32 %v1627, 2147483648
        %v1701 = vor.u32 1.1754944e-38, %v1700
        %v1702 = vsel %vm1699, %v1701, %v1697
        %v1703 = vmul.f32 1.0, %v1702
        %v1704 = vrcp.pop %v1628
        %v1705 = vmul.f32 %v1628, %v1704
        %v1706 = vsub.f32 1.0, %v1705
        %v1707 = vmul.f32 %v1704, %v1706
        %v1708 = vadd.f32 %v1704, %v1707
        %vm1709 = vweird.f32 %v1628
        %vm1710 = vweird.f32 %v1704
        %vm1711 = vmor %vm1709, %vm1710
        %v1712 = vsel %vm1711, %v1704, %v1708
        %v1713 = vand.u32 2147483647, %v1628
        %vm1714 = vcmp.eq.f32.partialorder %v1713, 8.507059e+37
        %v1715 = vand.u32 %v1628, 2147483648
        %v1716 = vor.u32 1.1754944e-38, %v1715
        %v1717 = vsel %vm1714, %v1716, %v1712
        %v1718 = vmul.f32 1.0, %v1717
        %v1719 = vmul.f32 %v1371, %v1643
        %v1720 = vmul.f32 %v1385, %v1658
        %v1721 = vmul.f32 %v1399, %v1673
        %v1722 = vmul.f32 %v1373, %v1688
        %v1723 = vmul.f32 %v1387, %v1703
        %v1724 = vmul.f32 %v1401, %v1718
        %v1725 = vmul.f32 %v1719, %v1573
        %v1726 = vmul.f32 %v1720, %v1587
        %v1727 = vmul.f32 %v1721, %v1601
        %v1728 = vmul.f32 %v1722, %v1575
        %v1729 = vmul.f32 %v1723, %v1589
        %v1730 = vmul.f32 %v1724, %v1603
        %v1731 = vpack.c.bf16 %v1728, %v1725
        %v1732 = vpack.c.bf16 %v1729, %v1726
        %v1733 = vpack.c.bf16 %v1730, %v1727
        %v1734 = vld [vmem:[%s9] sm:$0xf]
        %v1735 = vld [vmem:[%s9 + $0x4] sm:$0xf]
        %v1736 = vld [vmem:[%s9 + $0x8] sm:$0xf]
        %v1737 = vld [vmem:[%s9 + $0xc] sm:$0xf]
        %v1738 = vld [vmem:[%s9 + $0x10] sm:$0xf]
        %v1739 = vld [vmem:[%s9 + $0x14] sm:$0xf]
        %v1740 = vld [vmem:[%s9 + $0x18] sm:$0xf]
        %v1741 = vld [vmem:[%s9 + $0x1c] sm:$0xf]
        %v1742 = vld [vmem:[%s9 + $0x20] sm:$0xf]
        %v1743 = vld [vmem:[%s9 + $0x24] sm:$0xf]
        %v1744 = vld [vmem:[%s9 + $0x28] sm:$0xf]
        %v1745 = vld [vmem:[%s9 + $0x2c] sm:$0xf]
        %v1746 = vld [vmem:[%s9 + $0x30] sm:$0xf]
        %v1747 = vld [vmem:[%s9 + $0x34] sm:$0xf]
        %v1748 = vld [vmem:[%s9 + $0x38] sm:$0xf]
        %v1749 = vld [vmem:[%s9 + $0x3c] sm:$0xf]
        %v1750 = vld [vmem:[%s9 + $0x40] sm:$0xf]
        %v1751 = vld [vmem:[%s9 + $0x44] sm:$0xf]
        %v1752 = vld [vmem:[%s9 + $0x48] sm:$0xf]
        %v1753 = vld [vmem:[%s9 + $0x4c] sm:$0xf]
        %v1754 = vld [vmem:[%s9 + $0x50] sm:$0xf]
        %v1755 = vld [vmem:[%s9 + $0x54] sm:$0xf]
        %v1756 = vld [vmem:[%s9 + $0x58] sm:$0xf]
        %v1757 = vld [vmem:[%s9 + $0x5c] sm:$0xf]
        %v1758 = vld [vmem:[%s9 + $0x60] sm:$0xf]
        %v1759 = vld [vmem:[%s9 + $0x64] sm:$0xf]
        %v1760 = vld [vmem:[%s9 + $0x68] sm:$0xf]
        %v1761 = vld [vmem:[%s9 + $0x6c] sm:$0xf]
        %v1762 = vld [vmem:[%s9 + $0x70] sm:$0xf]
        %v1763 = vld [vmem:[%s9 + $0x74] sm:$0xf]
        %v1764 = vld [vmem:[%s9 + $0x78] sm:$0xf]
        %v1765 = vld [vmem:[%s9 + $0x7c] sm:$0xf]
        %v1766 = vld [vmem:[%s9 + $0x80] sm:$0xf]
        %v1767 = vld [vmem:[%s9 + $0x84] sm:$0xf]
        %v1768 = vld [vmem:[%s9 + $0x88] sm:$0xf]
        %v1769 = vld [vmem:[%s9 + $0x8c] sm:$0xf]
        %v1770 = vld [vmem:[%s9 + $0x90] sm:$0xf]
        %v1771 = vld [vmem:[%s9 + $0x94] sm:$0xf]
        %v1772 = vld [vmem:[%s9 + $0x98] sm:$0xf]
        %v1773 = vld [vmem:[%s9 + $0x9c] sm:$0xf]
        %v1774 = vld [vmem:[%s9 + $0xa0] sm:$0xf]
        %v1775 = vld [vmem:[%s9 + $0xa4] sm:$0xf]
        %v1776 = vld [vmem:[%s9 + $0xa8] sm:$0xf]
        %v1777 = vld [vmem:[%s9 + $0xac] sm:$0xf]
        %v1822 = vunpack.c.l.b16 %v1734
        %v1823 = vunpack.c.l.b16 %v1735
        %v1824 = vunpack.c.l.b16 %v1736
        %v1825 = vunpack.c.l.b16 %v1737
        %v1826 = vunpack.c.l.b16 %v1738
        %v1827 = vunpack.c.l.b16 %v1739
        %v1828 = vunpack.c.l.b16 %v1740
        %v1829 = vunpack.c.l.b16 %v1741
        %v1830 = vunpack.c.l.b16 %v1742
        %v1831 = vunpack.c.l.b16 %v1743
        %v1832 = vunpack.c.l.b16 %v1744
        %v1833 = vunpack.c.l.b16 %v1745
        %v1834 = vunpack.c.l.b16 %v1746
        %v1835 = vunpack.c.l.b16 %v1747
        %v1836 = vunpack.c.l.b16 %v1748
        %v1837 = vunpack.c.l.b16 %v1749
        %v1838 = vunpack.c.l.b16 %v1750
        %v1839 = vunpack.c.l.b16 %v1751
        %v1840 = vunpack.c.l.b16 %v1752
        %v1841 = vunpack.c.l.b16 %v1753
        %v1842 = vunpack.c.l.b16 %v1754
        %v1843 = vunpack.c.l.b16 %v1755
        %v1844 = vunpack.c.l.b16 %v1756
        %v1845 = vunpack.c.l.b16 %v1757
        %v1846 = vunpack.c.l.b16 %v1758
        %v1847 = vunpack.c.l.b16 %v1759
        %v1848 = vunpack.c.l.b16 %v1760
        %v1849 = vunpack.c.l.b16 %v1761
        %v1850 = vunpack.c.l.b16 %v1762
        %v1851 = vunpack.c.l.b16 %v1763
        %v1852 = vunpack.c.l.b16 %v1764
        %v1853 = vunpack.c.l.b16 %v1765
        %v1854 = vunpack.c.l.b16 %v1766
        %v1855 = vunpack.c.l.b16 %v1767
        %v1856 = vunpack.c.l.b16 %v1768
        %v1857 = vunpack.c.l.b16 %v1769
        %v1858 = vunpack.c.l.b16 %v1770
        %v1859 = vunpack.c.l.b16 %v1771
        %v1860 = vunpack.c.l.b16 %v1772
        %v1861 = vunpack.c.l.b16 %v1773
        %v1862 = vunpack.c.l.b16 %v1774
        %v1863 = vunpack.c.l.b16 %v1775
        %v1864 = vunpack.c.l.b16 %v1776
        %v1865 = vunpack.c.l.b16 %v1777
        %v1866 = vpack.c.b16 %v1823, %v1822
        %v1867 = vpack.c.b16 %v1825, %v1824
        %v1868 = vpack.c.b16 %v1827, %v1826
        %v1869 = vpack.c.b16 %v1829, %v1828
        %v1870 = vpack.c.b16 %v1831, %v1830
        %v1871 = vpack.c.b16 %v1833, %v1832
        %v1872 = vpack.c.b16 %v1835, %v1834
        %v1873 = vpack.c.b16 %v1837, %v1836
        %v1874 = vpack.c.b16 %v1839, %v1838
        %v1875 = vpack.c.b16 %v1841, %v1840
        %v1876 = vpack.c.b16 %v1843, %v1842
        %v1877 = vpack.c.b16 %v1845, %v1844
        %v1878 = vpack.c.b16 %v1847, %v1846
        %v1879 = vpack.c.b16 %v1849, %v1848
        %v1880 = vpack.c.b16 %v1851, %v1850
        %v1881 = vpack.c.b16 %v1853, %v1852
        %v1882 = vpack.c.b16 %v1855, %v1854
        %v1883 = vpack.c.b16 %v1857, %v1856
        %v1884 = vpack.c.b16 %v1859, %v1858
        %v1885 = vpack.c.b16 %v1861, %v1860
        %v1886 = vpack.c.b16 %v1863, %v1862
        %v1887 = vpack.c.b16 %v1865, %v1864
        %vm1910 = vcmask 785408
        %v1912 = vsel %vm1910, %v1733, 0
        %1914 = vmatpush.bf16.msra.mxu0 %v1873
        %1915 = vmatpush.bf16.msra.mxu0 %v1872
        %1916 = vmatpush.bf16.msra.mxu0 %v1871
        %1917 = vmatpush.bf16.msra.mxu0 %v1870
        %1918 = vmatpush.bf16.msra.mxu0 %v1869
        %1919 = vmatpush.bf16.msra.mxu0 %v1868
        %1920 = vmatpush.bf16.msra.mxu0 %v1867
        %1921 = vmatpush.bf16.msra.mxu0 %v1866
        %1922 = vmatmul.bf16.gmra.mxu0 %v1731
        %v1923 = vpop.f32.mrf.mxu0
        %v1924 = vadd.f32 0.0, %v1923
        %v1925 = vpop.f32.mrf.mxu0
        %v1926 = vadd.f32 0.0, %v1925
        %1927 = vdwg.mxu0
        %1928 = vmatpush.bf16.msra.mxu0 %v1881
        %1929 = vmatpush.bf16.msra.mxu0 %v1880
        %1930 = vmatpush.bf16.msra.mxu0 %v1879
        %1931 = vmatpush.bf16.msra.mxu0 %v1878
        %1932 = vmatpush.bf16.msra.mxu0 %v1877
        %1933 = vmatpush.bf16.msra.mxu0 %v1876
        %1934 = vmatpush.bf16.msra.mxu0 %v1875
        %1935 = vmatpush.bf16.msra.mxu0 %v1874
        %1936 = vmatmul.bf16.gmra.mxu0 %v1732
        %v1937 = vpop.f32.mrf.mxu0
        %v1938 = vadd.f32 %v1924, %v1937
        %v1939 = vpop.f32.mrf.mxu0
        %v1940 = vadd.f32 %v1926, %v1939
        %1941 = vdwg.mxu0
        %1942 = vmatpush.bf16.msra.mxu0 0
        %1943 = vmatpush.bf16.msra.mxu0 0
        %1944 = vmatpush.bf16.msra.mxu0 %v1887
        %1945 = vmatpush.bf16.msra.mxu0 %v1886
        %1946 = vmatpush.bf16.msra.mxu0 %v1885
        %1947 = vmatpush.bf16.msra.mxu0 %v1884
        %1948 = vmatpush.bf16.msra.mxu0 %v1883
        %1949 = vmatpush.bf16.msra.mxu0 %v1882
        %1950 = vmatmul.bf16.gmra.mxu0 %v1912
        %v1951 = vpop.f32.mrf.mxu0
        %v1952 = vadd.f32 %v1938, %v1951
        %v1953 = vpop.f32.mrf.mxu0
        %v1954 = vadd.f32 %v1940, %v1953
        %1955 = vdwg.mxu0
        %v1956 = vadd.f32 %v1160, %v1952
        %v1957 = vadd.f32 %v1161, %v1954
        %1958 = vst [vmem:[%s352] sm:$0xff] %v1956
        %1959 = vst [vmem:[%s352 + $0x8] sm:$0xff] %v1957
        %s1960 = sand.u32 %s247, 1
        %s1961 = scalar_lea.sflag [#allocation4], %s1960
        %s1962 = sand.u32 %s247, 1
        %s1963 = smul.addr %s1962, 16
        %s1964 = scalar_lea.vmem [#allocation3], %s1963
        // Predicated region
        $region61: #{tpu_custom_call.1} parent=59 // pred_check
          %p1965 = pneg %p257
        $region62: #{tpu_custom_call.1} parent=59 // pred_check_branch
          %1967 = sbr.rel (%p1965) target = $region64
        $region63: #{tpu_custom_call.1} parent=59 // pred_region
          %1969 = vsyncadd %s1961, 0
          %s1970 = smul.addr %s24, 2
          %s1971 = smul.addr %s1970, 8
          %s1972 = scalar_lea.hbm %s10, %s1971
          %s1973 = sshll.u32 %s1964, 4
          %s1974 = int_to_ptr.vmem [resolvable:$true] %s1973
          %s1975 = sshll.u32 %s1972, 4
          %s1976 = int_to_ptr.hbm [resolvable:$true] %s1975
          %1981 = dma.vmem_to_hbm [thread:$0]  %s1974, 256, %s1976, %s1961, 128, 128, 8
        $region64: #{tpu_custom_call.1} parent=59 // pred_fallthru
          _
      $region60: #{tpu_custom_call.1} parent=5 // pred_fallthru
        _
      %p1982 = scmp.le.s32.totalorder 2, %s19
      // Predicated region
      $region65: #{tpu_custom_call.1} parent=5 // pred_check
        %p1983 = pneg %p1982
      $region66: #{tpu_custom_call.1} parent=5 // pred_check_branch
        %1985 = sbr.rel (%p1983) target = $region68
      $region67: #{tpu_custom_call.1} parent=5 // pred_region
        %s1986 = ssub.s32 %s19, 2
        // Predicated region
        $region69: #{tpu_custom_call.1} parent=67 // pred_check
          %p1987 = pneg %p263
        $region70: #{tpu_custom_call.1} parent=67 // pred_check_branch
          %1989 = sbr.rel (%p1987) target = $region72
        $region71: #{tpu_custom_call.1} parent=67 // pred_region
          %s1990 = sand.u32 %s248, 1
          %s1991 = scalar_lea.sflag [#allocation4], %s1990
          %s1992 = sand.u32 %s248, 1
          %s1993 = smul.addr %s1992, 16
          %s1994 = scalar_lea.vmem [#allocation3], %s1993
          %1996 = dma.done %s1991, 256
        $region72: #{tpu_custom_call.1} parent=67 // pred_fallthru
          _
      $region68: #{tpu_custom_call.1} parent=5 // pred_fallthru
        _
    $region6: #{tpu_custom_call.1} parent=1 // loop_footer
      %s23 = sadd.s32 1, %s19
    $region7: #{tpu_custom_call.1} parent=1 // loop_footer_branch
      %18 = sbr.rel target = $region3
    $region8: #{tpu_custom_call.1} parent=1 // loop_exit
      _
    %1997 = vsyncpa [#allocation4], 1
    %s1998 = scalar_lea.sflag [#allocation4], 1
    %1999 = vsyncpa %s1998, 1

// kernel: tpu_custom_call.1
$region0: #{tpu_custom_call.1}
  #allocation0 [shape = 'u32[]', space=smem, size = 0x4, offset = 0x4, fixed_abs, tag = 'smem constant byte address 0x4 - core index']
  #allocation1 [shape = 'u32[72,128]{1,0:T(1,128)}', space=vmem, size = 0x9000, scoped, tag = 'internal scratch']
  #allocation2 [shape = 'bf16[16,128]{1,0:T(8,128)(2,1)}', space=vmem, size = 0x1000, scoped, tag = 'scratch operand']
  %s0 = inlined_call_operand.vmem [shape: f32[2,16,128], index: 0, kind: input, shape index: {}]
  %s1 = inlined_call_operand.vmem [shape: f32[16,128], index: 1, kind: input, shape index: {}]
  %s2 = inlined_call_operand.vmem [shape: f32[16,128], index: 2, kind: input, shape index: {}]
  %s3 = inlined_call_operand.vmem [shape: f32[1,128], index: 3, kind: input, shape index: {}]
  %s4 = inlined_call_operand.vmem [shape: f32[1,128], index: 4, kind: input, shape index: {}]
  %s5 = inlined_call_operand.vmem [shape: bf16[128,384], index: 5, kind: input, shape index: {}]
  %s6 = inlined_call_operand.vmem [shape: bf16[128,128], index: 6, kind: input, shape index: {}]
  %s7 = inlined_call_operand.vmem [shape: bf16[128,352], index: 7, kind: input, shape index: {}]
  %s8 = inlined_call_operand.vmem [shape: bf16[128,352], index: 8, kind: input, shape index: {}]
  %s9 = inlined_call_operand.vmem [shape: bf16[352,128], index: 9, kind: input, shape index: {}]
  %s10 = inlined_call_operand.hbm [shape: f32[2,16,128], index: 10, kind: output, shape index: {}]
  %s11 = sld [smem:[#allocation0]]
  $region73: #{tpu_custom_call.1} parent=0
    _
  %s13 = ssub.s32 1, %s11
  %s14 = scalar_select 0, %s13, %s11
  $region1: #{tpu_custom_call.1} parent=0
    #allocation3 [shape = 'u8[16384]{0}', space=vmem, size = 0x4000, scoped, tag = 'output window, operand 0']
    #allocation4 [shape = 's32[2]{0}', space=sflag, size = 0x8, scoped, tag = 'scoped memory for tpu_custom_call.1']
    %15 = vsyncpa [#allocation4], 0
    %s16 = scalar_lea.sflag [#allocation4], 1
    %17 = vsyncpa %s16, 0
    loop: start=0, step=1, limit=4
    $region2: #{tpu_custom_call.1} parent=1 // loop_pre_header
      _
    $region3: #{tpu_custom_call.1} parent=1 // loop_header
      %s19 = sphi 0, %s23
      %p20 = scmp.ge.s32.totalorder %s19, 4
      %s29 = sphi 0, %s31
      %s32 = sphi 0, %s29
      %s33 = sphi 0, %s32
      %s49 = sphi 0, %s33
      %s53 = sphi 0, %s53
      %s55 = sphi 0, %s53
      %s56 = sphi 0, %s55
      %s70 = sphi 0, %s56
      %s74 = sphi 0, %s74
      %s76 = sphi 0, %s74
      %s77 = sphi 0, %s76
      %s91 = sphi 0, %s77
      %s95 = sphi 0, %s95
      %s97 = sphi 0, %s95
      %s98 = sphi 0, %s97
      %s112 = sphi 0, %s98
      %s116 = sphi 0, %s116
      %s118 = sphi 0, %s116
      %s119 = sphi 0, %s118
      %s133 = sphi 0, %s119
      %s137 = sphi 0, %s137
      %s139 = sphi 0, %s137
      %s140 = sphi 0, %s139
      %s154 = sphi 0, %s140
      %s158 = sphi 0, %s158
      %s160 = sphi 0, %s158
      %s161 = sphi 0, %s160
      %s175 = sphi 0, %s161
      %s179 = sphi 0, %s179
      %s181 = sphi 0, %s179
      %s182 = sphi 0, %s181
      %s196 = sphi 0, %s182
      %s200 = sphi 0, %s200
      %s202 = sphi 0, %s200
      %s203 = sphi 0, %s202
      %s217 = sphi 0, %s203
      %s221 = sphi 0, %s221
      %s223 = sphi 0, %s221
      %s224 = sphi 0, %s223
      %s238 = sphi 0, %s224
      %s244 = sphi 0, %s246
      %s247 = sphi 0, %s244
      %s248 = sphi 0, %s247
      %s264 = sphi 0, %s248
    $region4: #{tpu_custom_call.1} parent=1 // loop_header_branch
      %22 = sbr.rel (%p20) target = $region8
    $region5: #{tpu_custom_call.1} parent=1 // loop_body
      %s24 = ssub.s32 %s19, 1
      %s25 = ssub.s32 %s19, 2
      %s26 = sadd.s32 %s19, 1
      %s27 = ssub.s32 %s19, %s26
      %p28 = scmp.eq.s32.totalorder %s27, 0
      %s30 = sadd.s32 %s29, 1
      %s31 = scalar_select %p28, %s29, %s30
      %p34 = pneg %p28
      %p35 = scmp.eq.s32.totalorder %s19, 1
      %p36 = por %p34, %p35
      %p37 = scmp.ne.s32.totalorder %s29, %s32
      %p38 = scmp.eq.s32.totalorder %s19, 0
      %p39 = por %p37, %p38
      %p40 = scmp.ne.s32.totalorder %s29, %s32
      %p41 = scmp.eq.s32.totalorder %s24, 1
      %p42 = por %p40, %p41
      %p43 = scmp.ne.s32.totalorder %s32, %s33
      %p44 = scmp.eq.s32.totalorder %s24, 0
      %p45 = por %p43, %p44
      %p46 = scmp.ne.s32.totalorder %s32, %s33
      %p47 = scmp.eq.s32.totalorder %s25, 1
      %p48 = por %p46, %p47
      %p50 = scmp.ne.s32.totalorder %s33, %s49
      %p51 = scmp.eq.s32.totalorder %s25, 0
      %p52 = por %p50, %p51
      %s54 = sadd.s32 %s53, 1
      %p57 = scmp.eq.s32.totalorder %s19, 1
      %p58 = scmp.ne.s32.totalorder %s53, %s55
      %p59 = scmp.eq.s32.totalorder %s19, 0
      %p60 = por %p58, %p59
      %p61 = scmp.ne.s32.totalorder %s53, %s55
      %p62 = scmp.eq.s32.totalorder %s24, 1
      %p63 = por %p61, %p62
      %p64 = scmp.ne.s32.totalorder %s55, %s56
      %p65 = scmp.eq.s32.totalorder %s24, 0
      %p66 = por %p64, %p65
      %p67 = scmp.ne.s32.totalorder %s55, %s56
      %p68 = scmp.eq.s32.totalorder %s25, 1
      %p69 = por %p67, %p68
      %p71 = scmp.ne.s32.totalorder %s56, %s70
      %p72 = scmp.eq.s32.totalorder %s25, 0
      %p73 = por %p71, %p72
      %s75 = sadd.s32 %s74, 1
      %p78 = scmp.eq.s32.totalorder %s19, 1
      %p79 = scmp.ne.s32.totalorder %s74, %s76
      %p80 = scmp.eq.s32.totalorder %s19, 0
      %p81 = por %p79, %p80
      %p82 = scmp.ne.s32.totalorder %s74, %s76
      %p83 = scmp.eq.s32.totalorder %s24, 1
      %p84 = por %p82, %p83
      %p85 = scmp.ne.s32.totalorder %s76, %s77
      %p86 = scmp.eq.s32.totalorder %s24, 0
      %p87 = por %p85, %p86
      %p88 = scmp.ne.s32.totalorder %s76, %s77
      %p89 = scmp.eq.s32.totalorder %s25, 1
      %p90 = por %p88, %p89
      %p92 = scmp.ne.s32.totalorder %s77, %s91
      %p93 = scmp.eq.s32.totalorder %s25, 0
      %p94 = por %p92, %p93
      %s96 = sadd.s32 %s95, 1
      %p99 = scmp.eq.s32.totalorder %s19, 1
      %p100 = scmp.ne.s32.totalorder %s95, %s97
      %p101 = scmp.eq.s32.totalorder %s19, 0
      %p102 = por %p100, %p101
      %p103 = scmp.ne.s32.totalorder %s95, %s97
      %p104 = scmp.eq.s32.totalorder %s24, 1
      %p105 = por %p103, %p104
      %p106 = scmp.ne.s32.totalorder %s97, %s98
      %p107 = scmp.eq.s32.totalorder %s24, 0
      %p108 = por %p106, %p107
      %p109 = scmp.ne.s32.totalorder %s97, %s98
      %p110 = scmp.eq.s32.totalorder %s25, 1
      %p111 = por %p109, %p110
      %p113 = scmp.ne.s32.totalorder %s98, %s112
      %p114 = scmp.eq.s32.totalorder %s25, 0
      %p115 = por %p113, %p114
      %s117 = sadd.s32 %s116, 1
      %p120 = scmp.eq.s32.totalorder %s19, 1
      %p121 = scmp.ne.s32.totalorder %s116, %s118
      %p122 = scmp.eq.s32.totalorder %s19, 0
      %p123 = por %p121, %p122
      %p124 = scmp.ne.s32.totalorder %s116, %s118
      %p125 = scmp.eq.s32.totalorder %s24, 1
      %p126 = por %p124, %p125
      %p127 = scmp.ne.s32.totalorder %s118, %s119
      %p128 = scmp.eq.s32.totalorder %s24, 0
      %p129 = por %p127, %p128
      %p130 = scmp.ne.s32.totalorder %s118, %s119
      %p131 = scmp.eq.s32.totalorder %s25, 1
      %p132 = por %p130, %p131
      %p134 = scmp.ne.s32.totalorder %s119, %s133
      %p135 = scmp.eq.s32.totalorder %s25, 0
      %p136 = por %p134, %p135
      %s138 = sadd.s32 %s137, 1
      %p141 = scmp.eq.s32.totalorder %s19, 1
      %p142 = scmp.ne.s32.totalorder %s137, %s139
      %p143 = scmp.eq.s32.totalorder %s19, 0
      %p144 = por %p142, %p143
      %p145 = scmp.ne.s32.totalorder %s137, %s139
      %p146 = scmp.eq.s32.totalorder %s24, 1
      %p147 = por %p145, %p146
      %p148 = scmp.ne.s32.totalorder %s139, %s140
      %p149 = scmp.eq.s32.totalorder %s24, 0
      %p150 = por %p148, %p149
      %p151 = scmp.ne.s32.totalorder %s139, %s140
      %p152 = scmp.eq.s32.totalorder %s25, 1
      %p153 = por %p151, %p152
      %p155 = scmp.ne.s32.totalorder %s140, %s154
      %p156 = scmp.eq.s32.totalorder %s25, 0
      %p157 = por %p155, %p156
      %s159 = sadd.s32 %s158, 1
      %p162 = scmp.eq.s32.totalorder %s19, 1
      %p163 = scmp.ne.s32.totalorder %s158, %s160
      %p164 = scmp.eq.s32.totalorder %s19, 0
      %p165 = por %p163, %p164
      %p166 = scmp.ne.s32.totalorder %s158, %s160
      %p167 = scmp.eq.s32.totalorder %s24, 1
      %p168 = por %p166, %p167
      %p169 = scmp.ne.s32.totalorder %s160, %s161
      %p170 = scmp.eq.s32.totalorder %s24, 0
      %p171 = por %p169, %p170
      %p172 = scmp.ne.s32.totalorder %s160, %s161
      %p173 = scmp.eq.s32.totalorder %s25, 1
      %p174 = por %p172, %p173
      %p176 = scmp.ne.s32.totalorder %s161, %s175
      %p177 = scmp.eq.s32.totalorder %s25, 0
      %p178 = por %p176, %p177
      %s180 = sadd.s32 %s179, 1
      %p183 = scmp.eq.s32.totalorder %s19, 1
      %p184 = scmp.ne.s32.totalorder %s179, %s181
      %p185 = scmp.eq.s32.totalorder %s19, 0
      %p186 = por %p184, %p185
      %p187 = scmp.ne.s32.totalorder %s179, %s181
      %p188 = scmp.eq.s32.totalorder %s24, 1
      %p189 = por %p187, %p188
      %p190 = scmp.ne.s32.totalorder %s181, %s182
      %p191 = scmp.eq.s32.totalorder %s24, 0
      %p192 = por %p190, %p191
      %p193 = scmp.ne.s32.totalorder %s181, %s182
      %p194 = scmp.eq.s32.totalorder %s25, 1
      %p195 = por %p193, %p194
      %p197 = scmp.ne.s32.totalorder %s182, %s196
      %p198 = scmp.eq.s32.totalorder %s25, 0
      %p199 = por %p197, %p198
      %s201 = sadd.s32 %s200, 1
      %p204 = scmp.eq.s32.totalorder %s19, 1
      %p205 = scmp.ne.s32.totalorder %s200, %s202
      %p206 = scmp.eq.s32.totalorder %s19, 0
      %p207 = por %p205, %p206
      %p208 = scmp.ne.s32.totalorder %s200, %s202
      %p209 = scmp.eq.s32.totalorder %s24, 1
      %p210 = por %p208, %p209
      %p211 = scmp.ne.s32.totalorder %s202, %s203
      %p212 = scmp.eq.s32.totalorder %s24, 0
      %p213 = por %p211, %p212
      %p214 = scmp.ne.s32.totalorder %s202, %s203
      %p215 = scmp.eq.s32.totalorder %s25, 1
      %p216 = por %p214, %p215
      %p218 = scmp.ne.s32.totalorder %s203, %s217
      %p219 = scmp.eq.s32.totalorder %s25, 0
      %p220 = por %p218, %p219
      %s222 = sadd.s32 %s221, 1
      %p225 = scmp.eq.s32.totalorder %s19, 1
      %p226 = scmp.ne.s32.totalorder %s221, %s223
      %p227 = scmp.eq.s32.totalorder %s19, 0
      %p228 = por %p226, %p227
      %p229 = scmp.ne.s32.totalorder %s221, %s223
      %p230 = scmp.eq.s32.totalorder %s24, 1
      %p231 = por %p229, %p230
      %p232 = scmp.ne.s32.totalorder %s223, %s224
      %p233 = scmp.eq.s32.totalorder %s24, 0
      %p234 = por %p232, %p233
      %p235 = scmp.ne.s32.totalorder %s223, %s224
      %p236 = scmp.eq.s32.totalorder %s25, 1
      %p237 = por %p235, %p236
      %p239 = scmp.ne.s32.totalorder %s224, %s238
      %p240 = scmp.eq.s32.totalorder %s25, 0
      %p241 = por %p239, %p240
      %s242 = ssub.s32 %s19, %s26
      %p243 = scmp.eq.s32.totalorder %s242, 0
      %s245 = sadd.s32 %s244, 1
      %s246 = scalar_select %p243, %s244, %s245
      %p249 = pneg %p243
      %p250 = scmp.eq.s32.totalorder %s19, 1
      %p251 = por %p249, %p250
      %p252 = scmp.ne.s32.totalorder %s244, %s247
      %p253 = scmp.eq.s32.totalorder %s19, 0
      %p254 = por %p252, %p253
      %p255 = scmp.ne.s32.totalorder %s244, %s247
      %p256 = scmp.eq.s32.totalorder %s24, 1
      %p257 = por %p255, %p256
      %p258 = scmp.ne.s32.totalorder %s247, %s248
      %p259 = scmp.eq.s32.totalorder %s24, 0
      %p260 = por %p258, %p259
      %p261 = scmp.ne.s32.totalorder %s247, %s248
      %p262 = scmp.eq.s32.totalorder %s25, 1
      %p263 = por %p261, %p262
      %p265 = scmp.ne.s32.totalorder %s248, %s264
      %p266 = scmp.eq.s32.totalorder %s25, 0
      %p267 = por %p265, %p266
      %p268 = scmp.le.s32.totalorder 1, %s19
      %p269 = scmp.lt.s32.totalorder %s19, 3
      %p270 = pnand %p268, %p269
      %p271 = pneg %p270
      // Predicated region
      $region9: #{tpu_custom_call.1} parent=5 // pred_check
        _
      $region10: #{tpu_custom_call.1} parent=5 // pred_check_branch
        %273 = sbr.rel (%p270) target = $region12
      $region11: #{tpu_custom_call.1} parent=5 // pred_region
        %s274 = ssub.s32 %s19, 1
        // Predicated region
        $region13: #{tpu_custom_call.1} parent=11 // pred_check
          %p275 = pneg %p66
        $region14: #{tpu_custom_call.1} parent=11 // pred_check_branch
          %277 = sbr.rel (%p275) target = $region16
        $region15: #{tpu_custom_call.1} parent=11 // pred_region
          _
        $region16: #{tpu_custom_call.1} parent=11 // pred_fallthru
          _
        // Predicated region
        $region17: #{tpu_custom_call.1} parent=11 // pred_check
          %p278 = pneg %p87
        $region18: #{tpu_custom_call.1} parent=11 // pred_check_branch
          %280 = sbr.rel (%p278) target = $region20
        $region19: #{tpu_custom_call.1} parent=11 // pred_region
          _
        $region20: #{tpu_custom_call.1} parent=11 // pred_fallthru
          _
        // Predicated region
        $region21: #{tpu_custom_call.1} parent=11 // pred_check
          %p281 = pneg %p108
        $region22: #{tpu_custom_call.1} parent=11 // pred_check_branch
          %283 = sbr.rel (%p281) target = $region24
        $region23: #{tpu_custom_call.1} parent=11 // pred_region
          _
        $region24: #{tpu_custom_call.1} parent=11 // pred_fallthru
          _
        // Predicated region
        $region25: #{tpu_custom_call.1} parent=11 // pred_check
          %p284 = pneg %p129
        $region26: #{tpu_custom_call.1} parent=11 // pred_check_branch
          %286 = sbr.rel (%p284) target = $region28
        $region27: #{tpu_custom_call.1} parent=11 // pred_region
          _
        $region28: #{tpu_custom_call.1} parent=11 // pred_fallthru
          _
        // Predicated region
        $region29: #{tpu_custom_call.1} parent=11 // pred_check
          %p287 = pneg %p150
        $region30: #{tpu_custom_call.1} parent=11 // pred_check_branch
          %289 = sbr.rel (%p287) target = $region32
        $region31: #{tpu_custom_call.1} parent=11 // pred_region
          _
        $region32: #{tpu_custom_call.1} parent=11 // pred_fallthru
          _
        // Predicated region
        $region33: #{tpu_custom_call.1} parent=11 // pred_check
          %p290 = pneg %p171
        $region34: #{tpu_custom_call.1} parent=11 // pred_check_branch
          %292 = sbr.rel (%p290) target = $region36
        $region35: #{tpu_custom_call.1} parent=11 // pred_region
          _
        $region36: #{tpu_custom_call.1} parent=11 // pred_fallthru
          _
        // Predicated region
        $region37: #{tpu_custom_call.1} parent=11 // pred_check
          %p293 = pneg %p192
        $region38: #{tpu_custom_call.1} parent=11 // pred_check_branch
          %295 = sbr.rel (%p293) target = $region40
        $region39: #{tpu_custom_call.1} parent=11 // pred_region
          _
        $region40: #{tpu_custom_call.1} parent=11 // pred_fallthru
          _
        // Predicated region
        $region41: #{tpu_custom_call.1} parent=11 // pred_check
          %p296 = pneg %p213
        $region42: #{tpu_custom_call.1} parent=11 // pred_check_branch
          %298 = sbr.rel (%p296) target = $region44
        $region43: #{tpu_custom_call.1} parent=11 // pred_region
          _
        $region44: #{tpu_custom_call.1} parent=11 // pred_fallthru
          _
        // Predicated region
        $region45: #{tpu_custom_call.1} parent=11 // pred_check
          %p299 = pneg %p234
        $region46: #{tpu_custom_call.1} parent=11 // pred_check_branch
          %301 = sbr.rel (%p299) target = $region48
        $region47: #{tpu_custom_call.1} parent=11 // pred_region
          _
        $region48: #{tpu_custom_call.1} parent=11 // pred_fallthru
          _
      $region12: #{tpu_custom_call.1} parent=5 // pred_fallthru
        _
      %p302 = scmp.lt.s32.totalorder %s19, 2
      // Predicated region
      $region49: #{tpu_custom_call.1} parent=5 // pred_check
        %p303 = pneg %p302
      $region50: #{tpu_custom_call.1} parent=5 // pred_check_branch
        %305 = sbr.rel (%p303) target = $region52
      $region51: #{tpu_custom_call.1} parent=5 // pred_region
        // Predicated region
        $region53: #{tpu_custom_call.1} parent=51 // pred_check
          %p306 = pneg %p39
        $region54: #{tpu_custom_call.1} parent=51 // pred_check_branch
          %308 = sbr.rel (%p306) target = $region56
        $region55: #{tpu_custom_call.1} parent=51 // pred_region
          %p309 = scmp.lt.s32.totalorder %s19, 1
          %s310 = scalar_select %p309, %s19, 1
          %s311 = smul.addr %s310, 2
          %s312 = smul.addr %s311, 8
          %s313 = scalar_lea.vmem %s0, %s312
        $region56: #{tpu_custom_call.1} parent=51 // pred_fallthru
          _
      $region52: #{tpu_custom_call.1} parent=5 // pred_fallthru
        _
      %p314 = scmp.le.s32.totalorder 1, %s19
      %p315 = scmp.lt.s32.totalorder %s19, 3
      %p316 = pnand %p314, %p315
      %p317 = pneg %p316
      // Predicated region
      $region57: #{tpu_custom_call.1} parent=5 // pred_check
        _
      $region58: #{tpu_custom_call.1} parent=5 // pred_check_branch
        %319 = sbr.rel (%p316) target = $region60
      $region59: #{tpu_custom_call.1} parent=5 // pred_region
        %s320 = ssub.s32 %s19, 1
        %p321 = scmp.lt.s32.totalorder %s24, 1
        %s322 = scalar_select %p321, %s24, 1
        %s323 = smul.addr %s322, 2
        %s324 = smul.addr %s323, 8
        %s325 = scalar_lea.vmem %s0, %s324
        %p326 = pneg %p45
        %p327 = pneg %p42
        %p328 = pneg %p66
        %p329 = pneg %p63
        %p330 = pneg %p87
        %p331 = pneg %p84
        %p332 = pneg %p108
        %p333 = pneg %p105
        %p334 = pneg %p129
        %p335 = pneg %p126
        %p336 = pneg %p150
        %p337 = pneg %p147
        %p338 = pneg %p171
        %p339 = pneg %p168
        %p340 = pneg %p192
        %p341 = pneg %p189
        %p342 = pneg %p213
        %p343 = pneg %p210
        %p344 = pneg %p234
        %p345 = pneg %p231
        %p346 = pneg %p260
        %p347 = pneg %p257
        %s348 = sand.u32 %s247, 1
        %s349 = scalar_lea.sflag [#allocation4], %s348
        %s350 = sand.u32 %s247, 1
        %s351 = smul.addr %s350, 16
        %s352 = scalar_lea.vmem [#allocation3], %s351
        %p353 = scmp.lt.s32.totalorder %s24, 1
        %s354 = scalar_select %p353, %s24, 1
        %s355 = smul.addr %s354, 2
        %s356 = smul.addr %s355, 8
        %s357 = scalar_lea.vmem %s0, %s356
        %v359 = vld [vmem:[%s357] sm:$0xff]
        %v360 = vld [vmem:[%s357 + $0x8] sm:$0xff]
        %v361 = vld [vmem:[%s3] sm:$0x1]
        %v362 = vmul.f32 %v359, %v359
        %v363 = vmul.f32 %v360, %v360
        %364 = vadd.xlane.f32.xlu0 %v362
        %v365 = vpop.xlane.xlu0 %364
        %366 = vadd.xlane.f32.xlu0 %v363
        %v367 = vpop.xlane.xlu0 %366
        %v368 = vrcp.pop 128.0
        %v369 = vmul.f32 128.0, %v368
        %v370 = vsub.f32 1.0, %v369
        %v371 = vmul.f32 %v368, %v370
        %v372 = vadd.f32 %v368, %v371
        %vm373 = vweird.f32 %v368
        %v374 = vsel %vm373, %v368, %v372
        %v375 = vmul.f32 %v365, %v374
        %v376 = vmul.f32 %v367, %v374
        %v377 = vadd.f32 %v375, 1e-05
        %v378 = vadd.f32 %v376, 1e-05
        %v379 = vrsqrt.pop %v377
        %v380 = vmul.f32 %v379, %v377
        %v381 = vmul.f32 %v380, %v379
        %v382 = vmul.f32 0.5, %v381
        %v383 = vsub.f32 1.5, %v382
        %v384 = vmul.f32 %v379, %v383
        %vm385 = vweird.f32 %v377
        %vm386 = vweird.f32 %v379
        %vm387 = vmor %vm385, %vm386
        %v388 = vsel %vm387, %v379, %v384
        %v389 = vrsqrt.pop %v378
        %v390 = vmul.f32 %v389, %v378
        %v391 = vmul.f32 %v390, %v389
        %v392 = vmul.f32 0.5, %v391
        %v393 = vsub.f32 1.5, %v392
        %v394 = vmul.f32 %v389, %v393
        %vm395 = vweird.f32 %v378
        %vm396 = vweird.f32 %v389
        %vm397 = vmor %vm395, %vm396
        %v398 = vsel %vm397, %v389, %v394
        %v399 = vmul.f32 %v359, %v388
        %v400 = vmul.f32 %v360, %v398
        %v402 = vperm.slane %v361, 0
        %v404 = vmul.f32 %v399, %v402
        %v405 = vmul.f32 %v400, %v402
        %v406 = vpack.c.bf16 %v405, %v404
        %v407 = vld [vmem:[%s5] sm:$0xff]
        %v408 = vld [vmem:[%s5 + $0x8] sm:$0xf]
        %v409 = vld [vmem:[%s5 + $0xc] sm:$0xff]
        %v410 = vld [vmem:[%s5 + $0x14] sm:$0xf]
        %v411 = vld [vmem:[%s5 + $0x18] sm:$0xff]
        %v412 = vld [vmem:[%s5 + $0x20] sm:$0xf]
        %v413 = vld [vmem:[%s5 + $0x24] sm:$0xff]
        %v414 = vld [vmem:[%s5 + $0x2c] sm:$0xf]
        %v415 = vld [vmem:[%s5 + $0x30] sm:$0xff]
        %v416 = vld [vmem:[%s5 + $0x38] sm:$0xf]
        %v417 = vld [vmem:[%s5 + $0x3c] sm:$0xff]
        %v418 = vld [vmem:[%s5 + $0x44] sm:$0xf]
        %v419 = vld [vmem:[%s5 + $0x48] sm:$0xff]
        %v420 = vld [vmem:[%s5 + $0x50] sm:$0xf]
        %v421 = vld [vmem:[%s5 + $0x54] sm:$0xff]
        %v422 = vld [vmem:[%s5 + $0x5c] sm:$0xf]
        %v423 = vld [vmem:[%s5 + $0x60] sm:$0xff]
        %v424 = vld [vmem:[%s5 + $0x68] sm:$0xf]
        %v425 = vld [vmem:[%s5 + $0x6c] sm:$0xff]
        %v426 = vld [vmem:[%s5 + $0x74] sm:$0xf]
        %v427 = vld [vmem:[%s5 + $0x78] sm:$0xff]
        %v428 = vld [vmem:[%s5 + $0x80] sm:$0xf]
        %v429 = vld [vmem:[%s5 + $0x84] sm:$0xff]
        %v430 = vld [vmem:[%s5 + $0x8c] sm:$0xf]
        %v431 = vld [vmem:[%s5 + $0x90] sm:$0xff]
        %v432 = vld [vmem:[%s5 + $0x98] sm:$0xf]
        %v433 = vld [vmem:[%s5 + $0x9c] sm:$0xff]
        %v434 = vld [vmem:[%s5 + $0xa4] sm:$0xf]
        %v435 = vld [vmem:[%s5 + $0xa8] sm:$0xff]
        %v436 = vld [vmem:[%s5 + $0xb0] sm:$0xf]
        %v437 = vld [vmem:[%s5 + $0xb4] sm:$0xff]
        %v438 = vld [vmem:[%s5 + $0xbc] sm:$0xf]
        %v471 = vunpack.c.l.b16 %v407
        %v472 = vunpack.c.h.b16 %v407
        %v473 = vunpack.c.l.b16 %v408
        %v474 = vunpack.c.l.b16 %v409
        %v475 = vunpack.c.h.b16 %v409
        %v476 = vunpack.c.l.b16 %v410
        %v477 = vunpack.c.l.b16 %v411
        %v478 = vunpack.c.h.b16 %v411
        %v479 = vunpack.c.l.b16 %v412
        %v480 = vunpack.c.l.b16 %v413
        %v481 = vunpack.c.h.b16 %v413
        %v482 = vunpack.c.l.b16 %v414
        %v483 = vunpack.c.l.b16 %v415
        %v484 = vunpack.c.h.b16 %v415
        %v485 = vunpack.c.l.b16 %v416
        %v486 = vunpack.c.l.b16 %v417
        %v487 = vunpack.c.h.b16 %v417
        %v488 = vunpack.c.l.b16 %v418
        %v489 = vunpack.c.l.b16 %v419
        %v490 = vunpack.c.h.b16 %v419
        %v491 = vunpack.c.l.b16 %v420
        %v492 = vunpack.c.l.b16 %v421
        %v493 = vunpack.c.h.b16 %v421
        %v494 = vunpack.c.l.b16 %v422
        %v495 = vunpack.c.l.b16 %v423
        %v496 = vunpack.c.h.b16 %v423
        %v497 = vunpack.c.l.b16 %v424
        %v498 = vunpack.c.l.b16 %v425
        %v499 = vunpack.c.h.b16 %v425
        %v500 = vunpack.c.l.b16 %v426
        %v501 = vunpack.c.l.b16 %v427
        %v502 = vunpack.c.h.b16 %v427
        %v503 = vunpack.c.l.b16 %v428
        %v504 = vunpack.c.l.b16 %v429
        %v505 = vunpack.c.h.b16 %v429
        %v506 = vunpack.c.l.b16 %v430
        %v507 = vunpack.c.l.b16 %v431
        %v508 = vunpack.c.h.b16 %v431
        %v509 = vunpack.c.l.b16 %v432
        %v510 = vunpack.c.l.b16 %v433
        %v511 = vunpack.c.h.b16 %v433
        %v512 = vunpack.c.l.b16 %v434
        %v513 = vunpack.c.l.b16 %v435
        %v514 = vunpack.c.h.b16 %v435
        %v515 = vunpack.c.l.b16 %v436
        %v516 = vunpack.c.l.b16 %v437
        %v517 = vunpack.c.h.b16 %v437
        %v518 = vunpack.c.l.b16 %v438
        %v519 = vpack.c.b16 %v474, %v471
        %v520 = vpack.c.b16 %v475, %v472
        %v521 = vpack.c.b16 %v476, %v473
        %v522 = vpack.c.b16 %v480, %v477
        %v523 = vpack.c.b16 %v481, %v478
        %v524 = vpack.c.b16 %v482, %v479
        %v525 = vpack.c.b16 %v486, %v483
        %v526 = vpack.c.b16 %v487, %v484
        %v527 = vpack.c.b16 %v488, %v485
        %v528 = vpack.c.b16 %v492, %v489
        %v529 = vpack.c.b16 %v493, %v490
        %v530 = vpack.c.b16 %v494, %v491
        %v531 = vpack.c.b16 %v498, %v495
        %v532 = vpack.c.b16 %v499, %v496
        %v533 = vpack.c.b16 %v500, %v497
        %v534 = vpack.c.b16 %v504, %v501
        %v535 = vpack.c.b16 %v505, %v502
        %v536 = vpack.c.b16 %v506, %v503
        %v537 = vpack.c.b16 %v510, %v507
        %v538 = vpack.c.b16 %v511, %v508
        %v539 = vpack.c.b16 %v512, %v509
        %v540 = vpack.c.b16 %v516, %v513
        %v541 = vpack.c.b16 %v517, %v514
        %v542 = vpack.c.b16 %v518, %v515
        %567 = vmatpush.bf16.msra.mxu0 %v540
        %568 = vmatpush.bf16.msra.mxu0 %v537
        %569 = vmatpush.bf16.msra.mxu0 %v534
        %570 = vmatpush.bf16.msra.mxu0 %v531
        %571 = vmatpush.bf16.msra.mxu0 %v528
        %572 = vmatpush.bf16.msra.mxu0 %v525
        %573 = vmatpush.bf16.msra.mxu0 %v522
        %574 = vmatpush.bf16.msra.mxu0 %v519
        %575 = vmatmul.bf16.gmra.mxu0 %v406
        %v576 = vpop.f32.mrf.mxu0
        %v577 = vadd.f32 0.0, %v576
        %v578 = vpop.f32.mrf.mxu0
        %v579 = vadd.f32 0.0, %v578
        %580 = vdwg.mxu0
        %581 = vmatpush.bf16.msra.mxu0 %v541
        %582 = vmatpush.bf16.msra.mxu0 %v538
        %583 = vmatpush.bf16.msra.mxu0 %v535
        %584 = vmatpush.bf16.msra.mxu0 %v532
        %585 = vmatpush.bf16.msra.mxu0 %v529
        %586 = vmatpush.bf16.msra.mxu0 %v526
        %587 = vmatpush.bf16.msra.mxu0 %v523
        %588 = vmatpush.bf16.msra.mxu0 %v520
        %589 = vmatmul.bf16.gmra.mxu0 %v406
        %v590 = vpop.f32.mrf.mxu0
        %v591 = vadd.f32 0.0, %v590
        %v592 = vpop.f32.mrf.mxu0
        %v593 = vadd.f32 0.0, %v592
        %594 = vdwg.mxu0
        %595 = vmatpush.bf16.msra.mxu0 %v542
        %596 = vmatpush.bf16.msra.mxu0 %v539
        %597 = vmatpush.bf16.msra.mxu0 %v536
        %598 = vmatpush.bf16.msra.mxu0 %v533
        %599 = vmatpush.bf16.msra.mxu0 %v530
        %600 = vmatpush.bf16.msra.mxu0 %v527
        %601 = vmatpush.bf16.msra.mxu0 %v524
        %602 = vmatpush.bf16.msra.mxu0 %v521
        %603 = vmatmul.bf16.gmra.mxu0 %v406
        %v604 = vpop.f32.mrf.mxu0
        %v605 = vadd.f32 0.0, %v604
        %v606 = vpop.f32.mrf.mxu0
        %v607 = vadd.f32 0.0, %v606
        %608 = vdwg.mxu0
        %v609 = vld [vmem:[%s1] sm:$0xff]
        %v610 = vld [vmem:[%s1 + $0x8] sm:$0xff]
        %v611 = vld [vmem:[%s2] sm:$0xff]
        %v612 = vld [vmem:[%s2 + $0x8] sm:$0xff]
        %v613 = vmul.f32 %v577, %v609
        %v614 = vmul.f32 %v579, %v610
        %615 = vrot.lane.b32.xlu0 %v577, 64
        %v616 = vpop.permute.xlu0 %615
        %617 = vrot.lane.b32.xlu0 %v579, 64
        %v618 = vpop.permute.xlu0 %617
        %v619 = vmul.f32 %v616, %v611
        %v620 = vmul.f32 %v618, %v612
        %v621 = vadd.f32 %v613, %v619
        %v622 = vadd.f32 %v614, %v620
        %v623 = vpack.c.bf16 %v621, %v621
        %v624 = vpack.c.bf16 %v622, %v622
        %v625 = vmul.f32 %v591, %v609
        %v626 = vmul.f32 %v593, %v610
        %627 = vrot.lane.b32.xlu0 %v591, 64
        %v628 = vpop.permute.xlu0 %627
        %629 = vrot.lane.b32.xlu0 %v593, 64
        %v630 = vpop.permute.xlu0 %629
        %v631 = vmul.f32 %v628, %v611
        %v632 = vmul.f32 %v630, %v612
        %v633 = vadd.f32 %v625, %v631
        %v634 = vadd.f32 %v626, %v632
        %v635 = vpack.c.bf16 %v633, %v633
        %v636 = vpack.c.bf16 %v634, %v634
        %v637 = vpack.c.bf16 %v605, %v605
        %v638 = vpack.c.bf16 %v607, %v607
        %v639 = vlaneseq
        %v640 = vshrl.u32 %v639, 7
        %v641 = vadd.s32 %v640, 8
        %v642 = vlaneseq
        %v643 = vand.u32 %v642, 127
        %vm644 = vcmp.gt.s32.totalorder %v643, %v640
        %vm645 = vcmp.gt.s32.totalorder %v643, %v641
        %v646 = vsel %vm644, -1e+30, 0.0
        %v647 = vsel %vm645, -1e+30, 0.0
        %v650 = vunpack.c.l.b16 %v623
        %v651 = vunpack.c.l.b16 %v624
        %v652 = vpack.c.b16 %v651, %v650
        %653 = vrot.lane.b32.xlu0 %v652, 64
        %v654 = vpop.permute.xlu0 %653
        %v657 = vunpack.c.l.b16 %v635
        %v658 = vunpack.c.l.b16 %v636
        %v659 = vpack.c.b16 %v658, %v657
        %660 = vrot.lane.b32.xlu0 %v659, 64
        %v661 = vpop.permute.xlu0 %660
        %vm662 = vcmask 130048
        %v664 = vsel %vm662, %v654, 0
        %v667 = vsel %vm662, %v661, 0
        %669 = vmatpush.bf16.xpose.msra.mxu0 0
        %670 = vmatpush.bf16.xpose.msra.mxu0 0
        %671 = vmatpush.bf16.xpose.msra.mxu0 0
        %672 = vmatpush.bf16.xpose.msra.mxu0 0
        %673 = vmatpush.bf16.xpose.msra.mxu0 0
        %674 = vmatpush.bf16.xpose.msra.mxu0 0
        %675 = vmatpush.bf16.xpose.msra.mxu0 0
        %676 = vmatpush.bf16.xpose.msra.mxu0 %v667
        %677 = vmatmul.bf16.gmra.mxu0 %v664
        %v678 = vpop.f32.mrf.mxu0
        %v679 = vadd.f32 0.0, %v678
        %v680 = vpop.f32.mrf.mxu0
        %v681 = vadd.f32 0.0, %v680
        %682 = vdwg.mxu0
        %v684 = vsel %vm662, %v652, 0
        %v687 = vsel %vm662, %v659, 0
        %689 = vmatpush.bf16.xpose.msra.mxu0 0
        %690 = vmatpush.bf16.xpose.msra.mxu0 0
        %691 = vmatpush.bf16.xpose.msra.mxu0 0
        %692 = vmatpush.bf16.xpose.msra.mxu0 0
        %693 = vmatpush.bf16.xpose.msra.mxu0 0
        %694 = vmatpush.bf16.xpose.msra.mxu0 0
        %695 = vmatpush.bf16.xpose.msra.mxu0 0
        %696 = vmatpush.bf16.xpose.msra.mxu0 %v687
        %697 = vmatmul.bf16.gmra.mxu0 %v684
        %v698 = vpop.f32.mrf.mxu0
        %v699 = vadd.f32 %v679, %v698
        %v700 = vpop.f32.mrf.mxu0
        %v701 = vadd.f32 %v681, %v700
        %702 = vdwg.mxu0
        %v703 = vadd.f32 %v699, %v646
        %v704 = vadd.f32 %v701, %v647
        %v705 = vsel %vm662, %v703, -inf
        %706 = vmax.xlane.f32.xlu0 %v705
        %v707 = vpop.xlane.xlu0 %706
        %v708 = vsel %vm662, %v704, -inf
        %709 = vmax.xlane.f32.xlu0 %v708
        %v710 = vpop.xlane.xlu0 %709
        %v711 = vsub.f32 %v703, %v707
        %v712 = vsub.f32 %v704, %v710
        %v713 = vmul.f32 %v711, 1.442695
        %v714 = vpow.pop %v713
        %v715 = vmul.f32 %v712, 1.442695
        %v716 = vpow.pop %v715
        %v717 = vsel %vm662, %v714, 0.0
        %718 = vadd.xlane.f32.xlu0 %v717
        %v719 = vpop.xlane.xlu0 %718
        %v720 = vsel %vm662, %v716, 0.0
        %721 = vadd.xlane.f32.xlu0 %v720
        %v722 = vpop.xlane.xlu0 %721
        %v723 = vpack.c.bf16 %v716, %v714
        %v726 = vunpack.c.l.b16 %v637
        %v727 = vunpack.c.l.b16 %v638
        %v728 = vpack.c.b16 %v727, %v726
        %v731 = vsel %vm662, %v723, 0
        %733 = vmatpush.bf16.msra.mxu0 0
        %734 = vmatpush.bf16.msra.mxu0 0
        %735 = vmatpush.bf16.msra.mxu0 0
        %736 = vmatpush.bf16.msra.mxu0 0
        %737 = vmatpush.bf16.msra.mxu0 0
        %738 = vmatpush.bf16.msra.mxu0 0
        %739 = vmatpush.bf16.msra.mxu0 0
        %740 = vmatpush.bf16.msra.mxu0 %v728
        %741 = vmatmul.bf16.gmra.mxu0 %v731
        %v742 = vpop.f32.mrf.mxu0
        %v743 = vadd.f32 0.0, %v742
        %v744 = vpop.f32.mrf.mxu0
        %v745 = vadd.f32 0.0, %v744
        %746 = vdwg.mxu0
        %v747 = vrcp.pop %v719
        %v748 = vrcp.pop %v722
        %v749 = vmul.f32 %v743, %v747
        %v750 = vmul.f32 %v745, %v748
        %v751 = vpack.c.bf16 %v749, %v749
        %v752 = vpack.c.bf16 %v750, %v750
        %vm753 = vcmask 257024
        %754 = vst.msk [vmem:[#allocation2] sm:$0xf] %vm753, %v751
        %755 = vst.msk [vmem:[#allocation2 + $0x4] sm:$0xf] %vm753, %v752
        %756 = vrot.lane.b32.xlu0 %v652, 48
        %v757 = vpop.permute.xlu0 %756
        %758 = vrot.lane.b32.xlu0 %v659, 48
        %v759 = vpop.permute.xlu0 %758
        %v761 = vsel %vm662, %v757, 0
        %v764 = vsel %vm662, %v759, 0
        %766 = vmatpush.bf16.xpose.msra.mxu0 0
        %767 = vmatpush.bf16.xpose.msra.mxu0 0
        %768 = vmatpush.bf16.xpose.msra.mxu0 0
        %769 = vmatpush.bf16.xpose.msra.mxu0 0
        %770 = vmatpush.bf16.xpose.msra.mxu0 0
        %771 = vmatpush.bf16.xpose.msra.mxu0 0
        %772 = vmatpush.bf16.xpose.msra.mxu0 0
        %773 = vmatpush.bf16.xpose.msra.mxu0 %v764
        %774 = vmatmul.bf16.gmra.mxu0 %v761
        %v775 = vpop.f32.mrf.mxu0
        %v776 = vadd.f32 0.0, %v775
        %v777 = vpop.f32.mrf.mxu0
        %v778 = vadd.f32 0.0, %v777
        %779 = vdwg.mxu0
        %780 = vrot.lane.b32.xlu0 %v652, 112
        %v781 = vpop.permute.xlu0 %780
        %782 = vrot.lane.b32.xlu0 %v659, 112
        %v783 = vpop.permute.xlu0 %782
        %v785 = vsel %vm662, %v781, 0
        %v788 = vsel %vm662, %v783, 0
        %790 = vmatpush.bf16.xpose.msra.mxu0 0
        %791 = vmatpush.bf16.xpose.msra.mxu0 0
        %792 = vmatpush.bf16.xpose.msra.mxu0 0
        %793 = vmatpush.bf16.xpose.msra.mxu0 0
        %794 = vmatpush.bf16.xpose.msra.mxu0 0
        %795 = vmatpush.bf16.xpose.msra.mxu0 0
        %796 = vmatpush.bf16.xpose.msra.mxu0 0
        %797 = vmatpush.bf16.xpose.msra.mxu0 %v788
        %798 = vmatmul.bf16.gmra.mxu0 %v785
        %v799 = vpop.f32.mrf.mxu0
        %v800 = vadd.f32 %v776, %v799
        %v801 = vpop.f32.mrf.mxu0
        %v802 = vadd.f32 %v778, %v801
        %803 = vdwg.mxu0
        %v804 = vadd.f32 %v800, %v646
        %v805 = vadd.f32 %v802, %v647
        %v806 = vsel %vm662, %v804, -inf
        %807 = vmax.xlane.f32.xlu0 %v806
        %v808 = vpop.xlane.xlu0 %807
        %v809 = vsel %vm662, %v805, -inf
        %810 = vmax.xlane.f32.xlu0 %v809
        %v811 = vpop.xlane.xlu0 %810
        %v812 = vsub.f32 %v804, %v808
        %v813 = vsub.f32 %v805, %v811
        %v814 = vmul.f32 %v812, 1.442695
        %v815 = vpow.pop %v814
        %v816 = vmul.f32 %v813, 1.442695
        %v817 = vpow.pop %v816
        %v818 = vsel %vm662, %v815, 0.0
        %819 = vadd.xlane.f32.xlu0 %v818
        %v820 = vpop.xlane.xlu0 %819
        %v821 = vsel %vm662, %v817, 0.0
        %822 = vadd.xlane.f32.xlu0 %v821
        %v823 = vpop.xlane.xlu0 %822
        %v824 = vpack.c.bf16 %v817, %v815
        %825 = vrot.lane.b32.xlu0 %v728, 96
        %v826 = vpop.permute.xlu0 %825
        %v829 = vsel %vm662, %v824, 0
        %831 = vmatpush.bf16.msra.mxu0 0
        %832 = vmatpush.bf16.msra.mxu0 0
        %833 = vmatpush.bf16.msra.mxu0 0
        %834 = vmatpush.bf16.msra.mxu0 0
        %835 = vmatpush.bf16.msra.mxu0 0
        %836 = vmatpush.bf16.msra.mxu0 0
        %837 = vmatpush.bf16.msra.mxu0 0
        %838 = vmatpush.bf16.msra.mxu0 %v826
        %839 = vmatmul.bf16.gmra.mxu0 %v829
        %v840 = vpop.f32.mrf.mxu0
        %v841 = vadd.f32 0.0, %v840
        %v842 = vpop.f32.mrf.mxu0
        %v843 = vadd.f32 0.0, %v842
        %844 = vdwg.mxu0
        %v845 = vrcp.pop %v820
        %v846 = vrcp.pop %v823
        %v847 = vmul.f32 %v841, %v845
        %v848 = vmul.f32 %v843, %v846
        %v849 = vpack.c.bf16 %v847, %v847
        %v850 = vpack.c.bf16 %v848, %v848
        %853 = vrot.lane.b32.xlu0 %v849, 32
        %v854 = vpop.permute.xlu0 %853
        %855 = vrot.lane.b32.xlu0 %v850, 32
        %v856 = vpop.permute.xlu0 %855
        %vm859 = vcmask 519424
        %860 = vst.msk [vmem:[#allocation2] sm:$0xf] %vm859, %v854
        %861 = vst.msk [vmem:[#allocation2 + $0x4] sm:$0xf] %vm859, %v856
        %862 = vrot.lane.b32.xlu0 %v652, 32
        %v863 = vpop.permute.xlu0 %862
        %864 = vrot.lane.b32.xlu0 %v659, 32
        %v865 = vpop.permute.xlu0 %864
        %v867 = vsel %vm662, %v863, 0
        %v870 = vsel %vm662, %v865, 0
        %872 = vmatpush.bf16.xpose.msra.mxu0 0
        %873 = vmatpush.bf16.xpose.msra.mxu0 0
        %874 = vmatpush.bf16.xpose.msra.mxu0 0
        %875 = vmatpush.bf16.xpose.msra.mxu0 0
        %876 = vmatpush.bf16.xpose.msra.mxu0 0
        %877 = vmatpush.bf16.xpose.msra.mxu0 0
        %878 = vmatpush.bf16.xpose.msra.mxu0 0
        %879 = vmatpush.bf16.xpose.msra.mxu0 %v870
        %880 = vmatmul.bf16.gmra.mxu0 %v867
        %v881 = vpop.f32.mrf.mxu0
        %v882 = vadd.f32 0.0, %v881
        %v883 = vpop.f32.mrf.mxu0
        %v884 = vadd.f32 0.0, %v883
        %885 = vdwg.mxu0
        %886 = vrot.lane.b32.xlu0 %v652, 96
        %v887 = vpop.permute.xlu0 %886
        %888 = vrot.lane.b32.xlu0 %v659, 96
        %v889 = vpop.permute.xlu0 %888
        %v891 = vsel %vm662, %v887, 0
        %v894 = vsel %vm662, %v889, 0
        %896 = vmatpush.bf16.xpose.msra.mxu0 0
        %897 = vmatpush.bf16.xpose.msra.mxu0 0
        %898 = vmatpush.bf16.xpose.msra.mxu0 0
        %899 = vmatpush.bf16.xpose.msra.mxu0 0
        %900 = vmatpush.bf16.xpose.msra.mxu0 0
        %901 = vmatpush.bf16.xpose.msra.mxu0 0
        %902 = vmatpush.bf16.xpose.msra.mxu0 0
        %903 = vmatpush.bf16.xpose.msra.mxu0 %v894
        %904 = vmatmul.bf16.gmra.mxu0 %v891
        %v905 = vpop.f32.mrf.mxu0
        %v906 = vadd.f32 %v882, %v905
        %v907 = vpop.f32.mrf.mxu0
        %v908 = vadd.f32 %v884, %v907
        %909 = vdwg.mxu0
        %v910 = vadd.f32 %v906, %v646
        %v911 = vadd.f32 %v908, %v647
        %v912 = vsel %vm662, %v910, -inf
        %913 = vmax.xlane.f32.xlu0 %v912
        %v914 = vpop.xlane.xlu0 %913
        %v915 = vsel %vm662, %v911, -inf
        %916 = vmax.xlane.f32.xlu0 %v915
        %v917 = vpop.xlane.xlu0 %916
        %v918 = vsub.f32 %v910, %v914
        %v919 = vsub.f32 %v911, %v917
        %v920 = vmul.f32 %v918, 1.442695
        %v921 = vpow.pop %v920
        %v922 = vmul.f32 %v919, 1.442695
        %v923 = vpow.pop %v922
        %v924 = vsel %vm662, %v921, 0.0
        %925 = vadd.xlane.f32.xlu0 %v924
        %v926 = vpop.xlane.xlu0 %925
        %v927 = vsel %vm662, %v923, 0.0
        %928 = vadd.xlane.f32.xlu0 %v927
        %v929 = vpop.xlane.xlu0 %928
        %v930 = vpack.c.bf16 %v923, %v921
        %931 = vrot.lane.b32.xlu0 %v728, 64
        %v932 = vpop.permute.xlu0 %931
        %v935 = vsel %vm662, %v930, 0
        %937 = vmatpush.bf16.msra.mxu0 0
        %938 = vmatpush.bf16.msra.mxu0 0
        %939 = vmatpush.bf16.msra.mxu0 0
        %940 = vmatpush.bf16.msra.mxu0 0
        %941 = vmatpush.bf16.msra.mxu0 0
        %942 = vmatpush.bf16.msra.mxu0 0
        %943 = vmatpush.bf16.msra.mxu0 0
        %944 = vmatpush.bf16.msra.mxu0 %v932
        %945 = vmatmul.bf16.gmra.mxu0 %v935
        %v946 = vpop.f32.mrf.mxu0
        %v947 = vadd.f32 0.0, %v946
        %v948 = vpop.f32.mrf.mxu0
        %v949 = vadd.f32 0.0, %v948
        %950 = vdwg.mxu0
        %v951 = vrcp.pop %v926
        %v952 = vrcp.pop %v929
        %v953 = vmul.f32 %v947, %v951
        %v954 = vmul.f32 %v949, %v952
        %v955 = vpack.c.bf16 %v953, %v953
        %v956 = vpack.c.bf16 %v954, %v954
        %959 = vrot.lane.b32.xlu0 %v955, 64
        %v960 = vpop.permute.xlu0 %959
        %961 = vrot.lane.b32.xlu0 %v956, 64
        %v962 = vpop.permute.xlu0 %961
        %vm965 = vcmask 781824
        %966 = vst.msk [vmem:[#allocation2] sm:$0xf] %vm965, %v960
        %967 = vst.msk [vmem:[#allocation2 + $0x4] sm:$0xf] %vm965, %v962
        %968 = vrot.lane.b32.xlu0 %v652, 16
        %v969 = vpop.permute.xlu0 %968
        %970 = vrot.lane.b32.xlu0 %v659, 16
        %v971 = vpop.permute.xlu0 %970
        %v973 = vsel %vm662, %v969, 0
        %v976 = vsel %vm662, %v971, 0
        %978 = vmatpush.bf16.xpose.msra.mxu0 0
        %979 = vmatpush.bf16.xpose.msra.mxu0 0
        %980 = vmatpush.bf16.xpose.msra.mxu0 0
        %981 = vmatpush.bf16.xpose.msra.mxu0 0
        %982 = vmatpush.bf16.xpose.msra.mxu0 0
        %983 = vmatpush.bf16.xpose.msra.mxu0 0
        %984 = vmatpush.bf16.xpose.msra.mxu0 0
        %985 = vmatpush.bf16.xpose.msra.mxu0 %v976
        %986 = vmatmul.bf16.gmra.mxu0 %v973
        %v987 = vpop.f32.mrf.mxu0
        %v988 = vadd.f32 0.0, %v987
        %v989 = vpop.f32.mrf.mxu0
        %v990 = vadd.f32 0.0, %v989
        %991 = vdwg.mxu0
        %992 = vrot.lane.b32.xlu0 %v652, 80
        %v993 = vpop.permute.xlu0 %992
        %994 = vrot.lane.b32.xlu0 %v659, 80
        %v995 = vpop.permute.xlu0 %994
        %v997 = vsel %vm662, %v993, 0
        %v1000 = vsel %vm662, %v995, 0
        %1002 = vmatpush.bf16.xpose.msra.mxu0 0
        %1003 = vmatpush.bf16.xpose.msra.mxu0 0
        %1004 = vmatpush.bf16.xpose.msra.mxu0 0
        %1005 = vmatpush.bf16.xpose.msra.mxu0 0
        %1006 = vmatpush.bf16.xpose.msra.mxu0 0
        %1007 = vmatpush.bf16.xpose.msra.mxu0 0
        %1008 = vmatpush.bf16.xpose.msra.mxu0 0
        %1009 = vmatpush.bf16.xpose.msra.mxu0 %v1000
        %1010 = vmatmul.bf16.gmra.mxu0 %v997
        %v1011 = vpop.f32.mrf.mxu0
        %v1012 = vadd.f32 %v988, %v1011
        %v1013 = vpop.f32.mrf.mxu0
        %v1014 = vadd.f32 %v990, %v1013
        %1015 = vdwg.mxu0
        %v1016 = vadd.f32 %v1012, %v646
        %v1017 = vadd.f32 %v1014, %v647
        %v1018 = vsel %vm662, %v1016, -inf
        %1019 = vmax.xlane.f32.xlu0 %v1018
        %v1020 = vpop.xlane.xlu0 %1019
        %v1021 = vsel %vm662, %v1017, -inf
        %1022 = vmax.xlane.f32.xlu0 %v1021
        %v1023 = vpop.xlane.xlu0 %1022
        %v1024 = vsub.f32 %v1016, %v1020
        %v1025 = vsub.f32 %v1017, %v1023
        %v1026 = vmul.f32 %v1024, 1.442695
        %v1027 = vpow.pop %v1026
        %v1028 = vmul.f32 %v1025, 1.442695
        %v1029 = vpow.pop %v1028
        %v1030 = vsel %vm662, %v1027, 0.0
        %1031 = vadd.xlane.f32.xlu0 %v1030
        %v1032 = vpop.xlane.xlu0 %1031
        %v1033 = vsel %vm662, %v1029, 0.0
        %1034 = vadd.xlane.f32.xlu0 %v1033
        %v1035 = vpop.xlane.xlu0 %1034
        %v1036 = vpack.c.bf16 %v1029, %v1027
        %1037 = vrot.lane.b32.xlu0 %v728, 32
        %v1038 = vpop.permute.xlu0 %1037
        %v1041 = vsel %vm662, %v1036, 0
        %1043 = vmatpush.bf16.msra.mxu0 0
        %1044 = vmatpush.bf16.msra.mxu0 0
        %1045 = vmatpush.bf16.msra.mxu0 0
        %1046 = vmatpush.bf16.msra.mxu0 0
        %1047 = vmatpush.bf16.msra.mxu0 0
        %1048 = vmatpush.bf16.msra.mxu0 0
        %1049 = vmatpush.bf16.msra.mxu0 0
        %1050 = vmatpush.bf16.msra.mxu0 %v1038
        %1051 = vmatmul.bf16.gmra.mxu0 %v1041
        %v1052 = vpop.f32.mrf.mxu0
        %v1053 = vadd.f32 0.0, %v1052
        %v1054 = vpop.f32.mrf.mxu0
        %v1055 = vadd.f32 0.0, %v1054
        %1056 = vdwg.mxu0
        %v1057 = vrcp.pop %v1032
        %v1058 = vrcp.pop %v1035
        %v1059 = vmul.f32 %v1053, %v1057
        %v1060 = vmul.f32 %v1055, %v1058
        %v1061 = vpack.c.bf16 %v1059, %v1059
        %v1062 = vpack.c.bf16 %v1060, %v1060
        %1065 = vrot.lane.b32.xlu0 %v1061, 96
        %v1066 = vpop.permute.xlu0 %1065
        %1067 = vrot.lane.b32.xlu0 %v1062, 96
        %v1068 = vpop.permute.xlu0 %1067
        %vm1071 = vcmask 1044224
        %1072 = vst.msk [vmem:[#allocation2] sm:$0xf] %vm1071, %v1066
        %1073 = vst.msk [vmem:[#allocation2 + $0x4] sm:$0xf] %vm1071, %v1068
        %v1074 = vld [vmem:[#allocation2] sm:$0xf]
        %v1075 = vld [vmem:[#allocation2 + $0x4] sm:$0xf]
        %v1076 = vld [vmem:[%s6] sm:$0xf]
        %v1077 = vld [vmem:[%s6 + $0x4] sm:$0xf]
        %v1078 = vld [vmem:[%s6 + $0x8] sm:$0xf]
        %v1079 = vld [vmem:[%s6 + $0xc] sm:$0xf]
        %v1080 = vld [vmem:[%s6 + $0x10] sm:$0xf]
        %v1081 = vld [vmem:[%s6 + $0x14] sm:$0xf]
        %v1082 = vld [vmem:[%s6 + $0x18] sm:$0xf]
        %v1083 = vld [vmem:[%s6 + $0x1c] sm:$0xf]
        %v1084 = vld [vmem:[%s6 + $0x20] sm:$0xf]
        %v1085 = vld [vmem:[%s6 + $0x24] sm:$0xf]
        %v1086 = vld [vmem:[%s6 + $0x28] sm:$0xf]
        %v1087 = vld [vmem:[%s6 + $0x2c] sm:$0xf]
        %v1088 = vld [vmem:[%s6 + $0x30] sm:$0xf]
        %v1089 = vld [vmem:[%s6 + $0x34] sm:$0xf]
        %v1090 = vld [vmem:[%s6 + $0x38] sm:$0xf]
        %v1091 = vld [vmem:[%s6 + $0x3c] sm:$0xf]
        %v1094 = vunpack.c.l.b16 %v1074
        %v1095 = vunpack.c.l.b16 %v1075
        %v1096 = vpack.c.b16 %v1095, %v1094
        %v1114 = vunpack.c.l.b16 %v1076
        %v1115 = vunpack.c.l.b16 %v1077
        %v1116 = vunpack.c.l.b16 %v1078
        %v1117 = vunpack.c.l.b16 %v1079
        %v1118 = vunpack.c.l.b16 %v1080
        %v1119 = vunpack.c.l.b16 %v1081
        %v1120 = vunpack.c.l.b16 %v1082
        %v1121 = vunpack.c.l.b16 %v1083
        %v1122 = vunpack.c.l.b16 %v1084
        %v1123 = vunpack.c.l.b16 %v1085
        %v1124 = vunpack.c.l.b16 %v1086
        %v1125 = vunpack.c.l.b16 %v1087
        %v1126 = vunpack.c.l.b16 %v1088
        %v1127 = vunpack.c.l.b16 %v1089
        %v1128 = vunpack.c.l.b16 %v1090
        %v1129 = vunpack.c.l.b16 %v1091
        %v1130 = vpack.c.b16 %v1115, %v1114
        %v1131 = vpack.c.b16 %v1117, %v1116
        %v1132 = vpack.c.b16 %v1119, %v1118
        %v1133 = vpack.c.b16 %v1121, %v1120
        %v1134 = vpack.c.b16 %v1123, %v1122
        %v1135 = vpack.c.b16 %v1125, %v1124
        %v1136 = vpack.c.b16 %v1127, %v1126
        %v1137 = vpack.c.b16 %v1129, %v1128
        %1146 = vmatpush.bf16.msra.mxu0 %v1137
        %1147 = vmatpush.bf16.msra.mxu0 %v1136
        %1148 = vmatpush.bf16.msra.mxu0 %v1135
        %1149 = vmatpush.bf16.msra.mxu0 %v1134
        %1150 = vmatpush.bf16.msra.mxu0 %v1133
        %1151 = vmatpush.bf16.msra.mxu0 %v1132
        %1152 = vmatpush.bf16.msra.mxu0 %v1131
        %1153 = vmatpush.bf16.msra.mxu0 %v1130
        %1154 = vmatmul.bf16.gmra.mxu0 %v1096
        %v1155 = vpop.f32.mrf.mxu0
        %v1156 = vadd.f32 0.0, %v1155
        %v1157 = vpop.f32.mrf.mxu0
        %v1158 = vadd.f32 0.0, %v1157
        %1159 = vdwg.mxu0
        %v1160 = vadd.f32 %v359, %v1156
        %v1161 = vadd.f32 %v360, %v1158
        %v1162 = vld [vmem:[%s4] sm:$0x1]
        %v1163 = vmul.f32 %v1160, %v1160
        %v1164 = vmul.f32 %v1161, %v1161
        %1165 = vadd.xlane.f32.xlu0 %v1163
        %v1166 = vpop.xlane.xlu0 %1165
        %1167 = vadd.xlane.f32.xlu0 %v1164
        %v1168 = vpop.xlane.xlu0 %1167
        %v1169 = vmul.f32 %v1166, %v374
        %v1170 = vmul.f32 %v1168, %v374
        %v1171 = vadd.f32 %v1169, 1e-05
        %v1172 = vadd.f32 %v1170, 1e-05
        %v1173 = vrsqrt.pop %v1171
        %v1174 = vmul.f32 %v1173, %v1171
        %v1175 = vmul.f32 %v1174, %v1173
        %v1176 = vmul.f32 0.5, %v1175
        %v1177 = vsub.f32 1.5, %v1176
        %v1178 = vmul.f32 %v1173, %v1177
        %vm1179 = vweird.f32 %v1171
        %vm1180 = vweird.f32 %v1173
        %vm1181 = vmor %vm1179, %vm1180
        %v1182 = vsel %vm1181, %v1173, %v1178
        %v1183 = vrsqrt.pop %v1172
        %v1184 = vmul.f32 %v1183, %v1172
        %v1185 = vmul.f32 %v1184, %v1183
        %v1186 = vmul.f32 0.5, %v1185
        %v1187 = vsub.f32 1.5, %v1186
        %v1188 = vmul.f32 %v1183, %v1187
        %vm1189 = vweird.f32 %v1172
        %vm1190 = vweird.f32 %v1183
        %vm1191 = vmor %vm1189, %vm1190
        %v1192 = vsel %vm1191, %v1183, %v1188
        %v1193 = vmul.f32 %v1160, %v1182
        %v1194 = vmul.f32 %v1161, %v1192
        %v1196 = vperm.slane %v1162, 0
        %v1198 = vmul.f32 %v1193, %v1196
        %v1199 = vmul.f32 %v1194, %v1196
        %v1200 = vpack.c.bf16 %v1199, %v1198
        %v1201 = vld [vmem:[%s7] sm:$0xff]
        %v1202 = vld [vmem:[%s7 + $0x8] sm:$0xf]
        %v1203 = vld [vmem:[%s7 + $0xc] sm:$0xff]
        %v1204 = vld [vmem:[%s7 + $0x14] sm:$0xf]
        %v1205 = vld [vmem:[%s7 + $0x18] sm:$0xff]
        %v1206 = vld [vmem:[%s7 + $0x20] sm:$0xf]
        %v1207 = vld [vmem:[%s7 + $0x24] sm:$0xff]
        %v1208 = vld [vmem:[%s7 + $0x2c] sm:$0xf]
        %v1209 = vld [vmem:[%s7 + $0x30] sm:$0xff]
        %v1210 = vld [vmem:[%s7 + $0x38] sm:$0xf]
        %v1211 = vld [vmem:[%s7 + $0x3c] sm:$0xff]
        %v1212 = vld [vmem:[%s7 + $0x44] sm:$0xf]
        %v1213 = vld [vmem:[%s7 + $0x48] sm:$0xff]
        %v1214 = vld [vmem:[%s7 + $0x50] sm:$0xf]
        %v1215 = vld [vmem:[%s7 + $0x54] sm:$0xff]
        %v1216 = vld [vmem:[%s7 + $0x5c] sm:$0xf]
        %v1217 = vld [vmem:[%s7 + $0x60] sm:$0xff]
        %v1218 = vld [vmem:[%s7 + $0x68] sm:$0xf]
        %v1219 = vld [vmem:[%s7 + $0x6c] sm:$0xff]
        %v1220 = vld [vmem:[%s7 + $0x74] sm:$0xf]
        %v1221 = vld [vmem:[%s7 + $0x78] sm:$0xff]
        %v1222 = vld [vmem:[%s7 + $0x80] sm:$0xf]
        %v1223 = vld [vmem:[%s7 + $0x84] sm:$0xff]
        %v1224 = vld [vmem:[%s7 + $0x8c] sm:$0xf]
        %v1225 = vld [vmem:[%s7 + $0x90] sm:$0xff]
        %v1226 = vld [vmem:[%s7 + $0x98] sm:$0xf]
        %v1227 = vld [vmem:[%s7 + $0x9c] sm:$0xff]
        %v1228 = vld [vmem:[%s7 + $0xa4] sm:$0xf]
        %v1229 = vld [vmem:[%s7 + $0xa8] sm:$0xff]
        %v1230 = vld [vmem:[%s7 + $0xb0] sm:$0xf]
        %v1231 = vld [vmem:[%s7 + $0xb4] sm:$0xff]
        %v1232 = vld [vmem:[%s7 + $0xbc] sm:$0xf]
        %v1265 = vunpack.c.l.b16 %v1201
        %v1266 = vunpack.c.h.b16 %v1201
        %v1267 = vunpack.c.l.b16 %v1202
        %v1268 = vunpack.c.l.b16 %v1203
        %v1269 = vunpack.c.h.b16 %v1203
        %v1270 = vunpack.c.l.b16 %v1204
        %v1271 = vunpack.c.l.b16 %v1205
        %v1272 = vunpack.c.h.b16 %v1205
        %v1273 = vunpack.c.l.b16 %v1206
        %v1274 = vunpack.c.l.b16 %v1207
        %v1275 = vunpack.c.h.b16 %v1207
        %v1276 = vunpack.c.l.b16 %v1208
        %v1277 = vunpack.c.l.b16 %v1209
        %v1278 = vunpack.c.h.b16 %v1209
        %v1279 = vunpack.c.l.b16 %v1210
        %v1280 = vunpack.c.l.b16 %v1211
        %v1281 = vunpack.c.h.b16 %v1211
        %v1282 = vunpack.c.l.b16 %v1212
        %v1283 = vunpack.c.l.b16 %v1213
        %v1284 = vunpack.c.h.b16 %v1213
        %v1285 = vunpack.c.l.b16 %v1214
        %v1286 = vunpack.c.l.b16 %v1215
        %v1287 = vunpack.c.h.b16 %v1215
        %v1288 = vunpack.c.l.b16 %v1216
        %v1289 = vunpack.c.l.b16 %v1217
        %v1290 = vunpack.c.h.b16 %v1217
        %v1291 = vunpack.c.l.b16 %v1218
        %v1292 = vunpack.c.l.b16 %v1219
        %v1293 = vunpack.c.h.b16 %v1219
        %v1294 = vunpack.c.l.b16 %v1220
        %v1295 = vunpack.c.l.b16 %v1221
        %v1296 = vunpack.c.h.b16 %v1221
        %v1297 = vunpack.c.l.b16 %v1222
        %v1298 = vunpack.c.l.b16 %v1223
        %v1299 = vunpack.c.h.b16 %v1223
        %v1300 = vunpack.c.l.b16 %v1224
        %v1301 = vunpack.c.l.b16 %v1225
        %v1302 = vunpack.c.h.b16 %v1225
        %v1303 = vunpack.c.l.b16 %v1226
        %v1304 = vunpack.c.l.b16 %v1227
        %v1305 = vunpack.c.h.b16 %v1227
        %v1306 = vunpack.c.l.b16 %v1228
        %v1307 = vunpack.c.l.b16 %v1229
        %v1308 = vunpack.c.h.b16 %v1229
        %v1309 = vunpack.c.l.b16 %v1230
        %v1310 = vunpack.c.l.b16 %v1231
        %v1311 = vunpack.c.h.b16 %v1231
        %v1312 = vunpack.c.l.b16 %v1232
        %v1313 = vpack.c.b16 %v1268, %v1265
        %v1314 = vpack.c.b16 %v1269, %v1266
        %v1315 = vpack.c.b16 %v1270, %v1267
        %v1316 = vpack.c.b16 %v1274, %v1271
        %v1317 = vpack.c.b16 %v1275, %v1272
        %v1318 = vpack.c.b16 %v1276, %v1273
        %v1319 = vpack.c.b16 %v1280, %v1277
        %v1320 = vpack.c.b16 %v1281, %v1278
        %v1321 = vpack.c.b16 %v1282, %v1279
        %v1322 = vpack.c.b16 %v1286, %v1283
        %v1323 = vpack.c.b16 %v1287, %v1284
        %v1324 = vpack.c.b16 %v1288, %v1285
        %v1325 = vpack.c.b16 %v1292, %v1289
        %v1326 = vpack.c.b16 %v1293, %v1290
        %v1327 = vpack.c.b16 %v1294, %v1291
        %v1328 = vpack.c.b16 %v1298, %v1295
        %v1329 = vpack.c.b16 %v1299, %v1296
        %v1330 = vpack.c.b16 %v1300, %v1297
        %v1331 = vpack.c.b16 %v1304, %v1301
        %v1332 = vpack.c.b16 %v1305, %v1302
        %v1333 = vpack.c.b16 %v1306, %v1303
        %v1334 = vpack.c.b16 %v1310, %v1307
        %v1335 = vpack.c.b16 %v1311, %v1308
        %v1336 = vpack.c.b16 %v1312, %v1309
        %1361 = vmatpush.bf16.msra.mxu0 %v1334
        %1362 = vmatpush.bf16.msra.mxu0 %v1331
        %1363 = vmatpush.bf16.msra.mxu0 %v1328
        %1364 = vmatpush.bf16.msra.mxu0 %v1325
        %1365 = vmatpush.bf16.msra.mxu0 %v1322
        %1366 = vmatpush.bf16.msra.mxu0 %v1319
        %1367 = vmatpush.bf16.msra.mxu0 %v1316
        %1368 = vmatpush.bf16.msra.mxu0 %v1313
        %1369 = vmatmul.bf16.gmra.mxu0 %v1200
        %v1370 = vpop.f32.mrf.mxu0
        %v1371 = vadd.f32 0.0, %v1370
        %v1372 = vpop.f32.mrf.mxu0
        %v1373 = vadd.f32 0.0, %v1372
        %1374 = vdwg.mxu0
        %1375 = vmatpush.bf16.msra.mxu0 %v1335
        %1376 = vmatpush.bf16.msra.mxu0 %v1332
        %1377 = vmatpush.bf16.msra.mxu0 %v1329
        %1378 = vmatpush.bf16.msra.mxu0 %v1326
        %1379 = vmatpush.bf16.msra.mxu0 %v1323
        %1380 = vmatpush.bf16.msra.mxu0 %v1320
        %1381 = vmatpush.bf16.msra.mxu0 %v1317
        %1382 = vmatpush.bf16.msra.mxu0 %v1314
        %1383 = vmatmul.bf16.gmra.mxu0 %v1200
        %v1384 = vpop.f32.mrf.mxu0
        %v1385 = vadd.f32 0.0, %v1384
        %v1386 = vpop.f32.mrf.mxu0
        %v1387 = vadd.f32 0.0, %v1386
        %1388 = vdwg.mxu0
        %1389 = vmatpush.bf16.msra.mxu0 %v1336
        %1390 = vmatpush.bf16.msra.mxu0 %v1333
        %1391 = vmatpush.bf16.msra.mxu0 %v1330
        %1392 = vmatpush.bf16.msra.mxu0 %v1327
        %1393 = vmatpush.bf16.msra.mxu0 %v1324
        %1394 = vmatpush.bf16.msra.mxu0 %v1321
        %1395 = vmatpush.bf16.msra.mxu0 %v1318
        %1396 = vmatpush.bf16.msra.mxu0 %v1315
        %1397 = vmatmul.bf16.gmra.mxu0 %v1200
        %v1398 = vpop.f32.mrf.mxu0
        %v1399 = vadd.f32 0.0, %v1398
        %v1400 = vpop.f32.mrf.mxu0
        %v1401 = vadd.f32 0.0, %v1400
        %1402 = vdwg.mxu0
        %v1403 = vld [vmem:[%s8] sm:$0xff]
        %v1404 = vld [vmem:[%s8 + $0x8] sm:$0xf]
        %v1405 = vld [vmem:[%s8 + $0xc] sm:$0xff]
        %v1406 = vld [vmem:[%s8 + $0x14] sm:$0xf]
        %v1407 = vld [vmem:[%s8 + $0x18] sm:$0xff]
        %v1408 = vld [vmem:[%s8 + $0x20] sm:$0xf]
        %v1409 = vld [vmem:[%s8 + $0x24] sm:$0xff]
        %v1410 = vld [vmem:[%s8 + $0x2c] sm:$0xf]
        %v1411 = vld [vmem:[%s8 + $0x30] sm:$0xff]
        %v1412 = vld [vmem:[%s8 + $0x38] sm:$0xf]
        %v1413 = vld [vmem:[%s8 + $0x3c] sm:$0xff]
        %v1414 = vld [vmem:[%s8 + $0x44] sm:$0xf]
        %v1415 = vld [vmem:[%s8 + $0x48] sm:$0xff]
        %v1416 = vld [vmem:[%s8 + $0x50] sm:$0xf]
        %v1417 = vld [vmem:[%s8 + $0x54] sm:$0xff]
        %v1418 = vld [vmem:[%s8 + $0x5c] sm:$0xf]
        %v1419 = vld [vmem:[%s8 + $0x60] sm:$0xff]
        %v1420 = vld [vmem:[%s8 + $0x68] sm:$0xf]
        %v1421 = vld [vmem:[%s8 + $0x6c] sm:$0xff]
        %v1422 = vld [vmem:[%s8 + $0x74] sm:$0xf]
        %v1423 = vld [vmem:[%s8 + $0x78] sm:$0xff]
        %v1424 = vld [vmem:[%s8 + $0x80] sm:$0xf]
        %v1425 = vld [vmem:[%s8 + $0x84] sm:$0xff]
        %v1426 = vld [vmem:[%s8 + $0x8c] sm:$0xf]
        %v1427 = vld [vmem:[%s8 + $0x90] sm:$0xff]
        %v1428 = vld [vmem:[%s8 + $0x98] sm:$0xf]
        %v1429 = vld [vmem:[%s8 + $0x9c] sm:$0xff]
        %v1430 = vld [vmem:[%s8 + $0xa4] sm:$0xf]
        %v1431 = vld [vmem:[%s8 + $0xa8] sm:$0xff]
        %v1432 = vld [vmem:[%s8 + $0xb0] sm:$0xf]
        %v1433 = vld [vmem:[%s8 + $0xb4] sm:$0xff]
        %v1434 = vld [vmem:[%s8 + $0xbc] sm:$0xf]
        %v1467 = vunpack.c.l.b16 %v1403
        %v1468 = vunpack.c.h.b16 %v1403
        %v1469 = vunpack.c.l.b16 %v1404
        %v1470 = vunpack.c.l.b16 %v1405
        %v1471 = vunpack.c.h.b16 %v1405
        %v1472 = vunpack.c.l.b16 %v1406
        %v1473 = vunpack.c.l.b16 %v1407
        %v1474 = vunpack.c.h.b16 %v1407
        %v1475 = vunpack.c.l.b16 %v1408
        %v1476 = vunpack.c.l.b16 %v1409
        %v1477 = vunpack.c.h.b16 %v1409
        %v1478 = vunpack.c.l.b16 %v1410
        %v1479 = vunpack.c.l.b16 %v1411
        %v1480 = vunpack.c.h.b16 %v1411
        %v1481 = vunpack.c.l.b16 %v1412
        %v1482 = vunpack.c.l.b16 %v1413
        %v1483 = vunpack.c.h.b16 %v1413
        %v1484 = vunpack.c.l.b16 %v1414
        %v1485 = vunpack.c.l.b16 %v1415
        %v1486 = vunpack.c.h.b16 %v1415
        %v1487 = vunpack.c.l.b16 %v1416
        %v1488 = vunpack.c.l.b16 %v1417
        %v1489 = vunpack.c.h.b16 %v1417
        %v1490 = vunpack.c.l.b16 %v1418
        %v1491 = vunpack.c.l.b16 %v1419
        %v1492 = vunpack.c.h.b16 %v1419
        %v1493 = vunpack.c.l.b16 %v1420
        %v1494 = vunpack.c.l.b16 %v1421
        %v1495 = vunpack.c.h.b16 %v1421
        %v1496 = vunpack.c.l.b16 %v1422
        %v1497 = vunpack.c.l.b16 %v1423
        %v1498 = vunpack.c.h.b16 %v1423
        %v1499 = vunpack.c.l.b16 %v1424
        %v1500 = vunpack.c.l.b16 %v1425
        %v1501 = vunpack.c.h.b16 %v1425
        %v1502 = vunpack.c.l.b16 %v1426
        %v1503 = vunpack.c.l.b16 %v1427
        %v1504 = vunpack.c.h.b16 %v1427
        %v1505 = vunpack.c.l.b16 %v1428
        %v1506 = vunpack.c.l.b16 %v1429
        %v1507 = vunpack.c.h.b16 %v1429
        %v1508 = vunpack.c.l.b16 %v1430
        %v1509 = vunpack.c.l.b16 %v1431
        %v1510 = vunpack.c.h.b16 %v1431
        %v1511 = vunpack.c.l.b16 %v1432
        %v1512 = vunpack.c.l.b16 %v1433
        %v1513 = vunpack.c.h.b16 %v1433
        %v1514 = vunpack.c.l.b16 %v1434
        %v1515 = vpack.c.b16 %v1470, %v1467
        %v1516 = vpack.c.b16 %v1471, %v1468
        %v1517 = vpack.c.b16 %v1472, %v1469
        %v1518 = vpack.c.b16 %v1476, %v1473
        %v1519 = vpack.c.b16 %v1477, %v1474
        %v1520 = vpack.c.b16 %v1478, %v1475
        %v1521 = vpack.c.b16 %v1482, %v1479
        %v1522 = vpack.c.b16 %v1483, %v1480
        %v1523 = vpack.c.b16 %v1484, %v1481
        %v1524 = vpack.c.b16 %v1488, %v1485
        %v1525 = vpack.c.b16 %v1489, %v1486
        %v1526 = vpack.c.b16 %v1490, %v1487
        %v1527 = vpack.c.b16 %v1494, %v1491
        %v1528 = vpack.c.b16 %v1495, %v1492
        %v1529 = vpack.c.b16 %v1496, %v1493
        %v1530 = vpack.c.b16 %v1500, %v1497
        %v1531 = vpack.c.b16 %v1501, %v1498
        %v1532 = vpack.c.b16 %v1502, %v1499
        %v1533 = vpack.c.b16 %v1506, %v1503
        %v1534 = vpack.c.b16 %v1507, %v1504
        %v1535 = vpack.c.b16 %v1508, %v1505
        %v1536 = vpack.c.b16 %v1512, %v1509
        %v1537 = vpack.c.b16 %v1513, %v1510
        %v1538 = vpack.c.b16 %v1514, %v1511
        %1563 = vmatpush.bf16.msra.mxu0 %v1536
        %1564 = vmatpush.bf16.msra.mxu0 %v1533
        %1565 = vmatpush.bf16.msra.mxu0 %v1530
        %1566 = vmatpush.bf16.msra.mxu0 %v1527
        %1567 = vmatpush.bf16.msra.mxu0 %v1524
        %1568 = vmatpush.bf16.msra.mxu0 %v1521
        %1569 = vmatpush.bf16.msra.mxu0 %v1518
        %1570 = vmatpush.bf16.msra.mxu0 %v1515
        %1571 = vmatmul.bf16.gmra.mxu0 %v1200
        %v1572 = vpop.f32.mrf.mxu0
        %v1573 = vadd.f32 0.0, %v1572
        %v1574 = vpop.f32.mrf.mxu0
        %v1575 = vadd.f32 0.0, %v1574
        %1576 = vdwg.mxu0
        %1577 = vmatpush.bf16.msra.mxu0 %v1537
        %1578 = vmatpush.bf16.msra.mxu0 %v1534
        %1579 = vmatpush.bf16.msra.mxu0 %v1531
        %1580 = vmatpush.bf16.msra.mxu0 %v1528
        %1581 = vmatpush.bf16.msra.mxu0 %v1525
        %1582 = vmatpush.bf16.msra.mxu0 %v1522
        %1583 = vmatpush.bf16.msra.mxu0 %v1519
        %1584 = vmatpush.bf16.msra.mxu0 %v1516
        %1585 = vmatmul.bf16.gmra.mxu0 %v1200
        %v1586 = vpop.f32.mrf.mxu0
        %v1587 = vadd.f32 0.0, %v1586
        %v1588 = vpop.f32.mrf.mxu0
        %v1589 = vadd.f32 0.0, %v1588
        %1590 = vdwg.mxu0
        %1591 = vmatpush.bf16.msra.mxu0 %v1538
        %1592 = vmatpush.bf16.msra.mxu0 %v1535
        %1593 = vmatpush.bf16.msra.mxu0 %v1532
        %1594 = vmatpush.bf16.msra.mxu0 %v1529
        %1595 = vmatpush.bf16.msra.mxu0 %v1526
        %1596 = vmatpush.bf16.msra.mxu0 %v1523
        %1597 = vmatpush.bf16.msra.mxu0 %v1520
        %1598 = vmatpush.bf16.msra.mxu0 %v1517
        %1599 = vmatmul.bf16.gmra.mxu0 %v1200
        %v1600 = vpop.f32.mrf.mxu0
        %v1601 = vadd.f32 0.0, %v1600
        %v1602 = vpop.f32.mrf.mxu0
        %v1603 = vadd.f32 0.0, %v1602
        %1604 = vdwg.mxu0
        %v1605 = vxor.u32 %v1371, 2147483648
        %v1606 = vxor.u32 %v1385, 2147483648
        %v1607 = vxor.u32 %v1399, 2147483648
        %v1608 = vxor.u32 %v1373, 2147483648
        %v1609 = vxor.u32 %v1387, 2147483648
        %v1610 = vxor.u32 %v1401, 2147483648
        %v1611 = vmul.f32 %v1605, 1.442695
        %v1612 = vpow.pop %v1611
        %v1613 = vmul.f32 %v1606, 1.442695
        %v1614 = vpow.pop %v1613
        %v1615 = vmul.f32 %v1607, 1.442695
        %v1616 = vpow.pop %v1615
        %v1617 = vmul.f32 %v1608, 1.442695
        %v1618 = vpow.pop %v1617
        %v1619 = vmul.f32 %v1609, 1.442695
        %v1620 = vpow.pop %v1619
        %v1621 = vmul.f32 %v1610, 1.442695
        %v1622 = vpow.pop %v1621
        %v1623 = vadd.f32 %v1612, 1.0
        %v1624 = vadd.f32 %v1614, 1.0
        %v1625 = vadd.f32 %v1616, 1.0
        %v1626 = vadd.f32 %v1618, 1.0
        %v1627 = vadd.f32 %v1620, 1.0
        %v1628 = vadd.f32 %v1622, 1.0
        %v1629 = vrcp.pop %v1623
        %v1630 = vmul.f32 %v1623, %v1629
        %v1631 = vsub.f32 1.0, %v1630
        %v1632 = vmul.f32 %v1629, %v1631
        %v1633 = vadd.f32 %v1629, %v1632
        %vm1634 = vweird.f32 %v1623
        %vm1635 = vweird.f32 %v1629
        %vm1636 = vmor %vm1634, %vm1635
        %v1637 = vsel %vm1636, %v1629, %v1633
        %v1638 = vand.u32 2147483647, %v1623
        %vm1639 = vcmp.eq.f32.partialorder %v1638, 8.507059e+37
        %v1640 = vand.u32 %v1623, 2147483648
        %v1641 = vor.u32 1.1754944e-38, %v1640
        %v1642 = vsel %vm1639, %v1641, %v1637
        %v1643 = vmul.f32 1.0, %v1642
        %v1644 = vrcp.pop %v1624
        %v1645 = vmul.f32 %v1624, %v1644
        %v1646 = vsub.f32 1.0, %v1645
        %v1647 = vmul.f32 %v1644, %v1646
        %v1648 = vadd.f32 %v1644, %v1647
        %vm1649 = vweird.f32 %v1624
        %vm1650 = vweird.f32 %v1644
        %vm1651 = vmor %vm1649, %vm1650
        %v1652 = vsel %vm1651, %v1644, %v1648
        %v1653 = vand.u32 2147483647, %v1624
        %vm1654 = vcmp.eq.f32.partialorder %v1653, 8.507059e+37
        %v1655 = vand.u32 %v1624, 2147483648
        %v1656 = vor.u32 1.1754944e-38, %v1655
        %v1657 = vsel %vm1654, %v1656, %v1652
        %v1658 = vmul.f32 1.0, %v1657
        %v1659 = vrcp.pop %v1625
        %v1660 = vmul.f32 %v1625, %v1659
        %v1661 = vsub.f32 1.0, %v1660
        %v1662 = vmul.f32 %v1659, %v1661
        %v1663 = vadd.f32 %v1659, %v1662
        %vm1664 = vweird.f32 %v1625
        %vm1665 = vweird.f32 %v1659
        %vm1666 = vmor %vm1664, %vm1665
        %v1667 = vsel %vm1666, %v1659, %v1663
        %v1668 = vand.u32 2147483647, %v1625
        %vm1669 = vcmp.eq.f32.partialorder %v1668, 8.507059e+37
        %v1670 = vand.u32 %v1625, 2147483648
        %v1671 = vor.u32 1.1754944e-38, %v1670
        %v1672 = vsel %vm1669, %v1671, %v1667
        %v1673 = vmul.f32 1.0, %v1672
        %v1674 = vrcp.pop %v1626
        %v1675 = vmul.f32 %v1626, %v1674
        %v1676 = vsub.f32 1.0, %v1675
        %v1677 = vmul.f32 %v1674, %v1676
        %v1678 = vadd.f32 %v1674, %v1677
        %vm1679 = vweird.f32 %v1626
        %vm1680 = vweird.f32 %v1674
        %vm1681 = vmor %vm1679, %vm1680
        %v1682 = vsel %vm1681, %v1674, %v1678
        %v1683 = vand.u32 2147483647, %v1626
        %vm1684 = vcmp.eq.f32.partialorder %v1683, 8.507059e+37
        %v1685 = vand.u32 %v1626, 2147483648
        %v1686 = vor.u32 1.1754944e-38, %v1685
        %v1687 = vsel %vm1684, %v1686, %v1682
        %v1688 = vmul.f32 1.0, %v1687
        %v1689 = vrcp.pop %v1627
        %v1690 = vmul.f32 %v1627, %v1689
        %v1691 = vsub.f32 1.0, %v1690
        %v1692 = vmul.f32 %v1689, %v1691
        %v1693 = vadd.f32 %v1689, %v1692
        %vm1694 = vweird.f32 %v1627
        %vm1695 = vweird.f32 %v1689
        %vm1696 = vmor %vm1694, %vm1695
        %v1697 = vsel %vm1696, %v1689, %v1693
        %v1698 = vand.u32 2147483647, %v1627
        %vm1699 = vcmp.eq.f32.partialorder %v1698, 8.507059e+37
        %v1700 = vand.u32 %v1627, 2147483648
        %v1701 = vor.u32 1.1754944e-38, %v1700
        %v1702 = vsel %vm1699, %v1701, %v1697
        %v1703 = vmul.f32 1.0, %v1702
        %v1704 = vrcp.pop %v1628
        %v1705 = vmul.f32 %v1628, %v1704
        %v1706 = vsub.f32 1.0, %v1705
        %v1707 = vmul.f32 %v1704, %v1706
        %v1708 = vadd.f32 %v1704, %v1707
        %vm1709 = vweird.f32 %v1628
        %vm1710 = vweird.f32 %v1704
        %vm1711 = vmor %vm1709, %vm1710
        %v1712 = vsel %vm1711, %v1704, %v1708
        %v1713 = vand.u32 2147483647, %v1628
        %vm1714 = vcmp.eq.f32.partialorder %v1713, 8.507059e+37
        %v1715 = vand.u32 %v1628, 2147483648
        %v1716 = vor.u32 1.1754944e-38, %v1715
        %v1717 = vsel %vm1714, %v1716, %v1712
        %v1718 = vmul.f32 1.0, %v1717
        %v1719 = vmul.f32 %v1371, %v1643
        %v1720 = vmul.f32 %v1385, %v1658
        %v1721 = vmul.f32 %v1399, %v1673
        %v1722 = vmul.f32 %v1373, %v1688
        %v1723 = vmul.f32 %v1387, %v1703
        %v1724 = vmul.f32 %v1401, %v1718
        %v1725 = vmul.f32 %v1719, %v1573
        %v1726 = vmul.f32 %v1720, %v1587
        %v1727 = vmul.f32 %v1721, %v1601
        %v1728 = vmul.f32 %v1722, %v1575
        %v1729 = vmul.f32 %v1723, %v1589
        %v1730 = vmul.f32 %v1724, %v1603
        %v1731 = vpack.c.bf16 %v1728, %v1725
        %v1732 = vpack.c.bf16 %v1729, %v1726
        %v1733 = vpack.c.bf16 %v1730, %v1727
        %v1734 = vld [vmem:[%s9] sm:$0xf]
        %v1735 = vld [vmem:[%s9 + $0x4] sm:$0xf]
        %v1736 = vld [vmem:[%s9 + $0x8] sm:$0xf]
        %v1737 = vld [vmem:[%s9 + $0xc] sm:$0xf]
        %v1738 = vld [vmem:[%s9 + $0x10] sm:$0xf]
        %v1739 = vld [vmem:[%s9 + $0x14] sm:$0xf]
        %v1740 = vld [vmem:[%s9 + $0x18] sm:$0xf]
        %v1741 = vld [vmem:[%s9 + $0x1c] sm:$0xf]
        %v1742 = vld [vmem:[%s9 + $0x20] sm:$0xf]
        %v1743 = vld [vmem:[%s9 + $0x24] sm:$0xf]
        %v1744 = vld [vmem:[%s9 + $0x28] sm:$0xf]
        %v1745 = vld [vmem:[%s9 + $0x2c] sm:$0xf]
        %v1746 = vld [vmem:[%s9 + $0x30] sm:$0xf]
        %v1747 = vld [vmem:[%s9 + $0x34] sm:$0xf]
        %v1748 = vld [vmem:[%s9 + $0x38] sm:$0xf]
        %v1749 = vld [vmem:[%s9 + $0x3c] sm:$0xf]
        %v1750 = vld [vmem:[%s9 + $0x40] sm:$0xf]
        %v1751 = vld [vmem:[%s9 + $0x44] sm:$0xf]
        %v1752 = vld [vmem:[%s9 + $0x48] sm:$0xf]
        %v1753 = vld [vmem:[%s9 + $0x4c] sm:$0xf]
        %v1754 = vld [vmem:[%s9 + $0x50] sm:$0xf]
        %v1755 = vld [vmem:[%s9 + $0x54] sm:$0xf]
        %v1756 = vld [vmem:[%s9 + $0x58] sm:$0xf]
        %v1757 = vld [vmem:[%s9 + $0x5c] sm:$0xf]
        %v1758 = vld [vmem:[%s9 + $0x60] sm:$0xf]
        %v1759 = vld [vmem:[%s9 + $0x64] sm:$0xf]
        %v1760 = vld [vmem:[%s9 + $0x68] sm:$0xf]
        %v1761 = vld [vmem:[%s9 + $0x6c] sm:$0xf]
        %v1762 = vld [vmem:[%s9 + $0x70] sm:$0xf]
        %v1763 = vld [vmem:[%s9 + $0x74] sm:$0xf]
        %v1764 = vld [vmem:[%s9 + $0x78] sm:$0xf]
        %v1765 = vld [vmem:[%s9 + $0x7c] sm:$0xf]
        %v1766 = vld [vmem:[%s9 + $0x80] sm:$0xf]
        %v1767 = vld [vmem:[%s9 + $0x84] sm:$0xf]
        %v1768 = vld [vmem:[%s9 + $0x88] sm:$0xf]
        %v1769 = vld [vmem:[%s9 + $0x8c] sm:$0xf]
        %v1770 = vld [vmem:[%s9 + $0x90] sm:$0xf]
        %v1771 = vld [vmem:[%s9 + $0x94] sm:$0xf]
        %v1772 = vld [vmem:[%s9 + $0x98] sm:$0xf]
        %v1773 = vld [vmem:[%s9 + $0x9c] sm:$0xf]
        %v1774 = vld [vmem:[%s9 + $0xa0] sm:$0xf]
        %v1775 = vld [vmem:[%s9 + $0xa4] sm:$0xf]
        %v1776 = vld [vmem:[%s9 + $0xa8] sm:$0xf]
        %v1777 = vld [vmem:[%s9 + $0xac] sm:$0xf]
        %v1822 = vunpack.c.l.b16 %v1734
        %v1823 = vunpack.c.l.b16 %v1735
        %v1824 = vunpack.c.l.b16 %v1736
        %v1825 = vunpack.c.l.b16 %v1737
        %v1826 = vunpack.c.l.b16 %v1738
        %v1827 = vunpack.c.l.b16 %v1739
        %v1828 = vunpack.c.l.b16 %v1740
        %v1829 = vunpack.c.l.b16 %v1741
        %v1830 = vunpack.c.l.b16 %v1742
        %v1831 = vunpack.c.l.b16 %v1743
        %v1832 = vunpack.c.l.b16 %v1744
        %v1833 = vunpack.c.l.b16 %v1745
        %v1834 = vunpack.c.l.b16 %v1746
        %v1835 = vunpack.c.l.b16 %v1747
        %v1836 = vunpack.c.l.b16 %v1748
        %v1837 = vunpack.c.l.b16 %v1749
        %v1838 = vunpack.c.l.b16 %v1750
        %v1839 = vunpack.c.l.b16 %v1751
        %v1840 = vunpack.c.l.b16 %v1752
        %v1841 = vunpack.c.l.b16 %v1753
        %v1842 = vunpack.c.l.b16 %v1754
        %v1843 = vunpack.c.l.b16 %v1755
        %v1844 = vunpack.c.l.b16 %v1756
        %v1845 = vunpack.c.l.b16 %v1757
        %v1846 = vunpack.c.l.b16 %v1758
        %v1847 = vunpack.c.l.b16 %v1759
        %v1848 = vunpack.c.l.b16 %v1760
        %v1849 = vunpack.c.l.b16 %v1761
        %v1850 = vunpack.c.l.b16 %v1762
        %v1851 = vunpack.c.l.b16 %v1763
        %v1852 = vunpack.c.l.b16 %v1764
        %v1853 = vunpack.c.l.b16 %v1765
        %v1854 = vunpack.c.l.b16 %v1766
        %v1855 = vunpack.c.l.b16 %v1767
        %v1856 = vunpack.c.l.b16 %v1768
        %v1857 = vunpack.c.l.b16 %v1769
        %v1858 = vunpack.c.l.b16 %v1770
        %v1859 = vunpack.c.l.b16 %v1771
        %v1860 = vunpack.c.l.b16 %v1772
        %v1861 = vunpack.c.l.b16 %v1773
        %v1862 = vunpack.c.l.b16 %v1774
        %v1863 = vunpack.c.l.b16 %v1775
        %v1864 = vunpack.c.l.b16 %v1776
        %v1865 = vunpack.c.l.b16 %v1777
        %v1866 = vpack.c.b16 %v1823, %v1822
        %v1867 = vpack.c.b16 %v1825, %v1824
        %v1868 = vpack.c.b16 %v1827, %v1826
        %v1869 = vpack.c.b16 %v1829, %v1828
        %v1870 = vpack.c.b16 %v1831, %v1830
        %v1871 = vpack.c.b16 %v1833, %v1832
        %v1872 = vpack.c.b16 %v1835, %v1834
        %v1873 = vpack.c.b16 %v1837, %v1836
        %v1874 = vpack.c.b16 %v1839, %v1838
        %v1875 = vpack.c.b16 %v1841, %v1840
        %v1876 = vpack.c.b16 %v1843, %v1842
        %v1877 = vpack.c.b16 %v1845, %v1844
        %v1878 = vpack.c.b16 %v1847, %v1846
        %v1879 = vpack.c.b16 %v1849, %v1848
        %v1880 = vpack.c.b16 %v1851, %v1850
        %v1881 = vpack.c.b16 %v1853, %v1852
        %v1882 = vpack.c.b16 %v1855, %v1854
        %v1883 = vpack.c.b16 %v1857, %v1856
        %v1884 = vpack.c.b16 %v1859, %v1858
        %v1885 = vpack.c.b16 %v1861, %v1860
        %v1886 = vpack.c.b16 %v1863, %v1862
        %v1887 = vpack.c.b16 %v1865, %v1864
        %vm1910 = vcmask 785408
        %v1912 = vsel %vm1910, %v1733, 0
        %1914 = vmatpush.bf16.msra.mxu0 %v1873
        %1915 = vmatpush.bf16.msra.mxu0 %v1872
        %1916 = vmatpush.bf16.msra.mxu0 %v1871
        %1917 = vmatpush.bf16.msra.mxu0 %v1870
        %1918 = vmatpush.bf16.msra.mxu0 %v1869
        %1919 = vmatpush.bf16.msra.mxu0 %v1868
        %1920 = vmatpush.bf16.msra.mxu0 %v1867
        %1921 = vmatpush.bf16.msra.mxu0 %v1866
        %1922 = vmatmul.bf16.gmra.mxu0 %v1731
        %v1923 = vpop.f32.mrf.mxu0
        %v1924 = vadd.f32 0.0, %v1923
        %v1925 = vpop.f32.mrf.mxu0
        %v1926 = vadd.f32 0.0, %v1925
        %1927 = vdwg.mxu0
        %1928 = vmatpush.bf16.msra.mxu0 %v1881
        %1929 = vmatpush.bf16.msra.mxu0 %v1880
        %1930 = vmatpush.bf16.msra.mxu0 %v1879
        %1931 = vmatpush.bf16.msra.mxu0 %v1878
        %1932 = vmatpush.bf16.msra.mxu0 %v1877
        %1933 = vmatpush.bf16.msra.mxu0 %v1876
        %1934 = vmatpush.bf16.msra.mxu0 %v1875
        %1935 = vmatpush.bf16.msra.mxu0 %v1874
        %1936 = vmatmul.bf16.gmra.mxu0 %v1732
        %v1937 = vpop.f32.mrf.mxu0
        %v1938 = vadd.f32 %v1924, %v1937
        %v1939 = vpop.f32.mrf.mxu0
        %v1940 = vadd.f32 %v1926, %v1939
        %1941 = vdwg.mxu0
        %1942 = vmatpush.bf16.msra.mxu0 0
        %1943 = vmatpush.bf16.msra.mxu0 0
        %1944 = vmatpush.bf16.msra.mxu0 %v1887
        %1945 = vmatpush.bf16.msra.mxu0 %v1886
        %1946 = vmatpush.bf16.msra.mxu0 %v1885
        %1947 = vmatpush.bf16.msra.mxu0 %v1884
        %1948 = vmatpush.bf16.msra.mxu0 %v1883
        %1949 = vmatpush.bf16.msra.mxu0 %v1882
        %1950 = vmatmul.bf16.gmra.mxu0 %v1912
        %v1951 = vpop.f32.mrf.mxu0
        %v1952 = vadd.f32 %v1938, %v1951
        %v1953 = vpop.f32.mrf.mxu0
        %v1954 = vadd.f32 %v1940, %v1953
        %1955 = vdwg.mxu0
        %v1956 = vadd.f32 %v1160, %v1952
        %v1957 = vadd.f32 %v1161, %v1954
        %1958 = vst [vmem:[%s352] sm:$0xff] %v1956
        %1959 = vst [vmem:[%s352 + $0x8] sm:$0xff] %v1957
        %s1960 = sand.u32 %s247, 1
        %s1961 = scalar_lea.sflag [#allocation4], %s1960
        %s1962 = sand.u32 %s247, 1
        %s1963 = smul.addr %s1962, 16
        %s1964 = scalar_lea.vmem [#allocation3], %s1963
        // Predicated region
        $region61: #{tpu_custom_call.1} parent=59 // pred_check
          %p1965 = pneg %p257
        $region62: #{tpu_custom_call.1} parent=59 // pred_check_branch
          %1967 = sbr.rel (%p1965) target = $region64
        $region63: #{tpu_custom_call.1} parent=59 // pred_region
          %1969 = vsyncadd %s1961, 0
          %s1970 = smul.addr %s24, 2
          %s1971 = smul.addr %s1970, 8
          %s1972 = scalar_lea.hbm %s10, %s1971
          %s1973 = sshll.u32 %s1964, 4
          %s1974 = int_to_ptr.vmem [resolvable:$true] %s1973
          %s1975 = sshll.u32 %s1972, 4
          %s1976 = int_to_ptr.hbm [resolvable:$true] %s1975
          %1981 = dma.vmem_to_hbm [thread:$0]  %s1974, 256, %s1976, %s1961, 128, 128, 8
        $region64: #{tpu_custom_call.1} parent=59 // pred_fallthru
          _
      $region60: #{tpu_custom_call.1} parent=5 // pred_fallthru
        _
      %p1982 = scmp.le.s32.totalorder 2, %s19
      // Predicated region
      $region65: #{tpu_custom_call.1} parent=5 // pred_check
        %p1983 = pneg %p1982
      $region66: #{tpu_custom_call.1} parent=5 // pred_check_branch
        %1985 = sbr.rel (%p1983) target = $region68
      $region67: #{tpu_custom_call.1} parent=5 // pred_region
        %s1986 = ssub.s32 %s19, 2
        // Predicated region
        $region69: #{tpu_custom_call.1} parent=67 // pred_check
          %p1987 = pneg %p263
        $region70: #{tpu_custom_call.1} parent=67 // pred_check_branch
          %1989 = sbr.rel (%p1987) target = $region72
        $region71: #{tpu_custom_call.1} parent=67 // pred_region
          %s1990 = sand.u32 %s248, 1
          %s1991 = scalar_lea.sflag [#allocation4], %s1990
          %s1992 = sand.u32 %s248, 1
          %s1993 = smul.addr %s1992, 16
          %s1994 = scalar_lea.vmem [#allocation3], %s1993
          %1996 = dma.done %s1991, 256
        $region72: #{tpu_custom_call.1} parent=67 // pred_fallthru
          _
      $region68: #{tpu_custom_call.1} parent=5 // pred_fallthru
        _
    $region6: #{tpu_custom_call.1} parent=1 // loop_footer
      %s23 = sadd.s32 1, %s19
    $region7: #{tpu_custom_call.1} parent=1 // loop_footer_branch
      %18 = sbr.rel target = $region3
    $region8: #{tpu_custom_call.1} parent=1 // loop_exit
      _
    %1997 = vsyncpa [#allocation4], 1
    %s1998 = scalar_lea.sflag [#allocation4], 1
    %1999 = vsyncpa %s1998, 1

</llo_original>
